<compile_context>
chip_gen: v7x
topology: tpu7x:2x2x1
jax: 0.10.0
libtpu: 0.0.40
codegen_flags: <defaults>
</compile_context>

<pallas_src>
import jax
import jax.numpy as jnp
import numpy as np
from jax import lax
from jax.experimental import pallas as pl
from jax.experimental.pallas import tpu as pltpu


# ----------------------------------------------------------------------------
# Fused kernel: one grid step == one batch element; all three branches
# (hour/day/week) run end-to-end inside the kernel with VMEM-resident
# intermediates.
# ----------------------------------------------------------------------------
def astgcn_kernel(
    a_ref, x_ref,
    vs1_ref, bs1_ref, w1a_ref, w2a_ref, w3a_ref, th1_ref, gb1_ref, cw1_ref, cb1_ref,
    vs2_ref, bs2_ref, w1b_ref, w2b_ref, w3b_ref, th2_ref, gb2_ref, cw2_ref, cb2_ref,
    lin_w_ref, lin_b_ref, fuse_ref,
    out_ref,
):
    f32 = jnp.float32
    a_nodiag = a_ref[...]                 # (N, N) adjacency, diagonal pre-zeroed
    n = a_nodiag.shape[0]

    # Conv1d boundary masks: built once, reused by all 3 branches.
    def conv_masks(t2):
        t_idx = lax.broadcasted_iota(jnp.int32, (n, t2), 1)
        return t_idx == 0, t_idx == (t2 - 1)

    t2_1 = gb1_ref.shape[-1]              # 64
    t2_2 = gb2_ref.shape[-1]              # 32
    masks1 = conv_masks(t2_1)
    masks2 = conv_masks(t2_2)

    def softmax_axis0(m):                 # torch nn.Softmax(dim=1) on (B, N, N)
        m = m - jnp.max(m, axis=0, keepdims=True)
        e = jnp.exp(m)
        # EUP reciprocal + VPU multiply instead of a VPU divide.
        return e * pl.reciprocal(jnp.sum(e, axis=0, keepdims=True), approx=False)

    def stblock(x, vs, bsm, w1row, w2row, w3, theta_cat, gcn_b, cw, cb, masks):
        # ---- SpatialAtt (channel dim C == 1) ----
        u = jnp.sum(x * w1row, axis=1, keepdims=True)      # matmul(X, W1)   -> (N, 1)
        w1xw2 = u * w2row                                  # matmul(W1x, W2) -> (N, T)
        w3x = w3 * x                                       # matmul(W3, X)   -> (N, T)
        s = lax.dot_general(w1xw2, w3x, (((1,), (1,)), ((), ())),
                            preferred_element_type=f32)    # W1xW2 @ W3x^T   -> (N, N)
        s = softmax_axis0(s + bsm)
        s = softmax_axis0(jnp.dot(vs, s, preferred_element_type=f32))

        # ---- ChebConv (K=3, sym norm, lambda_max=2, self loops pre-removed) ----
        a_nd = a_nodiag * s                                # attention-modulated, no diag
        deg = jnp.sum(a_nd, axis=1, keepdims=True)         # (N, 1)
        d_col = jnp.where(deg > 0.0, lax.rsqrt(deg), 0.0)  # EUP rsqrt
        a_rn = d_col * a_nd                                # row-normalized once

        # lhat(z) = -(D^-1/2 A_nd D^-1/2) z == -(a_rn @ (d_col * z))
        tx0 = x
        tx1 = -jnp.dot(a_rn, d_col * tx0, preferred_element_type=f32)
        tx2 = -2.0 * jnp.dot(a_rn, d_col * tx1, preferred_element_type=f32) - tx0
        # Fused K=3 contraction: one MXU op with K = 3*T1.
        tx_cat = jnp.concatenate([tx0, tx1, tx2], axis=1)  # (N, 3*T1)
        g = jnp.dot(tx_cat, theta_cat, preferred_element_type=f32) + gcn_b
        g = jnp.maximum(g, 0.0)                            # relu after GCN

        # ---- temporal Conv1d(1, 1, 3, padding=1) + relu ----
        first_m, last_m = masks
        t2 = g.shape[1]
        left = jnp.where(first_m, 0.0, pltpu.roll(g, 1, axis=1))        # x[t-1]
        right = jnp.where(last_m, 0.0, pltpu.roll(g, t2 - 1, axis=1))   # x[t+1]
        y = cw[0] * left + cw[1] * g + cw[2] * right + cb
        return jnp.maximum(y, 0.0)

    ys = []
    for br in range(3):                   # hour / day / week (unrolled at trace time)
        x = x_ref[br, 0]                  # (N, T)
        y = stblock(x, vs1_ref[br], bs1_ref[br], w1a_ref[br], w2a_ref[br], w3a_ref[br],
                    th1_ref[br], gb1_ref[br],
                    (cw1_ref[br, 0], cw1_ref[br, 1], cw1_ref[br, 2]), cb1_ref[br],
                    masks1)
        y = stblock(y, vs2_ref[br], bs2_ref[br], w1b_ref[br], w2b_ref[br], w3b_ref[br],
                    th2_ref[br], gb2_ref[br],
                    (cw2_ref[br, 0], cw2_ref[br, 1], cw2_ref[br, 2]), cb2_ref[br],
                    masks2)
        ys.append(y)                      # (N, 32)

    # Shared LinearD (PyTorch forward uses LinearD for all branches) applied once
    # to a (3N, 32) slab for better MXU M-fill, then relu + fusion-weighted sum.
    y_all = jnp.concatenate(ys, axis=0)                          # (3N, 32)
    z = jnp.maximum(jnp.dot(y_all, lin_w_ref[...],
                            preferred_element_type=f32) + lin_b_ref[...], 0.0)
    out = (fuse_ref[0] * z[:n]
           + fuse_ref[1] * z[n:2 * n]
           + fuse_ref[2] * z[2 * n:])
    out_ref[0] = out                      # single HBM store of (N, Tp) per batch


# ----------------------------------------------------------------------------
# Wrapper: stacks branches, builds BlockSpecs, runs the single fused call.
# ----------------------------------------------------------------------------
def _padded_vmem_bytes(shape, dtype):
    s = (1, 1) + tuple(int(d) for d in shape)
    lead = int(np.prod(s[:-2]))
    sub = -(-s[-2] // 8) * 8
    lane = -(-s[-1] // 128) * 128
    return lead * sub * lane * jnp.dtype(dtype).itemsize


@jax.jit
def astgcn_notatt(Xh, Xd, Xw, A, params):
    b_sz, n = Xh.shape[0], Xh.shape[1]
    assert Xh.shape[2] == 1 and Xd.shape[2] == 1 and Xw.shape[2] == 1
    th_, td_, tw_ = Xh.shape[-1], Xd.shape[-1], Xw.shape[-1]
    assert th_ == td_ == tw_, "branch stacking requires Th == Td == Tw"
    t_in = th_
    xs = jnp.stack([Xh.reshape(b_sz, n, t_in),
                    Xd.reshape(b_sz, n, t_in),
                    Xw.reshape(b_sz, n, t_in)], axis=0)          # (3, B, N, T)

    # Self loops are removed before normalization anyway -> pre-zero the diag.
    a_nodiag = A * (1.0 - jnp.eye(n, dtype=A.dtype))

    p1, p2 = params["blk1"], params["blk2"]
    t2_1 = p1["theta"].shape[-1]                                  # 64
    t2_2 = p2["theta"].shape[-1]                                  # 32
    tp = params["lin_w"].shape[-1]

    # Stack Chebyshev weights along the contraction axis: (3, 3, T1, T2) -> (3, 3*T1, T2).
    th1 = p1["theta"].reshape(3, 3 * t_in, t2_1)
    th2 = p2["theta"].reshape(3, 3 * t2_1, t2_2)

    def vmem(arr):
        nd = arr.ndim
        return pl.BlockSpec(arr.shape, lambda b: (0,) * nd)

    def smem():
        return pl.BlockSpec(memory_space=pltpu.MemorySpace.SMEM)

    def block_specs(p, th_cat):
        return [vmem(p["Vs"]), vmem(p["bs"]), vmem(p["W1"]), vmem(p["W2"]), smem(),
                vmem(th_cat), vmem(p["gcn_b"]), smem(), smem()]

    def block_args(p, th_cat):
        return [p["Vs"], p["bs"], p["W1"], p["W2"], p["W3"],
                th_cat, p["gcn_b"], p["conv_w"], p["conv_b"]]

    args = ([a_nodiag, xs] + block_args(p1, th1) + block_args(p2, th2)
            + [params["lin_w"], params["lin_b"], params["fuse"]])

    in_specs = ([pl.BlockSpec((n, n), lambda b: (0, 0)),
                 pl.BlockSpec((3, 1, n, t_in), lambda b: (0, b, 0, 0))]
                + block_specs(p1, th1) + block_specs(p2, th2)
                + [vmem(params["lin_w"]), vmem(params["lin_b"]), vmem(params["fuse"])])

    # Explicit scoped-VMEM limit from the actual (padded, double-buffered)
    # argument footprint + headroom; floor at 32 MiB so small cases keep the
    # default-compatible budget, cap at 64 MiB to stay generation-safe (v7x).
    est = sum(_padded_vmem_bytes(a.shape, a.dtype) for a in args)
    est += _padded_vmem_bytes((1, n, tp), jnp.float32)
    vmem_limit = int(min(64 << 20, max(32 << 20, 2 * est + (4 << 20))))

    # NOTE: grid=(B,) + "parallel" lets v7x's two TensorCores split the batch;
    # keep B a multiple of 2 per call on v7x (B==1 would idle one core).
    out = pl.pallas_call(
        astgcn_kernel,
        out_shape=jax.ShapeDtypeStruct((b_sz, n, tp), jnp.float32),
        grid=(b_sz,),
        in_specs=in_specs,
        out_specs=pl.BlockSpec((1, n, tp), lambda b: (b, 0, 0)),
        compiler_params=pltpu.CompilerParams(
            dimension_semantics=("parallel",),
            vmem_limit_bytes=vmem_limit),
    )(*args)
    return out.reshape(b_sz, n, 1, tp)


# ----------------------------------------------------------------------------
# Parameter init (leading axis of 3 = hour/day/week branch).
# ----------------------------------------------------------------------------
def init_params(key, n, t_in, tp):
    def u(k, shape, lo, hi):
        return jax.random.uniform(k, shape, jnp.float32, lo, hi)

    ks = iter(jax.random.split(key, 32))

    def block(t1, t2):
        return {
            "Vs": u(next(ks), (3, n, n), -0.5, 0.5),           # SpatialAtt.Vs
            "bs": u(next(ks), (3, n, n), -0.5, 0.5),           # SpatialAtt.bs
            "W1": u(next(ks), (3, 1, t1), 0.0, 1.0),           # SpatialAtt.W1
            "W2": u(next(ks), (3, 1, t1), -0.5, 0.5),          # SpatialAtt.W2 (C=1)
            "W3": u(next(ks), (3,), 0.0, 1.0),                 # SpatialAtt.W3 (C=1)
            "theta": u(next(ks), (3, 3, t1, t2), -0.3, 0.3),   # ChebConv weights, K=3
            "gcn_b": u(next(ks), (3, 1, t2), -0.1, 0.1),       # ChebConv bias
            "conv_w": u(next(ks), (3, 3), -0.5, 0.5),          # Conv1d(1,1,3) weight
            "conv_b": u(next(ks), (3,), -0.1, 0.1),            # Conv1d bias
        }

    return {
        "blk1": block(t_in, 64),
        "blk2": block(64, 32),
        "lin_w": u(next(ks), (32, tp), -0.3, 0.3),   # LinearD (shared by all branches)
        "lin_b": u(next(ks), (1, tp), -0.1, 0.1),
        "fuse": u(next(ks), (3, 1, tp), 0.0, 1.0),   # Fusion Wh / Wd / Ww
    }


# ----------------------------------------------------------------------------
# Pure-JAX reference (mirrors the PyTorch ops) to validate the Pallas kernel.
# Uses explicit HIGHEST precision so the reference stays accurate while the
# kernel runs at default matmul precision.
# ----------------------------------------------------------------------------
_PREC = jax.lax.Precision.HIGHEST


def spatial_att_ref(x4, Vs, bs, W1, W2, W3):
    # x4: (B, N, C, T) with C == 1 — mirrors SpatialAtt.forward.
    W1x = jnp.einsum("bnct,t->bnc", x4, W1, precision=_PREC)        # matmul(X, W1)
    W3x = jnp.einsum("c,bnct->bnt", W3, x4, precision=_PREC)        # matmul(W3, X)
    W1xW2 = jnp.einsum("bnc,ct->bnt", W1x, W2, precision=_PREC)     # matmul(W1x, W2)
    S = jnp.einsum("bnt,bmt->bnm", W1xW2, W3x, precision=_PREC)     # @ W3x^T
    S = jax.nn.softmax(S + bs, axis=1)
    S = jnp.einsum("ij,bjk->bik", Vs, S, precision=_PREC)
    return jax.nn.softmax(S, axis=1)


def stblock_ref(x4, A, p, br):
    b_sz, n = x4.shape[0], x4.shape[1]
    S = spatial_att_ref(x4, p["Vs"][br], p["bs"][br],
                        p["W1"][br, 0], p["W2"][br], p["W3"][br][None])
    A_hat = A[None] * S
    x = x4.reshape(b_sz, n, -1)
    A_nd = A_hat * (1.0 - jnp.eye(n))
    deg = A_nd.sum(axis=2)
    d_is = jnp.where(deg > 0, 1.0 / jnp.sqrt(deg), 0.0)
    lhat = -(d_is[:, :, None] * A_nd * d_is[:, None, :])
    tx0 = x
    tx1 = jnp.einsum("bij,bjt->bit", lhat, tx0, precision=_PREC)
    tx2 = 2.0 * jnp.einsum("bij,bjt->bit", lhat, tx1, precision=_PREC) - tx0
    th = p["theta"][br]
    g = (jnp.einsum("bnt,to->bno", tx0, th[0], precision=_PREC)
         + jnp.einsum("bnt,to->bno", tx1, th[1], precision=_PREC)
         + jnp.einsum("bnt,to->bno", tx2, th[2], precision=_PREC)
         + p["gcn_b"][br])
    g = jnp.maximum(g, 0.0)
    pad = jnp.pad(g, ((0, 0), (0, 0), (1, 1)))
    cw, cb = p["conv_w"][br], p["conv_b"][br]
    y = cw[0] * pad[:, :, :-2] + cw[1] * pad[:, :, 1:-1] + cw[2] * pad[:, :, 2:] + cb
    return jnp.maximum(y, 0.0)[:, :, None, :]


def astgcn_ref(Xh, Xd, Xw, A, params):
    out = 0.0
    for br, X in enumerate((Xh, Xd, Xw)):
        y = stblock_ref(X, A, params["blk1"], br)
        y = stblock_ref(y, A, params["blk2"], br)
        z = jnp.maximum(jnp.matmul(y, params["lin_w"], precision=_PREC)
                        + params["lin_b"], 0.0)
        out = out + params["fuse"][br] * z
    return out


if __name__ == "__main__":
    B, N = 2, 16
    Th = Td = Tw = 8
    Tp = 4

    key = jax.random.PRNGKey(0)
    k_xh, k_xd, k_xw, k_a, k_p = jax.random.split(key, 5)

    Xh = jax.random.normal(k_xh, (B, N, 1, Th), jnp.float32)
    Xd = jax.random.normal(k_xd, (B, N, 1, Td), jnp.float32)
    Xw = jax.random.normal(k_xw, (B, N, 1, Tw), jnp.float32)
    A = jax.random.uniform(k_a, (N, N), jnp.float32)
    A = 0.5 * (A + A.T) * (1.0 - jnp.eye(N))   # non-negative adjacency, no self loops

    params = init_params(k_p, N, Th, Tp)

    y = astgcn_notatt(Xh, Xd, Xw, A, params)
    y = jax.block_until_ready(y)

    y_ref = astgcn_ref(Xh, Xd, Xw, A, params)
    # Tolerance accommodates default (non-HIGHEST) matmul precision inside the
    # kernel; with f32 MXU passes the observed mismatch is orders of magnitude
    # smaller, and genuine bugs produce O(1) errors that this still catches.
    np.testing.assert_allclose(np.asarray(y), np.asarray(y_ref), rtol=1e-2, atol=1e-3)
    assert y.shape == (B, N, 1, Tp)

    print("KERNEL_OK")
</pallas_src>

<mosaic_0001>
module attributes {stable_mosaic.version = 11 : i64} {
  func.func @astgcn_kernel(%arg0: i32, %arg1: memref<16x16xf32, #tpu.memory_space<vmem>>, %arg2: memref<3x1x16x8xf32, #tpu.memory_space<vmem>>, %arg3: memref<3x16x16xf32, #tpu.memory_space<vmem>>, %arg4: memref<3x16x16xf32, #tpu.memory_space<vmem>>, %arg5: memref<3x1x8xf32, #tpu.memory_space<vmem>>, %arg6: memref<3x1x8xf32, #tpu.memory_space<vmem>>, %arg7: memref<3xf32, #tpu.memory_space<smem>>, %arg8: memref<3x24x64xf32, #tpu.memory_space<vmem>>, %arg9: memref<3x1x64xf32, #tpu.memory_space<vmem>>, %arg10: memref<3x3xf32, #tpu.memory_space<smem>>, %arg11: memref<3xf32, #tpu.memory_space<smem>>, %arg12: memref<3x16x16xf32, #tpu.memory_space<vmem>>, %arg13: memref<3x16x16xf32, #tpu.memory_space<vmem>>, %arg14: memref<3x1x64xf32, #tpu.memory_space<vmem>>, %arg15: memref<3x1x64xf32, #tpu.memory_space<vmem>>, %arg16: memref<3xf32, #tpu.memory_space<smem>>, %arg17: memref<3x192x32xf32, #tpu.memory_space<vmem>>, %arg18: memref<3x1x32xf32, #tpu.memory_space<vmem>>, %arg19: memref<3x3xf32, #tpu.memory_space<smem>>, %arg20: memref<3xf32, #tpu.memory_space<smem>>, %arg21: memref<32x4xf32, #tpu.memory_space<vmem>>, %arg22: memref<1x4xf32, #tpu.memory_space<vmem>>, %arg23: memref<3x1x4xf32, #tpu.memory_space<vmem>>, %arg24: memref<1x16x4xf32, #tpu.memory_space<vmem>>) attributes {dimension_semantics = [#tpu.dimension_semantics<parallel>], iteration_bounds = array<i64: 2>, scalar_prefetch = 0 : i64, scratch_operands = 0 : i64, tpu.core_type = #tpu.core_type<tc>, window_params = [{pipeline_mode = #tpu.pipeline_mode<synchronous>, transform_indices = @transform_0, window_bounds = array<i64: 16, 16>}, {transform_indices = @transform_1, window_bounds = array<i64: 3, 1, 16, 8>}, {pipeline_mode = #tpu.pipeline_mode<synchronous>, transform_indices = @transform_2, window_bounds = array<i64: 3, 16, 16>}, {pipeline_mode = #tpu.pipeline_mode<synchronous>, transform_indices = @transform_3, window_bounds = array<i64: 3, 16, 16>}, {pipeline_mode = #tpu.pipeline_mode<synchronous>, transform_indices = @transform_4, window_bounds = array<i64: 3, 1, 8>}, {pipeline_mode = #tpu.pipeline_mode<synchronous>, transform_indices = @transform_5, window_bounds = array<i64: 3, 1, 8>}, {transform_indices = @transform_6, window_bounds = array<i64: 3>}, {pipeline_mode = #tpu.pipeline_mode<synchronous>, transform_indices = @transform_7, window_bounds = array<i64: 3, 24, 64>}, {pipeline_mode = #tpu.pipeline_mode<synchronous>, transform_indices = @transform_8, window_bounds = array<i64: 3, 1, 64>}, {transform_indices = @transform_9, window_bounds = array<i64: 3, 3>}, {transform_indices = @transform_10, window_bounds = array<i64: 3>}, {pipeline_mode = #tpu.pipeline_mode<synchronous>, transform_indices = @transform_11, window_bounds = array<i64: 3, 16, 16>}, {pipeline_mode = #tpu.pipeline_mode<synchronous>, transform_indices = @transform_12, window_bounds = array<i64: 3, 16, 16>}, {pipeline_mode = #tpu.pipeline_mode<synchronous>, transform_indices = @transform_13, window_bounds = array<i64: 3, 1, 64>}, {pipeline_mode = #tpu.pipeline_mode<synchronous>, transform_indices = @transform_14, window_bounds = array<i64: 3, 1, 64>}, {transform_indices = @transform_15, window_bounds = array<i64: 3>}, {pipeline_mode = #tpu.pipeline_mode<synchronous>, transform_indices = @transform_16, window_bounds = array<i64: 3, 192, 32>}, {pipeline_mode = #tpu.pipeline_mode<synchronous>, transform_indices = @transform_17, window_bounds = array<i64: 3, 1, 32>}, {transform_indices = @transform_18, window_bounds = array<i64: 3, 3>}, {transform_indices = @transform_19, window_bounds = array<i64: 3>}, {pipeline_mode = #tpu.pipeline_mode<synchronous>, transform_indices = @transform_20, window_bounds = array<i64: 32, 4>}, {pipeline_mode = #tpu.pipeline_mode<synchronous>, transform_indices = @transform_21, window_bounds = array<i64: 1, 4>}, {pipeline_mode = #tpu.pipeline_mode<synchronous>, transform_indices = @transform_22, window_bounds = array<i64: 3, 1, 4>}, {transform_indices = @transform_23, window_bounds = array<i64: 1, 16, 4>}]} {
    %c0 = arith.constant 0 : index
    %c0_0 = arith.constant 0 : index
    %0 = vector.load %arg1[%c0, %c0_0] : memref<16x16xf32, #tpu.memory_space<vmem>>, vector<16x16xf32>
    %1 = tpu.iota {dimensions = array<i32: 1>} : vector<16x64xi32>
    %c0_i32 = arith.constant 0 : i32
    %2 = vector.broadcast %c0_i32 : i32 to vector<16x64xi32>
    %3 = arith.cmpi eq, %1, %2 : vector<16x64xi32>
    %c63_i32 = arith.constant 63 : i32
    %4 = vector.broadcast %c63_i32 : i32 to vector<16x64xi32>
    %5 = arith.cmpi eq, %1, %4 : vector<16x64xi32>
    %6 = tpu.iota {dimensions = array<i32: 1>} : vector<16x32xi32>
    %c0_i32_1 = arith.constant 0 : i32
    %7 = vector.broadcast %c0_i32_1 : i32 to vector<16x32xi32>
    %8 = arith.cmpi eq, %6, %7 : vector<16x32xi32>
    %c31_i32 = arith.constant 31 : i32
    %9 = vector.broadcast %c31_i32 : i32 to vector<16x32xi32>
    %10 = arith.cmpi eq, %6, %9 : vector<16x32xi32>
    %c0_2 = arith.constant 0 : index
    %c0_3 = arith.constant 0 : index
    %c0_4 = arith.constant 0 : index
    %c0_5 = arith.constant 0 : index
    %11 = vector.load %arg2[%c0_2, %c0_3, %c0_4, %c0_5] : memref<3x1x16x8xf32, #tpu.memory_space<vmem>>, vector<1x1x16x8xf32>
    %12 = vector.shape_cast %11 : vector<1x1x16x8xf32> to vector<16x8xf32>
    %c0_6 = arith.constant 0 : index
    %c0_7 = arith.constant 0 : index
    %c0_8 = arith.constant 0 : index
    %13 = vector.load %arg3[%c0_6, %c0_7, %c0_8] : memref<3x16x16xf32, #tpu.memory_space<vmem>>, vector<1x16x16xf32>
    %14 = vector.shape_cast %13 : vector<1x16x16xf32> to vector<16x16xf32>
    %c0_9 = arith.constant 0 : index
    %c0_10 = arith.constant 0 : index
    %c0_11 = arith.constant 0 : index
    %15 = vector.load %arg4[%c0_9, %c0_10, %c0_11] : memref<3x16x16xf32, #tpu.memory_space<vmem>>, vector<1x16x16xf32>
    %16 = vector.shape_cast %15 : vector<1x16x16xf32> to vector<16x16xf32>
    %c0_12 = arith.constant 0 : index
    %c0_13 = arith.constant 0 : index
    %c0_14 = arith.constant 0 : index
    %17 = vector.load %arg5[%c0_12, %c0_13, %c0_14] : memref<3x1x8xf32, #tpu.memory_space<vmem>>, vector<1x1x8xf32>
    %18 = vector.shape_cast %17 : vector<1x1x8xf32> to vector<1x8xf32>
    %c0_15 = arith.constant 0 : index
    %c0_16 = arith.constant 0 : index
    %c0_17 = arith.constant 0 : index
    %19 = vector.load %arg6[%c0_15, %c0_16, %c0_17] : memref<3x1x8xf32, #tpu.memory_space<vmem>>, vector<1x1x8xf32>
    %20 = vector.shape_cast %19 : vector<1x1x8xf32> to vector<1x8xf32>
    %c0_18 = arith.constant 0 : index
    %21 = memref.load %arg7[%c0_18] : memref<3xf32, #tpu.memory_space<smem>>
    %c0_19 = arith.constant 0 : index
    %c0_20 = arith.constant 0 : index
    %c0_21 = arith.constant 0 : index
    %22 = vector.load %arg8[%c0_19, %c0_20, %c0_21] : memref<3x24x64xf32, #tpu.memory_space<vmem>>, vector<1x24x64xf32>
    %23 = vector.shape_cast %22 : vector<1x24x64xf32> to vector<24x64xf32>
    %c0_22 = arith.constant 0 : index
    %c0_23 = arith.constant 0 : index
    %c0_24 = arith.constant 0 : index
    %24 = vector.load %arg9[%c0_22, %c0_23, %c0_24] : memref<3x1x64xf32, #tpu.memory_space<vmem>>, vector<1x1x64xf32>
    %25 = vector.shape_cast %24 : vector<1x1x64xf32> to vector<1x64xf32>
    %c0_25 = arith.constant 0 : index
    %c0_26 = arith.constant 0 : index
    %26 = memref.load %arg10[%c0_25, %c0_26] : memref<3x3xf32, #tpu.memory_space<smem>>
    %c0_27 = arith.constant 0 : index
    %c1 = arith.constant 1 : index
    %27 = memref.load %arg10[%c0_27, %c1] : memref<3x3xf32, #tpu.memory_space<smem>>
    %c0_28 = arith.constant 0 : index
    %c2 = arith.constant 2 : index
    %28 = memref.load %arg10[%c0_28, %c2] : memref<3x3xf32, #tpu.memory_space<smem>>
    %c0_29 = arith.constant 0 : index
    %29 = memref.load %arg11[%c0_29] : memref<3xf32, #tpu.memory_space<smem>>
    %30 = vector.broadcast %18 : vector<1x8xf32> to vector<16x8xf32>
    %31 = arith.mulf %12, %30 : vector<16x8xf32>
    %cst = arith.constant dense<0.000000e+00> : vector<16xf32>
    %32 = vector.multi_reduction <add>, %31, %cst [1] : vector<16x8xf32> to vector<16xf32>
    %33 = vector.shape_cast %32 : vector<16xf32> to vector<16x1xf32>
    %34 = vector.broadcast %33 : vector<16x1xf32> to vector<16x8xf32>
    %35 = vector.broadcast %20 : vector<1x8xf32> to vector<16x8xf32>
    %36 = arith.mulf %34, %35 : vector<16x8xf32>
    %37 = vector.broadcast %21 : f32 to vector<16x8xf32>
    %38 = arith.mulf %37, %12 : vector<16x8xf32>
    %cst_30 = arith.constant dense<0.000000e+00> : vector<16x16xf32>
    %39 = tpu.matmul %36, %38, %cst_30 {dimension_numbers = #tpu.dot_dimension_numbers<[1], [1], [0], [0], [0, 0, 1, 0], [], []>} : vector<16x8xf32>, vector<16x8xf32>, vector<16x16xf32> -> vector<16x16xf32>
    %40 = arith.addf %39, %16 : vector<16x16xf32>
    %cst_31 = arith.constant dense<0xFF800000> : vector<16xf32>
    %41 = vector.multi_reduction <maximumf>, %40, %cst_31 [0] : vector<16x16xf32> to vector<16xf32>
    %42 = vector.shape_cast %41 : vector<16xf32> to vector<1x16xf32>
    %43 = vector.broadcast %42 : vector<1x16xf32> to vector<16x16xf32>
    %44 = arith.subf %40, %43 : vector<16x16xf32>
    %45 = math.exp %44 : vector<16x16xf32>
    %cst_32 = arith.constant dense<0.000000e+00> : vector<16xf32>
    %46 = vector.multi_reduction <add>, %45, %cst_32 [0] : vector<16x16xf32> to vector<16xf32>
    %47 = vector.shape_cast %46 : vector<16xf32> to vector<1x16xf32>
    %48 = tpu.reciprocal %47 : vector<1x16xf32> -> vector<1x16xf32>
    %49 = vector.broadcast %48 : vector<1x16xf32> to vector<16x16xf32>
    %50 = arith.mulf %45, %49 : vector<16x16xf32>
    %cst_33 = arith.constant dense<0.000000e+00> : vector<16x16xf32>
    %51 = tpu.matmul %14, %50, %cst_33 {dimension_numbers = #tpu.dot_dimension_numbers<[1], [0], [0], [1], [0, 0, 1, 1], [], []>} : vector<16x16xf32>, vector<16x16xf32>, vector<16x16xf32> -> vector<16x16xf32>
    %cst_34 = arith.constant dense<0xFF800000> : vector<16xf32>
    %52 = vector.multi_reduction <maximumf>, %51, %cst_34 [0] : vector<16x16xf32> to vector<16xf32>
    %53 = vector.shape_cast %52 : vector<16xf32> to vector<1x16xf32>
    %54 = vector.broadcast %53 : vector<1x16xf32> to vector<16x16xf32>
    %55 = arith.subf %51, %54 : vector<16x16xf32>
    %56 = math.exp %55 : vector<16x16xf32>
    %cst_35 = arith.constant dense<0.000000e+00> : vector<16xf32>
    %57 = vector.multi_reduction <add>, %56, %cst_35 [0] : vector<16x16xf32> to vector<16xf32>
    %58 = vector.shape_cast %57 : vector<16xf32> to vector<1x16xf32>
    %59 = tpu.reciprocal %58 : vector<1x16xf32> -> vector<1x16xf32>
    %60 = vector.broadcast %59 : vector<1x16xf32> to vector<16x16xf32>
    %61 = arith.mulf %56, %60 : vector<16x16xf32>
    %62 = arith.mulf %0, %61 : vector<16x16xf32>
    %cst_36 = arith.constant dense<0.000000e+00> : vector<16xf32>
    %63 = vector.multi_reduction <add>, %62, %cst_36 [1] : vector<16x16xf32> to vector<16xf32>
    %64 = vector.shape_cast %63 : vector<16xf32> to vector<16x1xf32>
    %cst_37 = arith.constant 0.000000e+00 : f32
    %65 = vector.broadcast %cst_37 : f32 to vector<16x1xf32>
    %66 = arith.cmpf ogt, %64, %65 : vector<16x1xf32>
    %67 = math.rsqrt %64 : vector<16x1xf32>
    %cst_38 = arith.constant 0.000000e+00 : f32
    %68 = vector.broadcast %cst_38 : f32 to vector<16x1xf32>
    %69 = arith.select %66, %67, %68 : vector<16x1xi1>, vector<16x1xf32>
    %70 = vector.broadcast %69 : vector<16x1xf32> to vector<16x16xf32>
    %71 = arith.mulf %70, %62 : vector<16x16xf32>
    %72 = vector.broadcast %69 : vector<16x1xf32> to vector<16x8xf32>
    %73 = arith.mulf %72, %12 : vector<16x8xf32>
    %cst_39 = arith.constant dense<0.000000e+00> : vector<16x8xf32>
    %74 = tpu.matmul %71, %73, %cst_39 {dimension_numbers = #tpu.dot_dimension_numbers<[1], [0], [0], [1], [0, 0, 1, 1], [], []>} : vector<16x16xf32>, vector<16x8xf32>, vector<16x8xf32> -> vector<16x8xf32>
    %cst_40 = arith.constant 0.000000e+00 : f32
    %75 = vector.broadcast %cst_40 : f32 to vector<16x8xf32>
    %76 = arith.subf %75, %74 : vector<16x8xf32>
    %77 = vector.broadcast %69 : vector<16x1xf32> to vector<16x8xf32>
    %78 = arith.mulf %77, %76 : vector<16x8xf32>
    %cst_41 = arith.constant dense<0.000000e+00> : vector<16x8xf32>
    %79 = tpu.matmul %71, %78, %cst_41 {dimension_numbers = #tpu.dot_dimension_numbers<[1], [0], [0], [1], [0, 0, 1, 1], [], []>} : vector<16x16xf32>, vector<16x8xf32>, vector<16x8xf32> -> vector<16x8xf32>
    %cst_42 = arith.constant -2.000000e+00 : f32
    %80 = vector.broadcast %cst_42 : f32 to vector<16x8xf32>
    %81 = arith.mulf %80, %79 : vector<16x8xf32>
    %82 = arith.subf %81, %12 : vector<16x8xf32>
    %83 = tpu.concatenate %12, %76, %82 in 1 : vector<16x8xf32>, vector<16x8xf32>, vector<16x8xf32> -> vector<16x24xf32>
    %cst_43 = arith.constant dense<0.000000e+00> : vector<16x64xf32>
    %84 = tpu.matmul %83, %23, %cst_43 {dimension_numbers = #tpu.dot_dimension_numbers<[1], [0], [0], [1], [0, 0, 1, 1], [], []>} : vector<16x24xf32>, vector<24x64xf32>, vector<16x64xf32> -> vector<16x64xf32>
    %85 = vector.broadcast %25 : vector<1x64xf32> to vector<16x64xf32>
    %86 = arith.addf %84, %85 : vector<16x64xf32>
    %cst_44 = arith.constant 0.000000e+00 : f32
    %87 = vector.broadcast %cst_44 : f32 to vector<16x64xf32>
    %88 = arith.maximumf %86, %87 : vector<16x64xf32>
    %c1_i32 = arith.constant 1 : i32
    %89 = tpu.dynamic_rotate %88 by %c1_i32 dim 1 : vector<16x64xf32>, i32 -> vector<16x64xf32>
    %cst_45 = arith.constant 0.000000e+00 : f32
    %90 = vector.broadcast %cst_45 : f32 to vector<16x64xf32>
    %91 = arith.select %3, %90, %89 : vector<16x64xi1>, vector<16x64xf32>
    %c63_i32_46 = arith.constant 63 : i32
    %92 = tpu.dynamic_rotate %88 by %c63_i32_46 dim 1 : vector<16x64xf32>, i32 -> vector<16x64xf32>
    %cst_47 = arith.constant 0.000000e+00 : f32
    %93 = vector.broadcast %cst_47 : f32 to vector<16x64xf32>
    %94 = arith.select %5, %93, %92 : vector<16x64xi1>, vector<16x64xf32>
    %95 = vector.broadcast %26 : f32 to vector<16x64xf32>
    %96 = arith.mulf %95, %91 : vector<16x64xf32>
    %97 = vector.broadcast %27 : f32 to vector<16x64xf32>
    %98 = arith.mulf %97, %88 : vector<16x64xf32>
    %99 = arith.addf %96, %98 : vector<16x64xf32>
    %100 = vector.broadcast %28 : f32 to vector<16x64xf32>
    %101 = arith.mulf %100, %94 : vector<16x64xf32>
    %102 = arith.addf %99, %101 : vector<16x64xf32>
    %103 = vector.broadcast %29 : f32 to vector<16x64xf32>
    %104 = arith.addf %102, %103 : vector<16x64xf32>
    %cst_48 = arith.constant 0.000000e+00 : f32
    %105 = vector.broadcast %cst_48 : f32 to vector<16x64xf32>
    %106 = arith.maximumf %104, %105 : vector<16x64xf32>
    %c0_49 = arith.constant 0 : index
    %c0_50 = arith.constant 0 : index
    %c0_51 = arith.constant 0 : index
    %107 = vector.load %arg12[%c0_49, %c0_50, %c0_51] : memref<3x16x16xf32, #tpu.memory_space<vmem>>, vector<1x16x16xf32>
    %108 = vector.shape_cast %107 : vector<1x16x16xf32> to vector<16x16xf32>
    %c0_52 = arith.constant 0 : index
    %c0_53 = arith.constant 0 : index
    %c0_54 = arith.constant 0 : index
    %109 = vector.load %arg13[%c0_52, %c0_53, %c0_54] : memref<3x16x16xf32, #tpu.memory_space<vmem>>, vector<1x16x16xf32>
    %110 = vector.shape_cast %109 : vector<1x16x16xf32> to vector<16x16xf32>
    %c0_55 = arith.constant 0 : index
    %c0_56 = arith.constant 0 : index
    %c0_57 = arith.constant 0 : index
    %111 = vector.load %arg14[%c0_55, %c0_56, %c0_57] : memref<3x1x64xf32, #tpu.memory_space<vmem>>, vector<1x1x64xf32>
    %112 = vector.shape_cast %111 : vector<1x1x64xf32> to vector<1x64xf32>
    %c0_58 = arith.constant 0 : index
    %c0_59 = arith.constant 0 : index
    %c0_60 = arith.constant 0 : index
    %113 = vector.load %arg15[%c0_58, %c0_59, %c0_60] : memref<3x1x64xf32, #tpu.memory_space<vmem>>, vector<1x1x64xf32>
    %114 = vector.shape_cast %113 : vector<1x1x64xf32> to vector<1x64xf32>
    %c0_61 = arith.constant 0 : index
    %115 = memref.load %arg16[%c0_61] : memref<3xf32, #tpu.memory_space<smem>>
    %c0_62 = arith.constant 0 : index
    %c0_63 = arith.constant 0 : index
    %c0_64 = arith.constant 0 : index
    %116 = vector.load %arg17[%c0_62, %c0_63, %c0_64] : memref<3x192x32xf32, #tpu.memory_space<vmem>>, vector<1x192x32xf32>
    %117 = vector.shape_cast %116 : vector<1x192x32xf32> to vector<192x32xf32>
    %c0_65 = arith.constant 0 : index
    %c0_66 = arith.constant 0 : index
    %c0_67 = arith.constant 0 : index
    %118 = vector.load %arg18[%c0_65, %c0_66, %c0_67] : memref<3x1x32xf32, #tpu.memory_space<vmem>>, vector<1x1x32xf32>
    %119 = vector.shape_cast %118 : vector<1x1x32xf32> to vector<1x32xf32>
    %c0_68 = arith.constant 0 : index
    %c0_69 = arith.constant 0 : index
    %120 = memref.load %arg19[%c0_68, %c0_69] : memref<3x3xf32, #tpu.memory_space<smem>>
    %c0_70 = arith.constant 0 : index
    %c1_71 = arith.constant 1 : index
    %121 = memref.load %arg19[%c0_70, %c1_71] : memref<3x3xf32, #tpu.memory_space<smem>>
    %c0_72 = arith.constant 0 : index
    %c2_73 = arith.constant 2 : index
    %122 = memref.load %arg19[%c0_72, %c2_73] : memref<3x3xf32, #tpu.memory_space<smem>>
    %c0_74 = arith.constant 0 : index
    %123 = memref.load %arg20[%c0_74] : memref<3xf32, #tpu.memory_space<smem>>
    %124 = vector.broadcast %112 : vector<1x64xf32> to vector<16x64xf32>
    %125 = arith.mulf %106, %124 : vector<16x64xf32>
    %cst_75 = arith.constant dense<0.000000e+00> : vector<16xf32>
    %126 = vector.multi_reduction <add>, %125, %cst_75 [1] : vector<16x64xf32> to vector<16xf32>
    %127 = vector.shape_cast %126 : vector<16xf32> to vector<16x1xf32>
    %128 = vector.broadcast %127 : vector<16x1xf32> to vector<16x64xf32>
    %129 = vector.broadcast %114 : vector<1x64xf32> to vector<16x64xf32>
    %130 = arith.mulf %128, %129 : vector<16x64xf32>
    %131 = vector.broadcast %115 : f32 to vector<16x64xf32>
    %132 = arith.mulf %131, %106 : vector<16x64xf32>
    %cst_76 = arith.constant dense<0.000000e+00> : vector<16x16xf32>
    %133 = tpu.matmul %130, %132, %cst_76 {dimension_numbers = #tpu.dot_dimension_numbers<[1], [1], [0], [0], [0, 0, 1, 0], [], []>} : vector<16x64xf32>, vector<16x64xf32>, vector<16x16xf32> -> vector<16x16xf32>
    %134 = arith.addf %133, %110 : vector<16x16xf32>
    %cst_77 = arith.constant dense<0xFF800000> : vector<16xf32>
    %135 = vector.multi_reduction <maximumf>, %134, %cst_77 [0] : vector<16x16xf32> to vector<16xf32>
    %136 = vector.shape_cast %135 : vector<16xf32> to vector<1x16xf32>
    %137 = vector.broadcast %136 : vector<1x16xf32> to vector<16x16xf32>
    %138 = arith.subf %134, %137 : vector<16x16xf32>
    %139 = math.exp %138 : vector<16x16xf32>
    %cst_78 = arith.constant dense<0.000000e+00> : vector<16xf32>
    %140 = vector.multi_reduction <add>, %139, %cst_78 [0] : vector<16x16xf32> to vector<16xf32>
    %141 = vector.shape_cast %140 : vector<16xf32> to vector<1x16xf32>
    %142 = tpu.reciprocal %141 : vector<1x16xf32> -> vector<1x16xf32>
    %143 = vector.broadcast %142 : vector<1x16xf32> to vector<16x16xf32>
    %144 = arith.mulf %139, %143 : vector<16x16xf32>
    %cst_79 = arith.constant dense<0.000000e+00> : vector<16x16xf32>
    %145 = tpu.matmul %108, %144, %cst_79 {dimension_numbers = #tpu.dot_dimension_numbers<[1], [0], [0], [1], [0, 0, 1, 1], [], []>} : vector<16x16xf32>, vector<16x16xf32>, vector<16x16xf32> -> vector<16x16xf32>
    %cst_80 = arith.constant dense<0xFF800000> : vector<16xf32>
    %146 = vector.multi_reduction <maximumf>, %145, %cst_80 [0] : vector<16x16xf32> to vector<16xf32>
    %147 = vector.shape_cast %146 : vector<16xf32> to vector<1x16xf32>
    %148 = vector.broadcast %147 : vector<1x16xf32> to vector<16x16xf32>
    %149 = arith.subf %145, %148 : vector<16x16xf32>
    %150 = math.exp %149 : vector<16x16xf32>
    %cst_81 = arith.constant dense<0.000000e+00> : vector<16xf32>
    %151 = vector.multi_reduction <add>, %150, %cst_81 [0] : vector<16x16xf32> to vector<16xf32>
    %152 = vector.shape_cast %151 : vector<16xf32> to vector<1x16xf32>
    %153 = tpu.reciprocal %152 : vector<1x16xf32> -> vector<1x16xf32>
    %154 = vector.broadcast %153 : vector<1x16xf32> to vector<16x16xf32>
    %155 = arith.mulf %150, %154 : vector<16x16xf32>
    %156 = arith.mulf %0, %155 : vector<16x16xf32>
    %cst_82 = arith.constant dense<0.000000e+00> : vector<16xf32>
    %157 = vector.multi_reduction <add>, %156, %cst_82 [1] : vector<16x16xf32> to vector<16xf32>
    %158 = vector.shape_cast %157 : vector<16xf32> to vector<16x1xf32>
    %cst_83 = arith.constant 0.000000e+00 : f32
    %159 = vector.broadcast %cst_83 : f32 to vector<16x1xf32>
    %160 = arith.cmpf ogt, %158, %159 : vector<16x1xf32>
    %161 = math.rsqrt %158 : vector<16x1xf32>
    %cst_84 = arith.constant 0.000000e+00 : f32
    %162 = vector.broadcast %cst_84 : f32 to vector<16x1xf32>
    %163 = arith.select %160, %161, %162 : vector<16x1xi1>, vector<16x1xf32>
    %164 = vector.broadcast %163 : vector<16x1xf32> to vector<16x16xf32>
    %165 = arith.mulf %164, %156 : vector<16x16xf32>
    %166 = vector.broadcast %163 : vector<16x1xf32> to vector<16x64xf32>
    %167 = arith.mulf %166, %106 : vector<16x64xf32>
    %cst_85 = arith.constant dense<0.000000e+00> : vector<16x64xf32>
    %168 = tpu.matmul %165, %167, %cst_85 {dimension_numbers = #tpu.dot_dimension_numbers<[1], [0], [0], [1], [0, 0, 1, 1], [], []>} : vector<16x16xf32>, vector<16x64xf32>, vector<16x64xf32> -> vector<16x64xf32>
    %cst_86 = arith.constant 0.000000e+00 : f32
    %169 = vector.broadcast %cst_86 : f32 to vector<16x64xf32>
    %170 = arith.subf %169, %168 : vector<16x64xf32>
    %171 = vector.broadcast %163 : vector<16x1xf32> to vector<16x64xf32>
    %172 = arith.mulf %171, %170 : vector<16x64xf32>
    %cst_87 = arith.constant dense<0.000000e+00> : vector<16x64xf32>
    %173 = tpu.matmul %165, %172, %cst_87 {dimension_numbers = #tpu.dot_dimension_numbers<[1], [0], [0], [1], [0, 0, 1, 1], [], []>} : vector<16x16xf32>, vector<16x64xf32>, vector<16x64xf32> -> vector<16x64xf32>
    %cst_88 = arith.constant -2.000000e+00 : f32
    %174 = vector.broadcast %cst_88 : f32 to vector<16x64xf32>
    %175 = arith.mulf %174, %173 : vector<16x64xf32>
    %176 = arith.subf %175, %106 : vector<16x64xf32>
    %177 = tpu.concatenate %106, %170, %176 in 1 : vector<16x64xf32>, vector<16x64xf32>, vector<16x64xf32> -> vector<16x192xf32>
    %cst_89 = arith.constant dense<0.000000e+00> : vector<16x32xf32>
    %178 = tpu.matmul %177, %117, %cst_89 {dimension_numbers = #tpu.dot_dimension_numbers<[1], [0], [0], [1], [0, 0, 1, 1], [], []>} : vector<16x192xf32>, vector<192x32xf32>, vector<16x32xf32> -> vector<16x32xf32>
    %179 = vector.broadcast %119 : vector<1x32xf32> to vector<16x32xf32>
    %180 = arith.addf %178, %179 : vector<16x32xf32>
    %cst_90 = arith.constant 0.000000e+00 : f32
    %181 = vector.broadcast %cst_90 : f32 to vector<16x32xf32>
    %182 = arith.maximumf %180, %181 : vector<16x32xf32>
    %c1_i32_91 = arith.constant 1 : i32
    %183 = tpu.dynamic_rotate %182 by %c1_i32_91 dim 1 : vector<16x32xf32>, i32 -> vector<16x32xf32>
    %cst_92 = arith.constant 0.000000e+00 : f32
    %184 = vector.broadcast %cst_92 : f32 to vector<16x32xf32>
    %185 = arith.select %8, %184, %183 : vector<16x32xi1>, vector<16x32xf32>
    %c31_i32_93 = arith.constant 31 : i32
    %186 = tpu.dynamic_rotate %182 by %c31_i32_93 dim 1 : vector<16x32xf32>, i32 -> vector<16x32xf32>
    %cst_94 = arith.constant 0.000000e+00 : f32
    %187 = vector.broadcast %cst_94 : f32 to vector<16x32xf32>
    %188 = arith.select %10, %187, %186 : vector<16x32xi1>, vector<16x32xf32>
    %189 = vector.broadcast %120 : f32 to vector<16x32xf32>
    %190 = arith.mulf %189, %185 : vector<16x32xf32>
    %191 = vector.broadcast %121 : f32 to vector<16x32xf32>
    %192 = arith.mulf %191, %182 : vector<16x32xf32>
    %193 = arith.addf %190, %192 : vector<16x32xf32>
    %194 = vector.broadcast %122 : f32 to vector<16x32xf32>
    %195 = arith.mulf %194, %188 : vector<16x32xf32>
    %196 = arith.addf %193, %195 : vector<16x32xf32>
    %197 = vector.broadcast %123 : f32 to vector<16x32xf32>
    %198 = arith.addf %196, %197 : vector<16x32xf32>
    %cst_95 = arith.constant 0.000000e+00 : f32
    %199 = vector.broadcast %cst_95 : f32 to vector<16x32xf32>
    %200 = arith.maximumf %198, %199 : vector<16x32xf32>
    %c1_96 = arith.constant 1 : index
    %c0_97 = arith.constant 0 : index
    %c0_98 = arith.constant 0 : index
    %c0_99 = arith.constant 0 : index
    %201 = vector.load %arg2[%c1_96, %c0_97, %c0_98, %c0_99] : memref<3x1x16x8xf32, #tpu.memory_space<vmem>>, vector<1x1x16x8xf32>
    %202 = vector.shape_cast %201 : vector<1x1x16x8xf32> to vector<16x8xf32>
    %c1_100 = arith.constant 1 : index
    %c0_101 = arith.constant 0 : index
    %c0_102 = arith.constant 0 : index
    %203 = vector.load %arg3[%c1_100, %c0_101, %c0_102] : memref<3x16x16xf32, #tpu.memory_space<vmem>>, vector<1x16x16xf32>
    %204 = vector.shape_cast %203 : vector<1x16x16xf32> to vector<16x16xf32>
    %c1_103 = arith.constant 1 : index
    %c0_104 = arith.constant 0 : index
    %c0_105 = arith.constant 0 : index
    %205 = vector.load %arg4[%c1_103, %c0_104, %c0_105] : memref<3x16x16xf32, #tpu.memory_space<vmem>>, vector<1x16x16xf32>
    %206 = vector.shape_cast %205 : vector<1x16x16xf32> to vector<16x16xf32>
    %c1_106 = arith.constant 1 : index
    %c0_107 = arith.constant 0 : index
    %c0_108 = arith.constant 0 : index
    %207 = vector.load %arg5[%c1_106, %c0_107, %c0_108] : memref<3x1x8xf32, #tpu.memory_space<vmem>>, vector<1x1x8xf32>
    %208 = vector.shape_cast %207 : vector<1x1x8xf32> to vector<1x8xf32>
    %c1_109 = arith.constant 1 : index
    %c0_110 = arith.constant 0 : index
    %c0_111 = arith.constant 0 : index
    %209 = vector.load %arg6[%c1_109, %c0_110, %c0_111] : memref<3x1x8xf32, #tpu.memory_space<vmem>>, vector<1x1x8xf32>
    %210 = vector.shape_cast %209 : vector<1x1x8xf32> to vector<1x8xf32>
    %c1_112 = arith.constant 1 : index
    %211 = memref.load %arg7[%c1_112] : memref<3xf32, #tpu.memory_space<smem>>
    %c1_113 = arith.constant 1 : index
    %c0_114 = arith.constant 0 : index
    %c0_115 = arith.constant 0 : index
    %212 = vector.load %arg8[%c1_113, %c0_114, %c0_115] : memref<3x24x64xf32, #tpu.memory_space<vmem>>, vector<1x24x64xf32>
    %213 = vector.shape_cast %212 : vector<1x24x64xf32> to vector<24x64xf32>
    %c1_116 = arith.constant 1 : index
    %c0_117 = arith.constant 0 : index
    %c0_118 = arith.constant 0 : index
    %214 = vector.load %arg9[%c1_116, %c0_117, %c0_118] : memref<3x1x64xf32, #tpu.memory_space<vmem>>, vector<1x1x64xf32>
    %215 = vector.shape_cast %214 : vector<1x1x64xf32> to vector<1x64xf32>
    %c1_119 = arith.constant 1 : index
    %c0_120 = arith.constant 0 : index
    %216 = memref.load %arg10[%c1_119, %c0_120] : memref<3x3xf32, #tpu.memory_space<smem>>
    %c1_121 = arith.constant 1 : index
    %c1_122 = arith.constant 1 : index
    %217 = memref.load %arg10[%c1_121, %c1_122] : memref<3x3xf32, #tpu.memory_space<smem>>
    %c1_123 = arith.constant 1 : index
    %c2_124 = arith.constant 2 : index
    %218 = memref.load %arg10[%c1_123, %c2_124] : memref<3x3xf32, #tpu.memory_space<smem>>
    %c1_125 = arith.constant 1 : index
    %219 = memref.load %arg11[%c1_125] : memref<3xf32, #tpu.memory_space<smem>>
    %220 = vector.broadcast %208 : vector<1x8xf32> to vector<16x8xf32>
    %221 = arith.mulf %202, %220 : vector<16x8xf32>
    %cst_126 = arith.constant dense<0.000000e+00> : vector<16xf32>
    %222 = vector.multi_reduction <add>, %221, %cst_126 [1] : vector<16x8xf32> to vector<16xf32>
    %223 = vector.shape_cast %222 : vector<16xf32> to vector<16x1xf32>
    %224 = vector.broadcast %223 : vector<16x1xf32> to vector<16x8xf32>
    %225 = vector.broadcast %210 : vector<1x8xf32> to vector<16x8xf32>
    %226 = arith.mulf %224, %225 : vector<16x8xf32>
    %227 = vector.broadcast %211 : f32 to vector<16x8xf32>
    %228 = arith.mulf %227, %202 : vector<16x8xf32>
    %cst_127 = arith.constant dense<0.000000e+00> : vector<16x16xf32>
    %229 = tpu.matmul %226, %228, %cst_127 {dimension_numbers = #tpu.dot_dimension_numbers<[1], [1], [0], [0], [0, 0, 1, 0], [], []>} : vector<16x8xf32>, vector<16x8xf32>, vector<16x16xf32> -> vector<16x16xf32>
    %230 = arith.addf %229, %206 : vector<16x16xf32>
    %cst_128 = arith.constant dense<0xFF800000> : vector<16xf32>
    %231 = vector.multi_reduction <maximumf>, %230, %cst_128 [0] : vector<16x16xf32> to vector<16xf32>
    %232 = vector.shape_cast %231 : vector<16xf32> to vector<1x16xf32>
    %233 = vector.broadcast %232 : vector<1x16xf32> to vector<16x16xf32>
    %234 = arith.subf %230, %233 : vector<16x16xf32>
    %235 = math.exp %234 : vector<16x16xf32>
    %cst_129 = arith.constant dense<0.000000e+00> : vector<16xf32>
    %236 = vector.multi_reduction <add>, %235, %cst_129 [0] : vector<16x16xf32> to vector<16xf32>
    %237 = vector.shape_cast %236 : vector<16xf32> to vector<1x16xf32>
    %238 = tpu.reciprocal %237 : vector<1x16xf32> -> vector<1x16xf32>
    %239 = vector.broadcast %238 : vector<1x16xf32> to vector<16x16xf32>
    %240 = arith.mulf %235, %239 : vector<16x16xf32>
    %cst_130 = arith.constant dense<0.000000e+00> : vector<16x16xf32>
    %241 = tpu.matmul %204, %240, %cst_130 {dimension_numbers = #tpu.dot_dimension_numbers<[1], [0], [0], [1], [0, 0, 1, 1], [], []>} : vector<16x16xf32>, vector<16x16xf32>, vector<16x16xf32> -> vector<16x16xf32>
    %cst_131 = arith.constant dense<0xFF800000> : vector<16xf32>
    %242 = vector.multi_reduction <maximumf>, %241, %cst_131 [0] : vector<16x16xf32> to vector<16xf32>
    %243 = vector.shape_cast %242 : vector<16xf32> to vector<1x16xf32>
    %244 = vector.broadcast %243 : vector<1x16xf32> to vector<16x16xf32>
    %245 = arith.subf %241, %244 : vector<16x16xf32>
    %246 = math.exp %245 : vector<16x16xf32>
    %cst_132 = arith.constant dense<0.000000e+00> : vector<16xf32>
    %247 = vector.multi_reduction <add>, %246, %cst_132 [0] : vector<16x16xf32> to vector<16xf32>
    %248 = vector.shape_cast %247 : vector<16xf32> to vector<1x16xf32>
    %249 = tpu.reciprocal %248 : vector<1x16xf32> -> vector<1x16xf32>
    %250 = vector.broadcast %249 : vector<1x16xf32> to vector<16x16xf32>
    %251 = arith.mulf %246, %250 : vector<16x16xf32>
    %252 = arith.mulf %0, %251 : vector<16x16xf32>
    %cst_133 = arith.constant dense<0.000000e+00> : vector<16xf32>
    %253 = vector.multi_reduction <add>, %252, %cst_133 [1] : vector<16x16xf32> to vector<16xf32>
    %254 = vector.shape_cast %253 : vector<16xf32> to vector<16x1xf32>
    %cst_134 = arith.constant 0.000000e+00 : f32
    %255 = vector.broadcast %cst_134 : f32 to vector<16x1xf32>
    %256 = arith.cmpf ogt, %254, %255 : vector<16x1xf32>
    %257 = math.rsqrt %254 : vector<16x1xf32>
    %cst_135 = arith.constant 0.000000e+00 : f32
    %258 = vector.broadcast %cst_135 : f32 to vector<16x1xf32>
    %259 = arith.select %256, %257, %258 : vector<16x1xi1>, vector<16x1xf32>
    %260 = vector.broadcast %259 : vector<16x1xf32> to vector<16x16xf32>
    %261 = arith.mulf %260, %252 : vector<16x16xf32>
    %262 = vector.broadcast %259 : vector<16x1xf32> to vector<16x8xf32>
    %263 = arith.mulf %262, %202 : vector<16x8xf32>
    %cst_136 = arith.constant dense<0.000000e+00> : vector<16x8xf32>
    %264 = tpu.matmul %261, %263, %cst_136 {dimension_numbers = #tpu.dot_dimension_numbers<[1], [0], [0], [1], [0, 0, 1, 1], [], []>} : vector<16x16xf32>, vector<16x8xf32>, vector<16x8xf32> -> vector<16x8xf32>
    %cst_137 = arith.constant 0.000000e+00 : f32
    %265 = vector.broadcast %cst_137 : f32 to vector<16x8xf32>
    %266 = arith.subf %265, %264 : vector<16x8xf32>
    %267 = vector.broadcast %259 : vector<16x1xf32> to vector<16x8xf32>
    %268 = arith.mulf %267, %266 : vector<16x8xf32>
    %cst_138 = arith.constant dense<0.000000e+00> : vector<16x8xf32>
    %269 = tpu.matmul %261, %268, %cst_138 {dimension_numbers = #tpu.dot_dimension_numbers<[1], [0], [0], [1], [0, 0, 1, 1], [], []>} : vector<16x16xf32>, vector<16x8xf32>, vector<16x8xf32> -> vector<16x8xf32>
    %cst_139 = arith.constant -2.000000e+00 : f32
    %270 = vector.broadcast %cst_139 : f32 to vector<16x8xf32>
    %271 = arith.mulf %270, %269 : vector<16x8xf32>
    %272 = arith.subf %271, %202 : vector<16x8xf32>
    %273 = tpu.concatenate %202, %266, %272 in 1 : vector<16x8xf32>, vector<16x8xf32>, vector<16x8xf32> -> vector<16x24xf32>
    %cst_140 = arith.constant dense<0.000000e+00> : vector<16x64xf32>
    %274 = tpu.matmul %273, %213, %cst_140 {dimension_numbers = #tpu.dot_dimension_numbers<[1], [0], [0], [1], [0, 0, 1, 1], [], []>} : vector<16x24xf32>, vector<24x64xf32>, vector<16x64xf32> -> vector<16x64xf32>
    %275 = vector.broadcast %215 : vector<1x64xf32> to vector<16x64xf32>
    %276 = arith.addf %274, %275 : vector<16x64xf32>
    %cst_141 = arith.constant 0.000000e+00 : f32
    %277 = vector.broadcast %cst_141 : f32 to vector<16x64xf32>
    %278 = arith.maximumf %276, %277 : vector<16x64xf32>
    %c1_i32_142 = arith.constant 1 : i32
    %279 = tpu.dynamic_rotate %278 by %c1_i32_142 dim 1 : vector<16x64xf32>, i32 -> vector<16x64xf32>
    %cst_143 = arith.constant 0.000000e+00 : f32
    %280 = vector.broadcast %cst_143 : f32 to vector<16x64xf32>
    %281 = arith.select %3, %280, %279 : vector<16x64xi1>, vector<16x64xf32>
    %c63_i32_144 = arith.constant 63 : i32
    %282 = tpu.dynamic_rotate %278 by %c63_i32_144 dim 1 : vector<16x64xf32>, i32 -> vector<16x64xf32>
    %cst_145 = arith.constant 0.000000e+00 : f32
    %283 = vector.broadcast %cst_145 : f32 to vector<16x64xf32>
    %284 = arith.select %5, %283, %282 : vector<16x64xi1>, vector<16x64xf32>
    %285 = vector.broadcast %216 : f32 to vector<16x64xf32>
    %286 = arith.mulf %285, %281 : vector<16x64xf32>
    %287 = vector.broadcast %217 : f32 to vector<16x64xf32>
    %288 = arith.mulf %287, %278 : vector<16x64xf32>
    %289 = arith.addf %286, %288 : vector<16x64xf32>
    %290 = vector.broadcast %218 : f32 to vector<16x64xf32>
    %291 = arith.mulf %290, %284 : vector<16x64xf32>
    %292 = arith.addf %289, %291 : vector<16x64xf32>
    %293 = vector.broadcast %219 : f32 to vector<16x64xf32>
    %294 = arith.addf %292, %293 : vector<16x64xf32>
    %cst_146 = arith.constant 0.000000e+00 : f32
    %295 = vector.broadcast %cst_146 : f32 to vector<16x64xf32>
    %296 = arith.maximumf %294, %295 : vector<16x64xf32>
    %c1_147 = arith.constant 1 : index
    %c0_148 = arith.constant 0 : index
    %c0_149 = arith.constant 0 : index
    %297 = vector.load %arg12[%c1_147, %c0_148, %c0_149] : memref<3x16x16xf32, #tpu.memory_space<vmem>>, vector<1x16x16xf32>
    %298 = vector.shape_cast %297 : vector<1x16x16xf32> to vector<16x16xf32>
    %c1_150 = arith.constant 1 : index
    %c0_151 = arith.constant 0 : index
    %c0_152 = arith.constant 0 : index
    %299 = vector.load %arg13[%c1_150, %c0_151, %c0_152] : memref<3x16x16xf32, #tpu.memory_space<vmem>>, vector<1x16x16xf32>
    %300 = vector.shape_cast %299 : vector<1x16x16xf32> to vector<16x16xf32>
    %c1_153 = arith.constant 1 : index
    %c0_154 = arith.constant 0 : index
    %c0_155 = arith.constant 0 : index
    %301 = vector.load %arg14[%c1_153, %c0_154, %c0_155] : memref<3x1x64xf32, #tpu.memory_space<vmem>>, vector<1x1x64xf32>
    %302 = vector.shape_cast %301 : vector<1x1x64xf32> to vector<1x64xf32>
    %c1_156 = arith.constant 1 : index
    %c0_157 = arith.constant 0 : index
    %c0_158 = arith.constant 0 : index
    %303 = vector.load %arg15[%c1_156, %c0_157, %c0_158] : memref<3x1x64xf32, #tpu.memory_space<vmem>>, vector<1x1x64xf32>
    %304 = vector.shape_cast %303 : vector<1x1x64xf32> to vector<1x64xf32>
    %c1_159 = arith.constant 1 : index
    %305 = memref.load %arg16[%c1_159] : memref<3xf32, #tpu.memory_space<smem>>
    %c1_160 = arith.constant 1 : index
    %c0_161 = arith.constant 0 : index
    %c0_162 = arith.constant 0 : index
    %306 = vector.load %arg17[%c1_160, %c0_161, %c0_162] : memref<3x192x32xf32, #tpu.memory_space<vmem>>, vector<1x192x32xf32>
    %307 = vector.shape_cast %306 : vector<1x192x32xf32> to vector<192x32xf32>
    %c1_163 = arith.constant 1 : index
    %c0_164 = arith.constant 0 : index
    %c0_165 = arith.constant 0 : index
    %308 = vector.load %arg18[%c1_163, %c0_164, %c0_165] : memref<3x1x32xf32, #tpu.memory_space<vmem>>, vector<1x1x32xf32>
    %309 = vector.shape_cast %308 : vector<1x1x32xf32> to vector<1x32xf32>
    %c1_166 = arith.constant 1 : index
    %c0_167 = arith.constant 0 : index
    %310 = memref.load %arg19[%c1_166, %c0_167] : memref<3x3xf32, #tpu.memory_space<smem>>
    %c1_168 = arith.constant 1 : index
    %c1_169 = arith.constant 1 : index
    %311 = memref.load %arg19[%c1_168, %c1_169] : memref<3x3xf32, #tpu.memory_space<smem>>
    %c1_170 = arith.constant 1 : index
    %c2_171 = arith.constant 2 : index
    %312 = memref.load %arg19[%c1_170, %c2_171] : memref<3x3xf32, #tpu.memory_space<smem>>
    %c1_172 = arith.constant 1 : index
    %313 = memref.load %arg20[%c1_172] : memref<3xf32, #tpu.memory_space<smem>>
    %314 = vector.broadcast %302 : vector<1x64xf32> to vector<16x64xf32>
    %315 = arith.mulf %296, %314 : vector<16x64xf32>
    %cst_173 = arith.constant dense<0.000000e+00> : vector<16xf32>
    %316 = vector.multi_reduction <add>, %315, %cst_173 [1] : vector<16x64xf32> to vector<16xf32>
    %317 = vector.shape_cast %316 : vector<16xf32> to vector<16x1xf32>
    %318 = vector.broadcast %317 : vector<16x1xf32> to vector<16x64xf32>
    %319 = vector.broadcast %304 : vector<1x64xf32> to vector<16x64xf32>
    %320 = arith.mulf %318, %319 : vector<16x64xf32>
    %321 = vector.broadcast %305 : f32 to vector<16x64xf32>
    %322 = arith.mulf %321, %296 : vector<16x64xf32>
    %cst_174 = arith.constant dense<0.000000e+00> : vector<16x16xf32>
    %323 = tpu.matmul %320, %322, %cst_174 {dimension_numbers = #tpu.dot_dimension_numbers<[1], [1], [0], [0], [0, 0, 1, 0], [], []>} : vector<16x64xf32>, vector<16x64xf32>, vector<16x16xf32> -> vector<16x16xf32>
    %324 = arith.addf %323, %300 : vector<16x16xf32>
    %cst_175 = arith.constant dense<0xFF800000> : vector<16xf32>
    %325 = vector.multi_reduction <maximumf>, %324, %cst_175 [0] : vector<16x16xf32> to vector<16xf32>
    %326 = vector.shape_cast %325 : vector<16xf32> to vector<1x16xf32>
    %327 = vector.broadcast %326 : vector<1x16xf32> to vector<16x16xf32>
    %328 = arith.subf %324, %327 : vector<16x16xf32>
    %329 = math.exp %328 : vector<16x16xf32>
    %cst_176 = arith.constant dense<0.000000e+00> : vector<16xf32>
    %330 = vector.multi_reduction <add>, %329, %cst_176 [0] : vector<16x16xf32> to vector<16xf32>
    %331 = vector.shape_cast %330 : vector<16xf32> to vector<1x16xf32>
    %332 = tpu.reciprocal %331 : vector<1x16xf32> -> vector<1x16xf32>
    %333 = vector.broadcast %332 : vector<1x16xf32> to vector<16x16xf32>
    %334 = arith.mulf %329, %333 : vector<16x16xf32>
    %cst_177 = arith.constant dense<0.000000e+00> : vector<16x16xf32>
    %335 = tpu.matmul %298, %334, %cst_177 {dimension_numbers = #tpu.dot_dimension_numbers<[1], [0], [0], [1], [0, 0, 1, 1], [], []>} : vector<16x16xf32>, vector<16x16xf32>, vector<16x16xf32> -> vector<16x16xf32>
    %cst_178 = arith.constant dense<0xFF800000> : vector<16xf32>
    %336 = vector.multi_reduction <maximumf>, %335, %cst_178 [0] : vector<16x16xf32> to vector<16xf32>
    %337 = vector.shape_cast %336 : vector<16xf32> to vector<1x16xf32>
    %338 = vector.broadcast %337 : vector<1x16xf32> to vector<16x16xf32>
    %339 = arith.subf %335, %338 : vector<16x16xf32>
    %340 = math.exp %339 : vector<16x16xf32>
    %cst_179 = arith.constant dense<0.000000e+00> : vector<16xf32>
    %341 = vector.multi_reduction <add>, %340, %cst_179 [0] : vector<16x16xf32> to vector<16xf32>
    %342 = vector.shape_cast %341 : vector<16xf32> to vector<1x16xf32>
    %343 = tpu.reciprocal %342 : vector<1x16xf32> -> vector<1x16xf32>
    %344 = vector.broadcast %343 : vector<1x16xf32> to vector<16x16xf32>
    %345 = arith.mulf %340, %344 : vector<16x16xf32>
    %346 = arith.mulf %0, %345 : vector<16x16xf32>
    %cst_180 = arith.constant dense<0.000000e+00> : vector<16xf32>
    %347 = vector.multi_reduction <add>, %346, %cst_180 [1] : vector<16x16xf32> to vector<16xf32>
    %348 = vector.shape_cast %347 : vector<16xf32> to vector<16x1xf32>
    %cst_181 = arith.constant 0.000000e+00 : f32
    %349 = vector.broadcast %cst_181 : f32 to vector<16x1xf32>
    %350 = arith.cmpf ogt, %348, %349 : vector<16x1xf32>
    %351 = math.rsqrt %348 : vector<16x1xf32>
    %cst_182 = arith.constant 0.000000e+00 : f32
    %352 = vector.broadcast %cst_182 : f32 to vector<16x1xf32>
    %353 = arith.select %350, %351, %352 : vector<16x1xi1>, vector<16x1xf32>
    %354 = vector.broadcast %353 : vector<16x1xf32> to vector<16x16xf32>
    %355 = arith.mulf %354, %346 : vector<16x16xf32>
    %356 = vector.broadcast %353 : vector<16x1xf32> to vector<16x64xf32>
    %357 = arith.mulf %356, %296 : vector<16x64xf32>
    %cst_183 = arith.constant dense<0.000000e+00> : vector<16x64xf32>
    %358 = tpu.matmul %355, %357, %cst_183 {dimension_numbers = #tpu.dot_dimension_numbers<[1], [0], [0], [1], [0, 0, 1, 1], [], []>} : vector<16x16xf32>, vector<16x64xf32>, vector<16x64xf32> -> vector<16x64xf32>
    %cst_184 = arith.constant 0.000000e+00 : f32
    %359 = vector.broadcast %cst_184 : f32 to vector<16x64xf32>
    %360 = arith.subf %359, %358 : vector<16x64xf32>
    %361 = vector.broadcast %353 : vector<16x1xf32> to vector<16x64xf32>
    %362 = arith.mulf %361, %360 : vector<16x64xf32>
    %cst_185 = arith.constant dense<0.000000e+00> : vector<16x64xf32>
    %363 = tpu.matmul %355, %362, %cst_185 {dimension_numbers = #tpu.dot_dimension_numbers<[1], [0], [0], [1], [0, 0, 1, 1], [], []>} : vector<16x16xf32>, vector<16x64xf32>, vector<16x64xf32> -> vector<16x64xf32>
    %cst_186 = arith.constant -2.000000e+00 : f32
    %364 = vector.broadcast %cst_186 : f32 to vector<16x64xf32>
    %365 = arith.mulf %364, %363 : vector<16x64xf32>
    %366 = arith.subf %365, %296 : vector<16x64xf32>
    %367 = tpu.concatenate %296, %360, %366 in 1 : vector<16x64xf32>, vector<16x64xf32>, vector<16x64xf32> -> vector<16x192xf32>
    %cst_187 = arith.constant dense<0.000000e+00> : vector<16x32xf32>
    %368 = tpu.matmul %367, %307, %cst_187 {dimension_numbers = #tpu.dot_dimension_numbers<[1], [0], [0], [1], [0, 0, 1, 1], [], []>} : vector<16x192xf32>, vector<192x32xf32>, vector<16x32xf32> -> vector<16x32xf32>
    %369 = vector.broadcast %309 : vector<1x32xf32> to vector<16x32xf32>
    %370 = arith.addf %368, %369 : vector<16x32xf32>
    %cst_188 = arith.constant 0.000000e+00 : f32
    %371 = vector.broadcast %cst_188 : f32 to vector<16x32xf32>
    %372 = arith.maximumf %370, %371 : vector<16x32xf32>
    %c1_i32_189 = arith.constant 1 : i32
    %373 = tpu.dynamic_rotate %372 by %c1_i32_189 dim 1 : vector<16x32xf32>, i32 -> vector<16x32xf32>
    %cst_190 = arith.constant 0.000000e+00 : f32
    %374 = vector.broadcast %cst_190 : f32 to vector<16x32xf32>
    %375 = arith.select %8, %374, %373 : vector<16x32xi1>, vector<16x32xf32>
    %c31_i32_191 = arith.constant 31 : i32
    %376 = tpu.dynamic_rotate %372 by %c31_i32_191 dim 1 : vector<16x32xf32>, i32 -> vector<16x32xf32>
    %cst_192 = arith.constant 0.000000e+00 : f32
    %377 = vector.broadcast %cst_192 : f32 to vector<16x32xf32>
    %378 = arith.select %10, %377, %376 : vector<16x32xi1>, vector<16x32xf32>
    %379 = vector.broadcast %310 : f32 to vector<16x32xf32>
    %380 = arith.mulf %379, %375 : vector<16x32xf32>
    %381 = vector.broadcast %311 : f32 to vector<16x32xf32>
    %382 = arith.mulf %381, %372 : vector<16x32xf32>
    %383 = arith.addf %380, %382 : vector<16x32xf32>
    %384 = vector.broadcast %312 : f32 to vector<16x32xf32>
    %385 = arith.mulf %384, %378 : vector<16x32xf32>
    %386 = arith.addf %383, %385 : vector<16x32xf32>
    %387 = vector.broadcast %313 : f32 to vector<16x32xf32>
    %388 = arith.addf %386, %387 : vector<16x32xf32>
    %cst_193 = arith.constant 0.000000e+00 : f32
    %389 = vector.broadcast %cst_193 : f32 to vector<16x32xf32>
    %390 = arith.maximumf %388, %389 : vector<16x32xf32>
    %c2_194 = arith.constant 2 : index
    %c0_195 = arith.constant 0 : index
    %c0_196 = arith.constant 0 : index
    %c0_197 = arith.constant 0 : index
    %391 = vector.load %arg2[%c2_194, %c0_195, %c0_196, %c0_197] : memref<3x1x16x8xf32, #tpu.memory_space<vmem>>, vector<1x1x16x8xf32>
    %392 = vector.shape_cast %391 : vector<1x1x16x8xf32> to vector<16x8xf32>
    %c2_198 = arith.constant 2 : index
    %c0_199 = arith.constant 0 : index
    %c0_200 = arith.constant 0 : index
    %393 = vector.load %arg3[%c2_198, %c0_199, %c0_200] : memref<3x16x16xf32, #tpu.memory_space<vmem>>, vector<1x16x16xf32>
    %394 = vector.shape_cast %393 : vector<1x16x16xf32> to vector<16x16xf32>
    %c2_201 = arith.constant 2 : index
    %c0_202 = arith.constant 0 : index
    %c0_203 = arith.constant 0 : index
    %395 = vector.load %arg4[%c2_201, %c0_202, %c0_203] : memref<3x16x16xf32, #tpu.memory_space<vmem>>, vector<1x16x16xf32>
    %396 = vector.shape_cast %395 : vector<1x16x16xf32> to vector<16x16xf32>
    %c2_204 = arith.constant 2 : index
    %c0_205 = arith.constant 0 : index
    %c0_206 = arith.constant 0 : index
    %397 = vector.load %arg5[%c2_204, %c0_205, %c0_206] : memref<3x1x8xf32, #tpu.memory_space<vmem>>, vector<1x1x8xf32>
    %398 = vector.shape_cast %397 : vector<1x1x8xf32> to vector<1x8xf32>
    %c2_207 = arith.constant 2 : index
    %c0_208 = arith.constant 0 : index
    %c0_209 = arith.constant 0 : index
    %399 = vector.load %arg6[%c2_207, %c0_208, %c0_209] : memref<3x1x8xf32, #tpu.memory_space<vmem>>, vector<1x1x8xf32>
    %400 = vector.shape_cast %399 : vector<1x1x8xf32> to vector<1x8xf32>
    %c2_210 = arith.constant 2 : index
    %401 = memref.load %arg7[%c2_210] : memref<3xf32, #tpu.memory_space<smem>>
    %c2_211 = arith.constant 2 : index
    %c0_212 = arith.constant 0 : index
    %c0_213 = arith.constant 0 : index
    %402 = vector.load %arg8[%c2_211, %c0_212, %c0_213] : memref<3x24x64xf32, #tpu.memory_space<vmem>>, vector<1x24x64xf32>
    %403 = vector.shape_cast %402 : vector<1x24x64xf32> to vector<24x64xf32>
    %c2_214 = arith.constant 2 : index
    %c0_215 = arith.constant 0 : index
    %c0_216 = arith.constant 0 : index
    %404 = vector.load %arg9[%c2_214, %c0_215, %c0_216] : memref<3x1x64xf32, #tpu.memory_space<vmem>>, vector<1x1x64xf32>
    %405 = vector.shape_cast %404 : vector<1x1x64xf32> to vector<1x64xf32>
    %c2_217 = arith.constant 2 : index
    %c0_218 = arith.constant 0 : index
    %406 = memref.load %arg10[%c2_217, %c0_218] : memref<3x3xf32, #tpu.memory_space<smem>>
    %c2_219 = arith.constant 2 : index
    %c1_220 = arith.constant 1 : index
    %407 = memref.load %arg10[%c2_219, %c1_220] : memref<3x3xf32, #tpu.memory_space<smem>>
    %c2_221 = arith.constant 2 : index
    %c2_222 = arith.constant 2 : index
    %408 = memref.load %arg10[%c2_221, %c2_222] : memref<3x3xf32, #tpu.memory_space<smem>>
    %c2_223 = arith.constant 2 : index
    %409 = memref.load %arg11[%c2_223] : memref<3xf32, #tpu.memory_space<smem>>
    %410 = vector.broadcast %398 : vector<1x8xf32> to vector<16x8xf32>
    %411 = arith.mulf %392, %410 : vector<16x8xf32>
    %cst_224 = arith.constant dense<0.000000e+00> : vector<16xf32>
    %412 = vector.multi_reduction <add>, %411, %cst_224 [1] : vector<16x8xf32> to vector<16xf32>
    %413 = vector.shape_cast %412 : vector<16xf32> to vector<16x1xf32>
    %414 = vector.broadcast %413 : vector<16x1xf32> to vector<16x8xf32>
    %415 = vector.broadcast %400 : vector<1x8xf32> to vector<16x8xf32>
    %416 = arith.mulf %414, %415 : vector<16x8xf32>
    %417 = vector.broadcast %401 : f32 to vector<16x8xf32>
    %418 = arith.mulf %417, %392 : vector<16x8xf32>
    %cst_225 = arith.constant dense<0.000000e+00> : vector<16x16xf32>
    %419 = tpu.matmul %416, %418, %cst_225 {dimension_numbers = #tpu.dot_dimension_numbers<[1], [1], [0], [0], [0, 0, 1, 0], [], []>} : vector<16x8xf32>, vector<16x8xf32>, vector<16x16xf32> -> vector<16x16xf32>
    %420 = arith.addf %419, %396 : vector<16x16xf32>
    %cst_226 = arith.constant dense<0xFF800000> : vector<16xf32>
    %421 = vector.multi_reduction <maximumf>, %420, %cst_226 [0] : vector<16x16xf32> to vector<16xf32>
    %422 = vector.shape_cast %421 : vector<16xf32> to vector<1x16xf32>
    %423 = vector.broadcast %422 : vector<1x16xf32> to vector<16x16xf32>
    %424 = arith.subf %420, %423 : vector<16x16xf32>
    %425 = math.exp %424 : vector<16x16xf32>
    %cst_227 = arith.constant dense<0.000000e+00> : vector<16xf32>
    %426 = vector.multi_reduction <add>, %425, %cst_227 [0] : vector<16x16xf32> to vector<16xf32>
    %427 = vector.shape_cast %426 : vector<16xf32> to vector<1x16xf32>
    %428 = tpu.reciprocal %427 : vector<1x16xf32> -> vector<1x16xf32>
    %429 = vector.broadcast %428 : vector<1x16xf32> to vector<16x16xf32>
    %430 = arith.mulf %425, %429 : vector<16x16xf32>
    %cst_228 = arith.constant dense<0.000000e+00> : vector<16x16xf32>
    %431 = tpu.matmul %394, %430, %cst_228 {dimension_numbers = #tpu.dot_dimension_numbers<[1], [0], [0], [1], [0, 0, 1, 1], [], []>} : vector<16x16xf32>, vector<16x16xf32>, vector<16x16xf32> -> vector<16x16xf32>
    %cst_229 = arith.constant dense<0xFF800000> : vector<16xf32>
    %432 = vector.multi_reduction <maximumf>, %431, %cst_229 [0] : vector<16x16xf32> to vector<16xf32>
    %433 = vector.shape_cast %432 : vector<16xf32> to vector<1x16xf32>
    %434 = vector.broadcast %433 : vector<1x16xf32> to vector<16x16xf32>
    %435 = arith.subf %431, %434 : vector<16x16xf32>
    %436 = math.exp %435 : vector<16x16xf32>
    %cst_230 = arith.constant dense<0.000000e+00> : vector<16xf32>
    %437 = vector.multi_reduction <add>, %436, %cst_230 [0] : vector<16x16xf32> to vector<16xf32>
    %438 = vector.shape_cast %437 : vector<16xf32> to vector<1x16xf32>
    %439 = tpu.reciprocal %438 : vector<1x16xf32> -> vector<1x16xf32>
    %440 = vector.broadcast %439 : vector<1x16xf32> to vector<16x16xf32>
    %441 = arith.mulf %436, %440 : vector<16x16xf32>
    %442 = arith.mulf %0, %441 : vector<16x16xf32>
    %cst_231 = arith.constant dense<0.000000e+00> : vector<16xf32>
    %443 = vector.multi_reduction <add>, %442, %cst_231 [1] : vector<16x16xf32> to vector<16xf32>
    %444 = vector.shape_cast %443 : vector<16xf32> to vector<16x1xf32>
    %cst_232 = arith.constant 0.000000e+00 : f32
    %445 = vector.broadcast %cst_232 : f32 to vector<16x1xf32>
    %446 = arith.cmpf ogt, %444, %445 : vector<16x1xf32>
    %447 = math.rsqrt %444 : vector<16x1xf32>
    %cst_233 = arith.constant 0.000000e+00 : f32
    %448 = vector.broadcast %cst_233 : f32 to vector<16x1xf32>
    %449 = arith.select %446, %447, %448 : vector<16x1xi1>, vector<16x1xf32>
    %450 = vector.broadcast %449 : vector<16x1xf32> to vector<16x16xf32>
    %451 = arith.mulf %450, %442 : vector<16x16xf32>
    %452 = vector.broadcast %449 : vector<16x1xf32> to vector<16x8xf32>
    %453 = arith.mulf %452, %392 : vector<16x8xf32>
    %cst_234 = arith.constant dense<0.000000e+00> : vector<16x8xf32>
    %454 = tpu.matmul %451, %453, %cst_234 {dimension_numbers = #tpu.dot_dimension_numbers<[1], [0], [0], [1], [0, 0, 1, 1], [], []>} : vector<16x16xf32>, vector<16x8xf32>, vector<16x8xf32> -> vector<16x8xf32>
    %cst_235 = arith.constant 0.000000e+00 : f32
    %455 = vector.broadcast %cst_235 : f32 to vector<16x8xf32>
    %456 = arith.subf %455, %454 : vector<16x8xf32>
    %457 = vector.broadcast %449 : vector<16x1xf32> to vector<16x8xf32>
    %458 = arith.mulf %457, %456 : vector<16x8xf32>
    %cst_236 = arith.constant dense<0.000000e+00> : vector<16x8xf32>
    %459 = tpu.matmul %451, %458, %cst_236 {dimension_numbers = #tpu.dot_dimension_numbers<[1], [0], [0], [1], [0, 0, 1, 1], [], []>} : vector<16x16xf32>, vector<16x8xf32>, vector<16x8xf32> -> vector<16x8xf32>
    %cst_237 = arith.constant -2.000000e+00 : f32
    %460 = vector.broadcast %cst_237 : f32 to vector<16x8xf32>
    %461 = arith.mulf %460, %459 : vector<16x8xf32>
    %462 = arith.subf %461, %392 : vector<16x8xf32>
    %463 = tpu.concatenate %392, %456, %462 in 1 : vector<16x8xf32>, vector<16x8xf32>, vector<16x8xf32> -> vector<16x24xf32>
    %cst_238 = arith.constant dense<0.000000e+00> : vector<16x64xf32>
    %464 = tpu.matmul %463, %403, %cst_238 {dimension_numbers = #tpu.dot_dimension_numbers<[1], [0], [0], [1], [0, 0, 1, 1], [], []>} : vector<16x24xf32>, vector<24x64xf32>, vector<16x64xf32> -> vector<16x64xf32>
    %465 = vector.broadcast %405 : vector<1x64xf32> to vector<16x64xf32>
    %466 = arith.addf %464, %465 : vector<16x64xf32>
    %cst_239 = arith.constant 0.000000e+00 : f32
    %467 = vector.broadcast %cst_239 : f32 to vector<16x64xf32>
    %468 = arith.maximumf %466, %467 : vector<16x64xf32>
    %c1_i32_240 = arith.constant 1 : i32
    %469 = tpu.dynamic_rotate %468 by %c1_i32_240 dim 1 : vector<16x64xf32>, i32 -> vector<16x64xf32>
    %cst_241 = arith.constant 0.000000e+00 : f32
    %470 = vector.broadcast %cst_241 : f32 to vector<16x64xf32>
    %471 = arith.select %3, %470, %469 : vector<16x64xi1>, vector<16x64xf32>
    %c63_i32_242 = arith.constant 63 : i32
    %472 = tpu.dynamic_rotate %468 by %c63_i32_242 dim 1 : vector<16x64xf32>, i32 -> vector<16x64xf32>
    %cst_243 = arith.constant 0.000000e+00 : f32
    %473 = vector.broadcast %cst_243 : f32 to vector<16x64xf32>
    %474 = arith.select %5, %473, %472 : vector<16x64xi1>, vector<16x64xf32>
    %475 = vector.broadcast %406 : f32 to vector<16x64xf32>
    %476 = arith.mulf %475, %471 : vector<16x64xf32>
    %477 = vector.broadcast %407 : f32 to vector<16x64xf32>
    %478 = arith.mulf %477, %468 : vector<16x64xf32>
    %479 = arith.addf %476, %478 : vector<16x64xf32>
    %480 = vector.broadcast %408 : f32 to vector<16x64xf32>
    %481 = arith.mulf %480, %474 : vector<16x64xf32>
    %482 = arith.addf %479, %481 : vector<16x64xf32>
    %483 = vector.broadcast %409 : f32 to vector<16x64xf32>
    %484 = arith.addf %482, %483 : vector<16x64xf32>
    %cst_244 = arith.constant 0.000000e+00 : f32
    %485 = vector.broadcast %cst_244 : f32 to vector<16x64xf32>
    %486 = arith.maximumf %484, %485 : vector<16x64xf32>
    %c2_245 = arith.constant 2 : index
    %c0_246 = arith.constant 0 : index
    %c0_247 = arith.constant 0 : index
    %487 = vector.load %arg12[%c2_245, %c0_246, %c0_247] : memref<3x16x16xf32, #tpu.memory_space<vmem>>, vector<1x16x16xf32>
    %488 = vector.shape_cast %487 : vector<1x16x16xf32> to vector<16x16xf32>
    %c2_248 = arith.constant 2 : index
    %c0_249 = arith.constant 0 : index
    %c0_250 = arith.constant 0 : index
    %489 = vector.load %arg13[%c2_248, %c0_249, %c0_250] : memref<3x16x16xf32, #tpu.memory_space<vmem>>, vector<1x16x16xf32>
    %490 = vector.shape_cast %489 : vector<1x16x16xf32> to vector<16x16xf32>
    %c2_251 = arith.constant 2 : index
    %c0_252 = arith.constant 0 : index
    %c0_253 = arith.constant 0 : index
    %491 = vector.load %arg14[%c2_251, %c0_252, %c0_253] : memref<3x1x64xf32, #tpu.memory_space<vmem>>, vector<1x1x64xf32>
    %492 = vector.shape_cast %491 : vector<1x1x64xf32> to vector<1x64xf32>
    %c2_254 = arith.constant 2 : index
    %c0_255 = arith.constant 0 : index
    %c0_256 = arith.constant 0 : index
    %493 = vector.load %arg15[%c2_254, %c0_255, %c0_256] : memref<3x1x64xf32, #tpu.memory_space<vmem>>, vector<1x1x64xf32>
    %494 = vector.shape_cast %493 : vector<1x1x64xf32> to vector<1x64xf32>
    %c2_257 = arith.constant 2 : index
    %495 = memref.load %arg16[%c2_257] : memref<3xf32, #tpu.memory_space<smem>>
    %c2_258 = arith.constant 2 : index
    %c0_259 = arith.constant 0 : index
    %c0_260 = arith.constant 0 : index
    %496 = vector.load %arg17[%c2_258, %c0_259, %c0_260] : memref<3x192x32xf32, #tpu.memory_space<vmem>>, vector<1x192x32xf32>
    %497 = vector.shape_cast %496 : vector<1x192x32xf32> to vector<192x32xf32>
    %c2_261 = arith.constant 2 : index
    %c0_262 = arith.constant 0 : index
    %c0_263 = arith.constant 0 : index
    %498 = vector.load %arg18[%c2_261, %c0_262, %c0_263] : memref<3x1x32xf32, #tpu.memory_space<vmem>>, vector<1x1x32xf32>
    %499 = vector.shape_cast %498 : vector<1x1x32xf32> to vector<1x32xf32>
    %c2_264 = arith.constant 2 : index
    %c0_265 = arith.constant 0 : index
    %500 = memref.load %arg19[%c2_264, %c0_265] : memref<3x3xf32, #tpu.memory_space<smem>>
    %c2_266 = arith.constant 2 : index
    %c1_267 = arith.constant 1 : index
    %501 = memref.load %arg19[%c2_266, %c1_267] : memref<3x3xf32, #tpu.memory_space<smem>>
    %c2_268 = arith.constant 2 : index
    %c2_269 = arith.constant 2 : index
    %502 = memref.load %arg19[%c2_268, %c2_269] : memref<3x3xf32, #tpu.memory_space<smem>>
    %c2_270 = arith.constant 2 : index
    %503 = memref.load %arg20[%c2_270] : memref<3xf32, #tpu.memory_space<smem>>
    %504 = vector.broadcast %492 : vector<1x64xf32> to vector<16x64xf32>
    %505 = arith.mulf %486, %504 : vector<16x64xf32>
    %cst_271 = arith.constant dense<0.000000e+00> : vector<16xf32>
    %506 = vector.multi_reduction <add>, %505, %cst_271 [1] : vector<16x64xf32> to vector<16xf32>
    %507 = vector.shape_cast %506 : vector<16xf32> to vector<16x1xf32>
    %508 = vector.broadcast %507 : vector<16x1xf32> to vector<16x64xf32>
    %509 = vector.broadcast %494 : vector<1x64xf32> to vector<16x64xf32>
    %510 = arith.mulf %508, %509 : vector<16x64xf32>
    %511 = vector.broadcast %495 : f32 to vector<16x64xf32>
    %512 = arith.mulf %511, %486 : vector<16x64xf32>
    %cst_272 = arith.constant dense<0.000000e+00> : vector<16x16xf32>
    %513 = tpu.matmul %510, %512, %cst_272 {dimension_numbers = #tpu.dot_dimension_numbers<[1], [1], [0], [0], [0, 0, 1, 0], [], []>} : vector<16x64xf32>, vector<16x64xf32>, vector<16x16xf32> -> vector<16x16xf32>
    %514 = arith.addf %513, %490 : vector<16x16xf32>
    %cst_273 = arith.constant dense<0xFF800000> : vector<16xf32>
    %515 = vector.multi_reduction <maximumf>, %514, %cst_273 [0] : vector<16x16xf32> to vector<16xf32>
    %516 = vector.shape_cast %515 : vector<16xf32> to vector<1x16xf32>
    %517 = vector.broadcast %516 : vector<1x16xf32> to vector<16x16xf32>
    %518 = arith.subf %514, %517 : vector<16x16xf32>
    %519 = math.exp %518 : vector<16x16xf32>
    %cst_274 = arith.constant dense<0.000000e+00> : vector<16xf32>
    %520 = vector.multi_reduction <add>, %519, %cst_274 [0] : vector<16x16xf32> to vector<16xf32>
    %521 = vector.shape_cast %520 : vector<16xf32> to vector<1x16xf32>
    %522 = tpu.reciprocal %521 : vector<1x16xf32> -> vector<1x16xf32>
    %523 = vector.broadcast %522 : vector<1x16xf32> to vector<16x16xf32>
    %524 = arith.mulf %519, %523 : vector<16x16xf32>
    %cst_275 = arith.constant dense<0.000000e+00> : vector<16x16xf32>
    %525 = tpu.matmul %488, %524, %cst_275 {dimension_numbers = #tpu.dot_dimension_numbers<[1], [0], [0], [1], [0, 0, 1, 1], [], []>} : vector<16x16xf32>, vector<16x16xf32>, vector<16x16xf32> -> vector<16x16xf32>
    %cst_276 = arith.constant dense<0xFF800000> : vector<16xf32>
    %526 = vector.multi_reduction <maximumf>, %525, %cst_276 [0] : vector<16x16xf32> to vector<16xf32>
    %527 = vector.shape_cast %526 : vector<16xf32> to vector<1x16xf32>
    %528 = vector.broadcast %527 : vector<1x16xf32> to vector<16x16xf32>
    %529 = arith.subf %525, %528 : vector<16x16xf32>
    %530 = math.exp %529 : vector<16x16xf32>
    %cst_277 = arith.constant dense<0.000000e+00> : vector<16xf32>
    %531 = vector.multi_reduction <add>, %530, %cst_277 [0] : vector<16x16xf32> to vector<16xf32>
    %532 = vector.shape_cast %531 : vector<16xf32> to vector<1x16xf32>
    %533 = tpu.reciprocal %532 : vector<1x16xf32> -> vector<1x16xf32>
    %534 = vector.broadcast %533 : vector<1x16xf32> to vector<16x16xf32>
    %535 = arith.mulf %530, %534 : vector<16x16xf32>
    %536 = arith.mulf %0, %535 : vector<16x16xf32>
    %cst_278 = arith.constant dense<0.000000e+00> : vector<16xf32>
    %537 = vector.multi_reduction <add>, %536, %cst_278 [1] : vector<16x16xf32> to vector<16xf32>
    %538 = vector.shape_cast %537 : vector<16xf32> to vector<16x1xf32>
    %cst_279 = arith.constant 0.000000e+00 : f32
    %539 = vector.broadcast %cst_279 : f32 to vector<16x1xf32>
    %540 = arith.cmpf ogt, %538, %539 : vector<16x1xf32>
    %541 = math.rsqrt %538 : vector<16x1xf32>
    %cst_280 = arith.constant 0.000000e+00 : f32
    %542 = vector.broadcast %cst_280 : f32 to vector<16x1xf32>
    %543 = arith.select %540, %541, %542 : vector<16x1xi1>, vector<16x1xf32>
    %544 = vector.broadcast %543 : vector<16x1xf32> to vector<16x16xf32>
    %545 = arith.mulf %544, %536 : vector<16x16xf32>
    %546 = vector.broadcast %543 : vector<16x1xf32> to vector<16x64xf32>
    %547 = arith.mulf %546, %486 : vector<16x64xf32>
    %cst_281 = arith.constant dense<0.000000e+00> : vector<16x64xf32>
    %548 = tpu.matmul %545, %547, %cst_281 {dimension_numbers = #tpu.dot_dimension_numbers<[1], [0], [0], [1], [0, 0, 1, 1], [], []>} : vector<16x16xf32>, vector<16x64xf32>, vector<16x64xf32> -> vector<16x64xf32>
    %cst_282 = arith.constant 0.000000e+00 : f32
    %549 = vector.broadcast %cst_282 : f32 to vector<16x64xf32>
    %550 = arith.subf %549, %548 : vector<16x64xf32>
    %551 = vector.broadcast %543 : vector<16x1xf32> to vector<16x64xf32>
    %552 = arith.mulf %551, %550 : vector<16x64xf32>
    %cst_283 = arith.constant dense<0.000000e+00> : vector<16x64xf32>
    %553 = tpu.matmul %545, %552, %cst_283 {dimension_numbers = #tpu.dot_dimension_numbers<[1], [0], [0], [1], [0, 0, 1, 1], [], []>} : vector<16x16xf32>, vector<16x64xf32>, vector<16x64xf32> -> vector<16x64xf32>
    %cst_284 = arith.constant -2.000000e+00 : f32
    %554 = vector.broadcast %cst_284 : f32 to vector<16x64xf32>
    %555 = arith.mulf %554, %553 : vector<16x64xf32>
    %556 = arith.subf %555, %486 : vector<16x64xf32>
    %557 = tpu.concatenate %486, %550, %556 in 1 : vector<16x64xf32>, vector<16x64xf32>, vector<16x64xf32> -> vector<16x192xf32>
    %cst_285 = arith.constant dense<0.000000e+00> : vector<16x32xf32>
    %558 = tpu.matmul %557, %497, %cst_285 {dimension_numbers = #tpu.dot_dimension_numbers<[1], [0], [0], [1], [0, 0, 1, 1], [], []>} : vector<16x192xf32>, vector<192x32xf32>, vector<16x32xf32> -> vector<16x32xf32>
    %559 = vector.broadcast %499 : vector<1x32xf32> to vector<16x32xf32>
    %560 = arith.addf %558, %559 : vector<16x32xf32>
    %cst_286 = arith.constant 0.000000e+00 : f32
    %561 = vector.broadcast %cst_286 : f32 to vector<16x32xf32>
    %562 = arith.maximumf %560, %561 : vector<16x32xf32>
    %c1_i32_287 = arith.constant 1 : i32
    %563 = tpu.dynamic_rotate %562 by %c1_i32_287 dim 1 : vector<16x32xf32>, i32 -> vector<16x32xf32>
    %cst_288 = arith.constant 0.000000e+00 : f32
    %564 = vector.broadcast %cst_288 : f32 to vector<16x32xf32>
    %565 = arith.select %8, %564, %563 : vector<16x32xi1>, vector<16x32xf32>
    %c31_i32_289 = arith.constant 31 : i32
    %566 = tpu.dynamic_rotate %562 by %c31_i32_289 dim 1 : vector<16x32xf32>, i32 -> vector<16x32xf32>
    %cst_290 = arith.constant 0.000000e+00 : f32
    %567 = vector.broadcast %cst_290 : f32 to vector<16x32xf32>
    %568 = arith.select %10, %567, %566 : vector<16x32xi1>, vector<16x32xf32>
    %569 = vector.broadcast %500 : f32 to vector<16x32xf32>
    %570 = arith.mulf %569, %565 : vector<16x32xf32>
    %571 = vector.broadcast %501 : f32 to vector<16x32xf32>
    %572 = arith.mulf %571, %562 : vector<16x32xf32>
    %573 = arith.addf %570, %572 : vector<16x32xf32>
    %574 = vector.broadcast %502 : f32 to vector<16x32xf32>
    %575 = arith.mulf %574, %568 : vector<16x32xf32>
    %576 = arith.addf %573, %575 : vector<16x32xf32>
    %577 = vector.broadcast %503 : f32 to vector<16x32xf32>
    %578 = arith.addf %576, %577 : vector<16x32xf32>
    %cst_291 = arith.constant 0.000000e+00 : f32
    %579 = vector.broadcast %cst_291 : f32 to vector<16x32xf32>
    %580 = arith.maximumf %578, %579 : vector<16x32xf32>
    %581 = tpu.concatenate %200, %390, %580 in 0 : vector<16x32xf32>, vector<16x32xf32>, vector<16x32xf32> -> vector<48x32xf32>
    %c0_292 = arith.constant 0 : index
    %c0_293 = arith.constant 0 : index
    %582 = vector.load %arg21[%c0_292, %c0_293] : memref<32x4xf32, #tpu.memory_space<vmem>>, vector<32x4xf32>
    %cst_294 = arith.constant dense<0.000000e+00> : vector<48x4xf32>
    %583 = tpu.matmul %581, %582, %cst_294 {dimension_numbers = #tpu.dot_dimension_numbers<[1], [0], [0], [1], [0, 0, 1, 1], [], []>} : vector<48x32xf32>, vector<32x4xf32>, vector<48x4xf32> -> vector<48x4xf32>
    %c0_295 = arith.constant 0 : index
    %c0_296 = arith.constant 0 : index
    %584 = vector.load %arg22[%c0_295, %c0_296] : memref<1x4xf32, #tpu.memory_space<vmem>>, vector<1x4xf32>
    %585 = vector.broadcast %584 : vector<1x4xf32> to vector<48x4xf32>
    %586 = arith.addf %583, %585 : vector<48x4xf32>
    %cst_297 = arith.constant 0.000000e+00 : f32
    %587 = vector.broadcast %cst_297 : f32 to vector<48x4xf32>
    %588 = arith.maximumf %586, %587 : vector<48x4xf32>
    %c0_298 = arith.constant 0 : index
    %c0_299 = arith.constant 0 : index
    %c0_300 = arith.constant 0 : index
    %589 = vector.load %arg23[%c0_298, %c0_299, %c0_300] : memref<3x1x4xf32, #tpu.memory_space<vmem>>, vector<1x1x4xf32>
    %590 = vector.shape_cast %589 : vector<1x1x4xf32> to vector<1x4xf32>
    %591 = vector.extract_strided_slice %588 {offsets = [0, 0], sizes = [16, 4], strides = [1, 1]} : vector<48x4xf32> to vector<16x4xf32>
    %592 = vector.broadcast %590 : vector<1x4xf32> to vector<16x4xf32>
    %593 = arith.mulf %592, %591 : vector<16x4xf32>
    %c1_301 = arith.constant 1 : index
    %c0_302 = arith.constant 0 : index
    %c0_303 = arith.constant 0 : index
    %594 = vector.load %arg23[%c1_301, %c0_302, %c0_303] : memref<3x1x4xf32, #tpu.memory_space<vmem>>, vector<1x1x4xf32>
    %595 = vector.shape_cast %594 : vector<1x1x4xf32> to vector<1x4xf32>
    %596 = vector.extract_strided_slice %588 {offsets = [16, 0], sizes = [16, 4], strides = [1, 1]} : vector<48x4xf32> to vector<16x4xf32>
    %597 = vector.broadcast %595 : vector<1x4xf32> to vector<16x4xf32>
    %598 = arith.mulf %597, %596 : vector<16x4xf32>
    %599 = arith.addf %593, %598 : vector<16x4xf32>
    %c2_304 = arith.constant 2 : index
    %c0_305 = arith.constant 0 : index
    %c0_306 = arith.constant 0 : index
    %600 = vector.load %arg23[%c2_304, %c0_305, %c0_306] : memref<3x1x4xf32, #tpu.memory_space<vmem>>, vector<1x1x4xf32>
    %601 = vector.shape_cast %600 : vector<1x1x4xf32> to vector<1x4xf32>
    %602 = vector.extract_strided_slice %588 {offsets = [32, 0], sizes = [16, 4], strides = [1, 1]} : vector<48x4xf32> to vector<16x4xf32>
    %603 = vector.broadcast %601 : vector<1x4xf32> to vector<16x4xf32>
    %604 = arith.mulf %603, %602 : vector<16x4xf32>
    %605 = arith.addf %599, %604 : vector<16x4xf32>
    %c0_307 = arith.constant 0 : index
    %c0_308 = arith.constant 0 : index
    %c0_309 = arith.constant 0 : index
    %606 = vector.load %arg24[%c0_307, %c0_308, %c0_309] : memref<1x16x4xf32, #tpu.memory_space<vmem>>, vector<1x16x4xf32>
    %607 = vector.shape_cast %606 : vector<1x16x4xf32> to vector<16x4xf32>
    %608 = vector.shape_cast %605 : vector<16x4xf32> to vector<1x16x4xf32>
    tpu.vector_store %arg24[%c0_307, %c0_308, %c0_309], %608 {strides = array<i32>} : memref<1x16x4xf32, #tpu.memory_space<vmem>>, vector<1x16x4xf32>,
    return
  }
  func.func @transform_0(%arg0: i32) -> (i32, i32) {
    %c0_i32 = arith.constant 0 : i32
    %c0_i32_0 = arith.constant 0 : i32
    %c0_i32_1 = arith.constant 0 : i32
    return %c0_i32, %c0_i32_0 : i32, i32
  }
  func.func @transform_1(%arg0: i32) -> (i32, i32, i32, i32) {
    %c0_i32 = arith.constant 0 : i32
    %c0_i32_0 = arith.constant 0 : i32
    %c0_i32_1 = arith.constant 0 : i32
    %c0_i32_2 = arith.constant 0 : i32
    return %c0_i32, %arg0, %c0_i32_0, %c0_i32_1 : i32, i32, i32, i32
  }
  func.func @transform_2(%arg0: i32) -> (i32, i32, i32) {
    %c0_i32 = arith.constant 0 : i32
    %c0_i32_0 = arith.constant 0 : i32
    %c0_i32_1 = arith.constant 0 : i32
    %c0_i32_2 = arith.constant 0 : i32
    return %c0_i32, %c0_i32_0, %c0_i32_1 : i32, i32, i32
  }
  func.func @transform_3(%arg0: i32) -> (i32, i32, i32) {
    %c0_i32 = arith.constant 0 : i32
    %c0_i32_0 = arith.constant 0 : i32
    %c0_i32_1 = arith.constant 0 : i32
    %c0_i32_2 = arith.constant 0 : i32
    return %c0_i32, %c0_i32_0, %c0_i32_1 : i32, i32, i32
  }
  func.func @transform_4(%arg0: i32) -> (i32, i32, i32) {
    %c0_i32 = arith.constant 0 : i32
    %c0_i32_0 = arith.constant 0 : i32
    %c0_i32_1 = arith.constant 0 : i32
    %c0_i32_2 = arith.constant 0 : i32
    return %c0_i32, %c0_i32_0, %c0_i32_1 : i32, i32, i32
  }
  func.func @transform_5(%arg0: i32) -> (i32, i32, i32) {
    %c0_i32 = arith.constant 0 : i32
    %c0_i32_0 = arith.constant 0 : i32
    %c0_i32_1 = arith.constant 0 : i32
    %c0_i32_2 = arith.constant 0 : i32
    return %c0_i32, %c0_i32_0, %c0_i32_1 : i32, i32, i32
  }
  func.func @transform_6(%arg0: i32) -> i32 {
    %c0_i32 = arith.constant 0 : i32
    %c0_i32_0 = arith.constant 0 : i32
    return %c0_i32 : i32
  }
  func.func @transform_7(%arg0: i32) -> (i32, i32, i32) {
    %c0_i32 = arith.constant 0 : i32
    %c0_i32_0 = arith.constant 0 : i32
    %c0_i32_1 = arith.constant 0 : i32
    %c0_i32_2 = arith.constant 0 : i32
    return %c0_i32, %c0_i32_0, %c0_i32_1 : i32, i32, i32
  }
  func.func @transform_8(%arg0: i32) -> (i32, i32, i32) {
    %c0_i32 = arith.constant 0 : i32
    %c0_i32_0 = arith.constant 0 : i32
    %c0_i32_1 = arith.constant 0 : i32
    %c0_i32_2 = arith.constant 0 : i32
    return %c0_i32, %c0_i32_0, %c0_i32_1 : i32, i32, i32
  }
  func.func @transform_9(%arg0: i32) -> (i32, i32) {
    %c0_i32 = arith.constant 0 : i32
    %c0_i32_0 = arith.constant 0 : i32
    %c0_i32_1 = arith.constant 0 : i32
    return %c0_i32, %c0_i32_0 : i32, i32
  }
  func.func @transform_10(%arg0: i32) -> i32 {
    %c0_i32 = arith.constant 0 : i32
    %c0_i32_0 = arith.constant 0 : i32
    return %c0_i32 : i32
  }
  func.func @transform_11(%arg0: i32) -> (i32, i32, i32) {
    %c0_i32 = arith.constant 0 : i32
    %c0_i32_0 = arith.constant 0 : i32
    %c0_i32_1 = arith.constant 0 : i32
    %c0_i32_2 = arith.constant 0 : i32
    return %c0_i32, %c0_i32_0, %c0_i32_1 : i32, i32, i32
  }
  func.func @transform_12(%arg0: i32) -> (i32, i32, i32) {
    %c0_i32 = arith.constant 0 : i32
    %c0_i32_0 = arith.constant 0 : i32
    %c0_i32_1 = arith.constant 0 : i32
    %c0_i32_2 = arith.constant 0 : i32
    return %c0_i32, %c0_i32_0, %c0_i32_1 : i32, i32, i32
  }
  func.func @transform_13(%arg0: i32) -> (i32, i32, i32) {
    %c0_i32 = arith.constant 0 : i32
    %c0_i32_0 = arith.constant 0 : i32
    %c0_i32_1 = arith.constant 0 : i32
    %c0_i32_2 = arith.constant 0 : i32
    return %c0_i32, %c0_i32_0, %c0_i32_1 : i32, i32, i32
  }
  func.func @transform_14(%arg0: i32) -> (i32, i32, i32) {
    %c0_i32 = arith.constant 0 : i32
    %c0_i32_0 = arith.constant 0 : i32
    %c0_i32_1 = arith.constant 0 : i32
    %c0_i32_2 = arith.constant 0 : i32
    return %c0_i32, %c0_i32_0, %c0_i32_1 : i32, i32, i32
  }
  func.func @transform_15(%arg0: i32) -> i32 {
    %c0_i32 = arith.constant 0 : i32
    %c0_i32_0 = arith.constant 0 : i32
    return %c0_i32 : i32
  }
  func.func @transform_16(%arg0: i32) -> (i32, i32, i32) {
    %c0_i32 = arith.constant 0 : i32
    %c0_i32_0 = arith.constant 0 : i32
    %c0_i32_1 = arith.constant 0 : i32
    %c0_i32_2 = arith.constant 0 : i32
    return %c0_i32, %c0_i32_0, %c0_i32_1 : i32, i32, i32
  }
  func.func @transform_17(%arg0: i32) -> (i32, i32, i32) {
    %c0_i32 = arith.constant 0 : i32
    %c0_i32_0 = arith.constant 0 : i32
    %c0_i32_1 = arith.constant 0 : i32
    %c0_i32_2 = arith.constant 0 : i32
    return %c0_i32, %c0_i32_0, %c0_i32_1 : i32, i32, i32
  }
  func.func @transform_18(%arg0: i32) -> (i32, i32) {
    %c0_i32 = arith.constant 0 : i32
    %c0_i32_0 = arith.constant 0 : i32
    %c0_i32_1 = arith.constant 0 : i32
    return %c0_i32, %c0_i32_0 : i32, i32
  }
  func.func @transform_19(%arg0: i32) -> i32 {
    %c0_i32 = arith.constant 0 : i32
    %c0_i32_0 = arith.constant 0 : i32
    return %c0_i32 : i32
  }
  func.func @transform_20(%arg0: i32) -> (i32, i32) {
    %c0_i32 = arith.constant 0 : i32
    %c0_i32_0 = arith.constant 0 : i32
    %c0_i32_1 = arith.constant 0 : i32
    return %c0_i32, %c0_i32_0 : i32, i32
  }
  func.func @transform_21(%arg0: i32) -> (i32, i32) {
    %c0_i32 = arith.constant 0 : i32
    %c0_i32_0 = arith.constant 0 : i32
    %c0_i32_1 = arith.constant 0 : i32
    return %c0_i32, %c0_i32_0 : i32, i32
  }
  func.func @transform_22(%arg0: i32) -> (i32, i32, i32) {
    %c0_i32 = arith.constant 0 : i32
    %c0_i32_0 = arith.constant 0 : i32
    %c0_i32_1 = arith.constant 0 : i32
    %c0_i32_2 = arith.constant 0 : i32
    return %c0_i32, %c0_i32_0, %c0_i32_1 : i32, i32, i32
  }
  func.func @transform_23(%arg0: i32) -> (i32, i32, i32) {
    %c0_i32 = arith.constant 0 : i32
    %c0_i32_0 = arith.constant 0 : i32
    %c0_i32_1 = arith.constant 0 : i32
    return %arg0, %c0_i32, %c0_i32_0 : i32, i32, i32
  }
}

</mosaic_0001>

<llo_original>
// kernel: astgcn_notatt.1
$region0: #{astgcn_notatt.1}
  #allocation0 [shape = 'u32[]', space=smem, size = 0x4, offset = 0x4, fixed_abs, tag = 'smem constant byte address 0x4 - core index']
  #allocation1 [shape = 'u32[144,128]{1,0:T(1,128)}', space=vmem, size = 0x12000, scoped, tag = 'internal scratch']
  %s0 = inlined_call_operand.vmem [shape: f32[16,16], index: 0, kind: input, shape index: {}]
  %s1 = inlined_call_operand.vmem [shape: f32[3,2,16,8], index: 1, kind: input, shape index: {}]
  %s2 = inlined_call_operand.vmem [shape: f32[3,16,16], index: 2, kind: input, shape index: {}]
  %s3 = inlined_call_operand.vmem [shape: f32[3,16,16], index: 3, kind: input, shape index: {}]
  %s4 = inlined_call_operand.vmem [shape: f32[3,1,8], index: 4, kind: input, shape index: {}]
  %s5 = inlined_call_operand.vmem [shape: f32[3,1,8], index: 5, kind: input, shape index: {}]
  %s6 = inlined_call_operand.vmem [shape: f32[3], index: 6, kind: input, shape index: {}]
  %s7 = inlined_call_operand.vmem [shape: f32[3,24,64], index: 7, kind: input, shape index: {}]
  %s8 = inlined_call_operand.vmem [shape: f32[3,1,64], index: 8, kind: input, shape index: {}]
  %s9 = inlined_call_operand.vmem [shape: f32[3,3], index: 9, kind: input, shape index: {}]
  %s10 = inlined_call_operand.vmem [shape: f32[3], index: 10, kind: input, shape index: {}]
  %s11 = inlined_call_operand.vmem [shape: f32[3,16,16], index: 11, kind: input, shape index: {}]
  %s12 = inlined_call_operand.vmem [shape: f32[3,16,16], index: 12, kind: input, shape index: {}]
  %s13 = inlined_call_operand.vmem [shape: f32[3,1,64], index: 13, kind: input, shape index: {}]
  %s14 = inlined_call_operand.vmem [shape: f32[3,1,64], index: 14, kind: input, shape index: {}]
  %s15 = inlined_call_operand.vmem [shape: f32[3], index: 15, kind: input, shape index: {}]
  %s16 = inlined_call_operand.vmem [shape: f32[3,192,32], index: 16, kind: input, shape index: {}]
  %s17 = inlined_call_operand.vmem [shape: f32[3,1,32], index: 17, kind: input, shape index: {}]
  %s18 = inlined_call_operand.vmem [shape: f32[3,3], index: 18, kind: input, shape index: {}]
  %s19 = inlined_call_operand.vmem [shape: f32[3], index: 19, kind: input, shape index: {}]
  %s20 = inlined_call_operand.vmem [shape: f32[32,4], index: 20, kind: input, shape index: {}]
  %s21 = inlined_call_operand.vmem [shape: f32[1,4], index: 21, kind: input, shape index: {}]
  %s22 = inlined_call_operand.vmem [shape: f32[3,1,4], index: 22, kind: input, shape index: {}]
  %s23 = inlined_call_operand.vmem [shape: f32[2,16,4], index: 23, kind: output, shape index: {}]
  %s24 = sld [smem:[#allocation0]]
  $region187: #{astgcn_notatt.1} parent=0
    _
  %s26 = ssub.s32 1, %s24
  %s27 = scalar_select 0, %s26, %s24
  $region1: #{astgcn_notatt.1} parent=0
    #allocation2 [shape = 'u8[49152]{0}', space=vmem, size = 0xc000, scoped, tag = 'input window, operand 1']
    #allocation3 [shape = 'u8[512]{0}', space=smem, size = 0x200, scoped, tag = 'input window, operand 6, single buffered']
    #allocation4 [shape = 's32[2]{0}', space=sflag, size = 0x8, scoped, tag = 'scoped memory for astgcn_notatt.1']
    #allocation5 [shape = 'u8[2048]{0}', space=smem, size = 0x800, scoped, tag = 'input window, operand 9, single buffered']
    #allocation6 [shape = 's32[1]{0}', space=sflag, size = 0x4, scoped, tag = 'scoped memory for astgcn_notatt.1']
    #allocation7 [shape = 'u8[512]{0}', space=smem, size = 0x200, scoped, tag = 'input window, operand 10, single buffered']
    #allocation8 [shape = 'u8[512]{0}', space=smem, size = 0x200, scoped, tag = 'input window, operand 15, single buffered']
    #allocation9 [shape = 's32[1]{0}', space=sflag, size = 0x4, scoped, tag = 'scoped memory for astgcn_notatt.1']
    #allocation10 [shape = 'u8[2048]{0}', space=smem, size = 0x800, scoped, tag = 'input window, operand 18, single buffered']
    #allocation11 [shape = 'u8[512]{0}', space=smem, size = 0x200, scoped, tag = 'input window, operand 19, single buffered']
    #allocation12 [shape = 's32[1]{0}', space=sflag, size = 0x4, scoped, tag = 'scoped memory for astgcn_notatt.1']
    %28 = vsyncpa [#allocation4], 0
    %29 = vsyncpa [#allocation6], 0
    %30 = vsyncpa [#allocation9], 0
    %31 = vsyncpa [#allocation12], 0
    loop: start=0, step=1, limit=4
    $region2: #{astgcn_notatt.1} parent=1 // loop_pre_header
      _
    $region3: #{astgcn_notatt.1} parent=1 // loop_header
      %s33 = sphi 0, %s37
      %p34 = scmp.ge.s32.totalorder %s33, 4
      %s41 = sphi 0, %s41
      %s43 = sphi 0, %s41
      %s44 = sphi 0, %s43
      %s58 = sphi 0, %s44
      %s64 = sphi 0, %s66
      %s67 = sphi 0, %s64
      %s68 = sphi 0, %s67
      %s84 = sphi 0, %s68
      %s88 = sphi 0, %s88
      %s90 = sphi 0, %s88
      %s91 = sphi 0, %s90
      %s105 = sphi 0, %s91
      %s109 = sphi 0, %s109
      %s111 = sphi 0, %s109
      %s112 = sphi 0, %s111
      %s126 = sphi 0, %s112
      %s130 = sphi 0, %s130
      %s132 = sphi 0, %s130
      %s133 = sphi 0, %s132
      %s147 = sphi 0, %s133
      %s151 = sphi 0, %s151
      %s153 = sphi 0, %s151
      %s154 = sphi 0, %s153
      %s168 = sphi 0, %s154
      %s172 = sphi 0, %s172
      %s174 = sphi 0, %s172
      %s175 = sphi 0, %s174
      %s189 = sphi 0, %s175
      %s193 = sphi 0, %s193
      %s195 = sphi 0, %s193
      %s196 = sphi 0, %s195
      %s210 = sphi 0, %s196
      %s214 = sphi 0, %s214
      %s216 = sphi 0, %s214
      %s217 = sphi 0, %s216
      %s231 = sphi 0, %s217
      %s235 = sphi 0, %s235
      %s237 = sphi 0, %s235
      %s238 = sphi 0, %s237
      %s252 = sphi 0, %s238
      %s256 = sphi 0, %s256
      %s258 = sphi 0, %s256
      %s259 = sphi 0, %s258
      %s273 = sphi 0, %s259
      %s277 = sphi 0, %s277
      %s279 = sphi 0, %s277
      %s280 = sphi 0, %s279
      %s294 = sphi 0, %s280
      %s298 = sphi 0, %s298
      %s300 = sphi 0, %s298
      %s301 = sphi 0, %s300
      %s315 = sphi 0, %s301
      %s319 = sphi 0, %s319
      %s321 = sphi 0, %s319
      %s322 = sphi 0, %s321
      %s336 = sphi 0, %s322
      %s340 = sphi 0, %s340
      %s342 = sphi 0, %s340
      %s343 = sphi 0, %s342
      %s357 = sphi 0, %s343
      %s361 = sphi 0, %s361
      %s363 = sphi 0, %s361
      %s364 = sphi 0, %s363
      %s378 = sphi 0, %s364
      %s382 = sphi 0, %s382
      %s384 = sphi 0, %s382
      %s385 = sphi 0, %s384
      %s399 = sphi 0, %s385
      %s403 = sphi 0, %s403
      %s405 = sphi 0, %s403
      %s406 = sphi 0, %s405
      %s420 = sphi 0, %s406
      %s424 = sphi 0, %s424
      %s426 = sphi 0, %s424
      %s427 = sphi 0, %s426
      %s441 = sphi 0, %s427
      %s445 = sphi 0, %s445
      %s447 = sphi 0, %s445
      %s448 = sphi 0, %s447
      %s462 = sphi 0, %s448
      %s466 = sphi 0, %s466
      %s468 = sphi 0, %s466
      %s469 = sphi 0, %s468
      %s483 = sphi 0, %s469
      %s487 = sphi 0, %s487
      %s489 = sphi 0, %s487
      %s490 = sphi 0, %s489
      %s504 = sphi 0, %s490
      %s508 = sphi 0, %s508
      %s510 = sphi 0, %s508
      %s511 = sphi 0, %s510
      %s525 = sphi 0, %s511
      %s531 = sphi 0, %s533
      %s534 = sphi 0, %s531
      %s535 = sphi 0, %s534
      %s551 = sphi 0, %s535
    $region4: #{astgcn_notatt.1} parent=1 // loop_header_branch
      %36 = sbr.rel (%p34) target = $region8
    $region5: #{astgcn_notatt.1} parent=1 // loop_body
      %s38 = ssub.s32 %s33, 1
      %s39 = ssub.s32 %s33, 2
      %s40 = sadd.s32 %s33, 1
      %s42 = sadd.s32 %s41, 1
      %p45 = scmp.eq.s32.totalorder %s33, 1
      %p46 = scmp.ne.s32.totalorder %s41, %s43
      %p47 = scmp.eq.s32.totalorder %s33, 0
      %p48 = por %p46, %p47
      %p49 = scmp.ne.s32.totalorder %s41, %s43
      %p50 = scmp.eq.s32.totalorder %s38, 1
      %p51 = por %p49, %p50
      %p52 = scmp.ne.s32.totalorder %s43, %s44
      %p53 = scmp.eq.s32.totalorder %s38, 0
      %p54 = por %p52, %p53
      %p55 = scmp.ne.s32.totalorder %s43, %s44
      %p56 = scmp.eq.s32.totalorder %s39, 1
      %p57 = por %p55, %p56
      %p59 = scmp.ne.s32.totalorder %s44, %s58
      %p60 = scmp.eq.s32.totalorder %s39, 0
      %p61 = por %p59, %p60
      %s62 = ssub.s32 %s33, %s40
      %p63 = scmp.eq.s32.totalorder %s62, 0
      %s65 = sadd.s32 %s64, 1
      %s66 = scalar_select %p63, %s64, %s65
      %p69 = pneg %p63
      %p70 = scmp.eq.s32.totalorder %s33, 1
      %p71 = por %p69, %p70
      %p72 = scmp.ne.s32.totalorder %s64, %s67
      %p73 = scmp.eq.s32.totalorder %s33, 0
      %p74 = por %p72, %p73
      %p75 = scmp.ne.s32.totalorder %s64, %s67
      %p76 = scmp.eq.s32.totalorder %s38, 1
      %p77 = por %p75, %p76
      %p78 = scmp.ne.s32.totalorder %s67, %s68
      %p79 = scmp.eq.s32.totalorder %s38, 0
      %p80 = por %p78, %p79
      %p81 = scmp.ne.s32.totalorder %s67, %s68
      %p82 = scmp.eq.s32.totalorder %s39, 1
      %p83 = por %p81, %p82
      %p85 = scmp.ne.s32.totalorder %s68, %s84
      %p86 = scmp.eq.s32.totalorder %s39, 0
      %p87 = por %p85, %p86
      %s89 = sadd.s32 %s88, 1
      %p92 = scmp.eq.s32.totalorder %s33, 1
      %p93 = scmp.ne.s32.totalorder %s88, %s90
      %p94 = scmp.eq.s32.totalorder %s33, 0
      %p95 = por %p93, %p94
      %p96 = scmp.ne.s32.totalorder %s88, %s90
      %p97 = scmp.eq.s32.totalorder %s38, 1
      %p98 = por %p96, %p97
      %p99 = scmp.ne.s32.totalorder %s90, %s91
      %p100 = scmp.eq.s32.totalorder %s38, 0
      %p101 = por %p99, %p100
      %p102 = scmp.ne.s32.totalorder %s90, %s91
      %p103 = scmp.eq.s32.totalorder %s39, 1
      %p104 = por %p102, %p103
      %p106 = scmp.ne.s32.totalorder %s91, %s105
      %p107 = scmp.eq.s32.totalorder %s39, 0
      %p108 = por %p106, %p107
      %s110 = sadd.s32 %s109, 1
      %p113 = scmp.eq.s32.totalorder %s33, 1
      %p114 = scmp.ne.s32.totalorder %s109, %s111
      %p115 = scmp.eq.s32.totalorder %s33, 0
      %p116 = por %p114, %p115
      %p117 = scmp.ne.s32.totalorder %s109, %s111
      %p118 = scmp.eq.s32.totalorder %s38, 1
      %p119 = por %p117, %p118
      %p120 = scmp.ne.s32.totalorder %s111, %s112
      %p121 = scmp.eq.s32.totalorder %s38, 0
      %p122 = por %p120, %p121
      %p123 = scmp.ne.s32.totalorder %s111, %s112
      %p124 = scmp.eq.s32.totalorder %s39, 1
      %p125 = por %p123, %p124
      %p127 = scmp.ne.s32.totalorder %s112, %s126
      %p128 = scmp.eq.s32.totalorder %s39, 0
      %p129 = por %p127, %p128
      %s131 = sadd.s32 %s130, 1
      %p134 = scmp.eq.s32.totalorder %s33, 1
      %p135 = scmp.ne.s32.totalorder %s130, %s132
      %p136 = scmp.eq.s32.totalorder %s33, 0
      %p137 = por %p135, %p136
      %p138 = scmp.ne.s32.totalorder %s130, %s132
      %p139 = scmp.eq.s32.totalorder %s38, 1
      %p140 = por %p138, %p139
      %p141 = scmp.ne.s32.totalorder %s132, %s133
      %p142 = scmp.eq.s32.totalorder %s38, 0
      %p143 = por %p141, %p142
      %p144 = scmp.ne.s32.totalorder %s132, %s133
      %p145 = scmp.eq.s32.totalorder %s39, 1
      %p146 = por %p144, %p145
      %p148 = scmp.ne.s32.totalorder %s133, %s147
      %p149 = scmp.eq.s32.totalorder %s39, 0
      %p150 = por %p148, %p149
      %s152 = sadd.s32 %s151, 1
      %p155 = scmp.eq.s32.totalorder %s33, 1
      %p156 = scmp.ne.s32.totalorder %s151, %s153
      %p157 = scmp.eq.s32.totalorder %s33, 0
      %p158 = por %p156, %p157
      %p159 = scmp.ne.s32.totalorder %s151, %s153
      %p160 = scmp.eq.s32.totalorder %s38, 1
      %p161 = por %p159, %p160
      %p162 = scmp.ne.s32.totalorder %s153, %s154
      %p163 = scmp.eq.s32.totalorder %s38, 0
      %p164 = por %p162, %p163
      %p165 = scmp.ne.s32.totalorder %s153, %s154
      %p166 = scmp.eq.s32.totalorder %s39, 1
      %p167 = por %p165, %p166
      %p169 = scmp.ne.s32.totalorder %s154, %s168
      %p170 = scmp.eq.s32.totalorder %s39, 0
      %p171 = por %p169, %p170
      %s173 = sadd.s32 %s172, 1
      %p176 = scmp.eq.s32.totalorder %s33, 1
      %p177 = scmp.ne.s32.totalorder %s172, %s174
      %p178 = scmp.eq.s32.totalorder %s33, 0
      %p179 = por %p177, %p178
      %p180 = scmp.ne.s32.totalorder %s172, %s174
      %p181 = scmp.eq.s32.totalorder %s38, 1
      %p182 = por %p180, %p181
      %p183 = scmp.ne.s32.totalorder %s174, %s175
      %p184 = scmp.eq.s32.totalorder %s38, 0
      %p185 = por %p183, %p184
      %p186 = scmp.ne.s32.totalorder %s174, %s175
      %p187 = scmp.eq.s32.totalorder %s39, 1
      %p188 = por %p186, %p187
      %p190 = scmp.ne.s32.totalorder %s175, %s189
      %p191 = scmp.eq.s32.totalorder %s39, 0
      %p192 = por %p190, %p191
      %s194 = sadd.s32 %s193, 1
      %p197 = scmp.eq.s32.totalorder %s33, 1
      %p198 = scmp.ne.s32.totalorder %s193, %s195
      %p199 = scmp.eq.s32.totalorder %s33, 0
      %p200 = por %p198, %p199
      %p201 = scmp.ne.s32.totalorder %s193, %s195
      %p202 = scmp.eq.s32.totalorder %s38, 1
      %p203 = por %p201, %p202
      %p204 = scmp.ne.s32.totalorder %s195, %s196
      %p205 = scmp.eq.s32.totalorder %s38, 0
      %p206 = por %p204, %p205
      %p207 = scmp.ne.s32.totalorder %s195, %s196
      %p208 = scmp.eq.s32.totalorder %s39, 1
      %p209 = por %p207, %p208
      %p211 = scmp.ne.s32.totalorder %s196, %s210
      %p212 = scmp.eq.s32.totalorder %s39, 0
      %p213 = por %p211, %p212
      %s215 = sadd.s32 %s214, 1
      %p218 = scmp.eq.s32.totalorder %s33, 1
      %p219 = scmp.ne.s32.totalorder %s214, %s216
      %p220 = scmp.eq.s32.totalorder %s33, 0
      %p221 = por %p219, %p220
      %p222 = scmp.ne.s32.totalorder %s214, %s216
      %p223 = scmp.eq.s32.totalorder %s38, 1
      %p224 = por %p222, %p223
      %p225 = scmp.ne.s32.totalorder %s216, %s217
      %p226 = scmp.eq.s32.totalorder %s38, 0
      %p227 = por %p225, %p226
      %p228 = scmp.ne.s32.totalorder %s216, %s217
      %p229 = scmp.eq.s32.totalorder %s39, 1
      %p230 = por %p228, %p229
      %p232 = scmp.ne.s32.totalorder %s217, %s231
      %p233 = scmp.eq.s32.totalorder %s39, 0
      %p234 = por %p232, %p233
      %s236 = sadd.s32 %s235, 1
      %p239 = scmp.eq.s32.totalorder %s33, 1
      %p240 = scmp.ne.s32.totalorder %s235, %s237
      %p241 = scmp.eq.s32.totalorder %s33, 0
      %p242 = por %p240, %p241
      %p243 = scmp.ne.s32.totalorder %s235, %s237
      %p244 = scmp.eq.s32.totalorder %s38, 1
      %p245 = por %p243, %p244
      %p246 = scmp.ne.s32.totalorder %s237, %s238
      %p247 = scmp.eq.s32.totalorder %s38, 0
      %p248 = por %p246, %p247
      %p249 = scmp.ne.s32.totalorder %s237, %s238
      %p250 = scmp.eq.s32.totalorder %s39, 1
      %p251 = por %p249, %p250
      %p253 = scmp.ne.s32.totalorder %s238, %s252
      %p254 = scmp.eq.s32.totalorder %s39, 0
      %p255 = por %p253, %p254
      %s257 = sadd.s32 %s256, 1
      %p260 = scmp.eq.s32.totalorder %s33, 1
      %p261 = scmp.ne.s32.totalorder %s256, %s258
      %p262 = scmp.eq.s32.totalorder %s33, 0
      %p263 = por %p261, %p262
      %p264 = scmp.ne.s32.totalorder %s256, %s258
      %p265 = scmp.eq.s32.totalorder %s38, 1
      %p266 = por %p264, %p265
      %p267 = scmp.ne.s32.totalorder %s258, %s259
      %p268 = scmp.eq.s32.totalorder %s38, 0
      %p269 = por %p267, %p268
      %p270 = scmp.ne.s32.totalorder %s258, %s259
      %p271 = scmp.eq.s32.totalorder %s39, 1
      %p272 = por %p270, %p271
      %p274 = scmp.ne.s32.totalorder %s259, %s273
      %p275 = scmp.eq.s32.totalorder %s39, 0
      %p276 = por %p274, %p275
      %s278 = sadd.s32 %s277, 1
      %p281 = scmp.eq.s32.totalorder %s33, 1
      %p282 = scmp.ne.s32.totalorder %s277, %s279
      %p283 = scmp.eq.s32.totalorder %s33, 0
      %p284 = por %p282, %p283
      %p285 = scmp.ne.s32.totalorder %s277, %s279
      %p286 = scmp.eq.s32.totalorder %s38, 1
      %p287 = por %p285, %p286
      %p288 = scmp.ne.s32.totalorder %s279, %s280
      %p289 = scmp.eq.s32.totalorder %s38, 0
      %p290 = por %p288, %p289
      %p291 = scmp.ne.s32.totalorder %s279, %s280
      %p292 = scmp.eq.s32.totalorder %s39, 1
      %p293 = por %p291, %p292
      %p295 = scmp.ne.s32.totalorder %s280, %s294
      %p296 = scmp.eq.s32.totalorder %s39, 0
      %p297 = por %p295, %p296
      %s299 = sadd.s32 %s298, 1
      %p302 = scmp.eq.s32.totalorder %s33, 1
      %p303 = scmp.ne.s32.totalorder %s298, %s300
      %p304 = scmp.eq.s32.totalorder %s33, 0
      %p305 = por %p303, %p304
      %p306 = scmp.ne.s32.totalorder %s298, %s300
      %p307 = scmp.eq.s32.totalorder %s38, 1
      %p308 = por %p306, %p307
      %p309 = scmp.ne.s32.totalorder %s300, %s301
      %p310 = scmp.eq.s32.totalorder %s38, 0
      %p311 = por %p309, %p310
      %p312 = scmp.ne.s32.totalorder %s300, %s301
      %p313 = scmp.eq.s32.totalorder %s39, 1
      %p314 = por %p312, %p313
      %p316 = scmp.ne.s32.totalorder %s301, %s315
      %p317 = scmp.eq.s32.totalorder %s39, 0
      %p318 = por %p316, %p317
      %s320 = sadd.s32 %s319, 1
      %p323 = scmp.eq.s32.totalorder %s33, 1
      %p324 = scmp.ne.s32.totalorder %s319, %s321
      %p325 = scmp.eq.s32.totalorder %s33, 0
      %p326 = por %p324, %p325
      %p327 = scmp.ne.s32.totalorder %s319, %s321
      %p328 = scmp.eq.s32.totalorder %s38, 1
      %p329 = por %p327, %p328
      %p330 = scmp.ne.s32.totalorder %s321, %s322
      %p331 = scmp.eq.s32.totalorder %s38, 0
      %p332 = por %p330, %p331
      %p333 = scmp.ne.s32.totalorder %s321, %s322
      %p334 = scmp.eq.s32.totalorder %s39, 1
      %p335 = por %p333, %p334
      %p337 = scmp.ne.s32.totalorder %s322, %s336
      %p338 = scmp.eq.s32.totalorder %s39, 0
      %p339 = por %p337, %p338
      %s341 = sadd.s32 %s340, 1
      %p344 = scmp.eq.s32.totalorder %s33, 1
      %p345 = scmp.ne.s32.totalorder %s340, %s342
      %p346 = scmp.eq.s32.totalorder %s33, 0
      %p347 = por %p345, %p346
      %p348 = scmp.ne.s32.totalorder %s340, %s342
      %p349 = scmp.eq.s32.totalorder %s38, 1
      %p350 = por %p348, %p349
      %p351 = scmp.ne.s32.totalorder %s342, %s343
      %p352 = scmp.eq.s32.totalorder %s38, 0
      %p353 = por %p351, %p352
      %p354 = scmp.ne.s32.totalorder %s342, %s343
      %p355 = scmp.eq.s32.totalorder %s39, 1
      %p356 = por %p354, %p355
      %p358 = scmp.ne.s32.totalorder %s343, %s357
      %p359 = scmp.eq.s32.totalorder %s39, 0
      %p360 = por %p358, %p359
      %s362 = sadd.s32 %s361, 1
      %p365 = scmp.eq.s32.totalorder %s33, 1
      %p366 = scmp.ne.s32.totalorder %s361, %s363
      %p367 = scmp.eq.s32.totalorder %s33, 0
      %p368 = por %p366, %p367
      %p369 = scmp.ne.s32.totalorder %s361, %s363
      %p370 = scmp.eq.s32.totalorder %s38, 1
      %p371 = por %p369, %p370
      %p372 = scmp.ne.s32.totalorder %s363, %s364
      %p373 = scmp.eq.s32.totalorder %s38, 0
      %p374 = por %p372, %p373
      %p375 = scmp.ne.s32.totalorder %s363, %s364
      %p376 = scmp.eq.s32.totalorder %s39, 1
      %p377 = por %p375, %p376
      %p379 = scmp.ne.s32.totalorder %s364, %s378
      %p380 = scmp.eq.s32.totalorder %s39, 0
      %p381 = por %p379, %p380
      %s383 = sadd.s32 %s382, 1
      %p386 = scmp.eq.s32.totalorder %s33, 1
      %p387 = scmp.ne.s32.totalorder %s382, %s384
      %p388 = scmp.eq.s32.totalorder %s33, 0
      %p389 = por %p387, %p388
      %p390 = scmp.ne.s32.totalorder %s382, %s384
      %p391 = scmp.eq.s32.totalorder %s38, 1
      %p392 = por %p390, %p391
      %p393 = scmp.ne.s32.totalorder %s384, %s385
      %p394 = scmp.eq.s32.totalorder %s38, 0
      %p395 = por %p393, %p394
      %p396 = scmp.ne.s32.totalorder %s384, %s385
      %p397 = scmp.eq.s32.totalorder %s39, 1
      %p398 = por %p396, %p397
      %p400 = scmp.ne.s32.totalorder %s385, %s399
      %p401 = scmp.eq.s32.totalorder %s39, 0
      %p402 = por %p400, %p401
      %s404 = sadd.s32 %s403, 1
      %p407 = scmp.eq.s32.totalorder %s33, 1
      %p408 = scmp.ne.s32.totalorder %s403, %s405
      %p409 = scmp.eq.s32.totalorder %s33, 0
      %p410 = por %p408, %p409
      %p411 = scmp.ne.s32.totalorder %s403, %s405
      %p412 = scmp.eq.s32.totalorder %s38, 1
      %p413 = por %p411, %p412
      %p414 = scmp.ne.s32.totalorder %s405, %s406
      %p415 = scmp.eq.s32.totalorder %s38, 0
      %p416 = por %p414, %p415
      %p417 = scmp.ne.s32.totalorder %s405, %s406
      %p418 = scmp.eq.s32.totalorder %s39, 1
      %p419 = por %p417, %p418
      %p421 = scmp.ne.s32.totalorder %s406, %s420
      %p422 = scmp.eq.s32.totalorder %s39, 0
      %p423 = por %p421, %p422
      %s425 = sadd.s32 %s424, 1
      %p428 = scmp.eq.s32.totalorder %s33, 1
      %p429 = scmp.ne.s32.totalorder %s424, %s426
      %p430 = scmp.eq.s32.totalorder %s33, 0
      %p431 = por %p429, %p430
      %p432 = scmp.ne.s32.totalorder %s424, %s426
      %p433 = scmp.eq.s32.totalorder %s38, 1
      %p434 = por %p432, %p433
      %p435 = scmp.ne.s32.totalorder %s426, %s427
      %p436 = scmp.eq.s32.totalorder %s38, 0
      %p437 = por %p435, %p436
      %p438 = scmp.ne.s32.totalorder %s426, %s427
      %p439 = scmp.eq.s32.totalorder %s39, 1
      %p440 = por %p438, %p439
      %p442 = scmp.ne.s32.totalorder %s427, %s441
      %p443 = scmp.eq.s32.totalorder %s39, 0
      %p444 = por %p442, %p443
      %s446 = sadd.s32 %s445, 1
      %p449 = scmp.eq.s32.totalorder %s33, 1
      %p450 = scmp.ne.s32.totalorder %s445, %s447
      %p451 = scmp.eq.s32.totalorder %s33, 0
      %p452 = por %p450, %p451
      %p453 = scmp.ne.s32.totalorder %s445, %s447
      %p454 = scmp.eq.s32.totalorder %s38, 1
      %p455 = por %p453, %p454
      %p456 = scmp.ne.s32.totalorder %s447, %s448
      %p457 = scmp.eq.s32.totalorder %s38, 0
      %p458 = por %p456, %p457
      %p459 = scmp.ne.s32.totalorder %s447, %s448
      %p460 = scmp.eq.s32.totalorder %s39, 1
      %p461 = por %p459, %p460
      %p463 = scmp.ne.s32.totalorder %s448, %s462
      %p464 = scmp.eq.s32.totalorder %s39, 0
      %p465 = por %p463, %p464
      %s467 = sadd.s32 %s466, 1
      %p470 = scmp.eq.s32.totalorder %s33, 1
      %p471 = scmp.ne.s32.totalorder %s466, %s468
      %p472 = scmp.eq.s32.totalorder %s33, 0
      %p473 = por %p471, %p472
      %p474 = scmp.ne.s32.totalorder %s466, %s468
      %p475 = scmp.eq.s32.totalorder %s38, 1
      %p476 = por %p474, %p475
      %p477 = scmp.ne.s32.totalorder %s468, %s469
      %p478 = scmp.eq.s32.totalorder %s38, 0
      %p479 = por %p477, %p478
      %p480 = scmp.ne.s32.totalorder %s468, %s469
      %p481 = scmp.eq.s32.totalorder %s39, 1
      %p482 = por %p480, %p481
      %p484 = scmp.ne.s32.totalorder %s469, %s483
      %p485 = scmp.eq.s32.totalorder %s39, 0
      %p486 = por %p484, %p485
      %s488 = sadd.s32 %s487, 1
      %p491 = scmp.eq.s32.totalorder %s33, 1
      %p492 = scmp.ne.s32.totalorder %s487, %s489
      %p493 = scmp.eq.s32.totalorder %s33, 0
      %p494 = por %p492, %p493
      %p495 = scmp.ne.s32.totalorder %s487, %s489
      %p496 = scmp.eq.s32.totalorder %s38, 1
      %p497 = por %p495, %p496
      %p498 = scmp.ne.s32.totalorder %s489, %s490
      %p499 = scmp.eq.s32.totalorder %s38, 0
      %p500 = por %p498, %p499
      %p501 = scmp.ne.s32.totalorder %s489, %s490
      %p502 = scmp.eq.s32.totalorder %s39, 1
      %p503 = por %p501, %p502
      %p505 = scmp.ne.s32.totalorder %s490, %s504
      %p506 = scmp.eq.s32.totalorder %s39, 0
      %p507 = por %p505, %p506
      %s509 = sadd.s32 %s508, 1
      %p512 = scmp.eq.s32.totalorder %s33, 1
      %p513 = scmp.ne.s32.totalorder %s508, %s510
      %p514 = scmp.eq.s32.totalorder %s33, 0
      %p515 = por %p513, %p514
      %p516 = scmp.ne.s32.totalorder %s508, %s510
      %p517 = scmp.eq.s32.totalorder %s38, 1
      %p518 = por %p516, %p517
      %p519 = scmp.ne.s32.totalorder %s510, %s511
      %p520 = scmp.eq.s32.totalorder %s38, 0
      %p521 = por %p519, %p520
      %p522 = scmp.ne.s32.totalorder %s510, %s511
      %p523 = scmp.eq.s32.totalorder %s39, 1
      %p524 = por %p522, %p523
      %p526 = scmp.ne.s32.totalorder %s511, %s525
      %p527 = scmp.eq.s32.totalorder %s39, 0
      %p528 = por %p526, %p527
      %s529 = ssub.s32 %s33, %s40
      %p530 = scmp.eq.s32.totalorder %s529, 0
      %s532 = sadd.s32 %s531, 1
      %s533 = scalar_select %p530, %s531, %s532
      %p536 = pneg %p530
      %p537 = scmp.eq.s32.totalorder %s33, 1
      %p538 = por %p536, %p537
      %p539 = scmp.ne.s32.totalorder %s531, %s534
      %p540 = scmp.eq.s32.totalorder %s33, 0
      %p541 = por %p539, %p540
      %p542 = scmp.ne.s32.totalorder %s531, %s534
      %p543 = scmp.eq.s32.totalorder %s38, 1
      %p544 = por %p542, %p543
      %p545 = scmp.ne.s32.totalorder %s534, %s535
      %p546 = scmp.eq.s32.totalorder %s38, 0
      %p547 = por %p545, %p546
      %p548 = scmp.ne.s32.totalorder %s534, %s535
      %p549 = scmp.eq.s32.totalorder %s39, 1
      %p550 = por %p548, %p549
      %p552 = scmp.ne.s32.totalorder %s535, %s551
      %p553 = scmp.eq.s32.totalorder %s39, 0
      %p554 = por %p552, %p553
      %p555 = scmp.le.s32.totalorder 1, %s33
      %p556 = scmp.lt.s32.totalorder %s33, 3
      %p557 = pnand %p555, %p556
      %p558 = pneg %p557
      // Predicated region
      $region9: #{astgcn_notatt.1} parent=5 // pred_check
        _
      $region10: #{astgcn_notatt.1} parent=5 // pred_check_branch
        %560 = sbr.rel (%p557) target = $region12
      $region11: #{astgcn_notatt.1} parent=5 // pred_region
        %s561 = ssub.s32 %s33, 1
        // Predicated region
        $region13: #{astgcn_notatt.1} parent=11 // pred_check
          %p562 = pneg %p54
        $region14: #{astgcn_notatt.1} parent=11 // pred_check_branch
          %564 = sbr.rel (%p562) target = $region16
        $region15: #{astgcn_notatt.1} parent=11 // pred_region
          _
        $region16: #{astgcn_notatt.1} parent=11 // pred_fallthru
          _
        // Predicated region
        $region17: #{astgcn_notatt.1} parent=11 // pred_check
          %p565 = pneg %p101
        $region18: #{astgcn_notatt.1} parent=11 // pred_check_branch
          %567 = sbr.rel (%p565) target = $region20
        $region19: #{astgcn_notatt.1} parent=11 // pred_region
          _
        $region20: #{astgcn_notatt.1} parent=11 // pred_fallthru
          _
        // Predicated region
        $region21: #{astgcn_notatt.1} parent=11 // pred_check
          %p568 = pneg %p122
        $region22: #{astgcn_notatt.1} parent=11 // pred_check_branch
          %570 = sbr.rel (%p568) target = $region24
        $region23: #{astgcn_notatt.1} parent=11 // pred_region
          _
        $region24: #{astgcn_notatt.1} parent=11 // pred_fallthru
          _
        // Predicated region
        $region25: #{astgcn_notatt.1} parent=11 // pred_check
          %p571 = pneg %p143
        $region26: #{astgcn_notatt.1} parent=11 // pred_check_branch
          %573 = sbr.rel (%p571) target = $region28
        $region27: #{astgcn_notatt.1} parent=11 // pred_region
          _
        $region28: #{astgcn_notatt.1} parent=11 // pred_fallthru
          _
        // Predicated region
        $region29: #{astgcn_notatt.1} parent=11 // pred_check
          %p574 = pneg %p164
        $region30: #{astgcn_notatt.1} parent=11 // pred_check_branch
          %576 = sbr.rel (%p574) target = $region32
        $region31: #{astgcn_notatt.1} parent=11 // pred_region
          _
        $region32: #{astgcn_notatt.1} parent=11 // pred_fallthru
          _
        // Predicated region
        $region33: #{astgcn_notatt.1} parent=11 // pred_check
          %p577 = pneg %p185
        $region34: #{astgcn_notatt.1} parent=11 // pred_check_branch
          %579 = sbr.rel (%p577) target = $region36
        $region35: #{astgcn_notatt.1} parent=11 // pred_region
          %s581 = ssub.s32 16, 16
          %582 = vsyncadd [#allocation4], %s581
          %s584 = sshll.u32 %s6, 4
          %s585 = int_to_ptr.vmem [resolvable:$true] %s584
          %587 = dma.vmem_to_smem %s585, 16, [#allocation3], [#allocation4]
        $region36: #{astgcn_notatt.1} parent=11 // pred_fallthru
          _
        // Predicated region
        $region37: #{astgcn_notatt.1} parent=11 // pred_check
          %p588 = pneg %p206
        $region38: #{astgcn_notatt.1} parent=11 // pred_check_branch
          %590 = sbr.rel (%p588) target = $region40
        $region39: #{astgcn_notatt.1} parent=11 // pred_region
          _
        $region40: #{astgcn_notatt.1} parent=11 // pred_fallthru
          _
        // Predicated region
        $region41: #{astgcn_notatt.1} parent=11 // pred_check
          %p591 = pneg %p227
        $region42: #{astgcn_notatt.1} parent=11 // pred_check_branch
          %593 = sbr.rel (%p591) target = $region44
        $region43: #{astgcn_notatt.1} parent=11 // pred_region
          _
        $region44: #{astgcn_notatt.1} parent=11 // pred_fallthru
          _
        // Predicated region
        $region45: #{astgcn_notatt.1} parent=11 // pred_check
          %p594 = pneg %p248
        $region46: #{astgcn_notatt.1} parent=11 // pred_check_branch
          %596 = sbr.rel (%p594) target = $region48
        $region47: #{astgcn_notatt.1} parent=11 // pred_region
          %s598 = ssub.s32 64, 64
          %599 = vsyncadd [#allocation6], %s598
          %s601 = sshll.u32 %s9, 4
          %s602 = int_to_ptr.vmem [resolvable:$true] %s601
          %604 = dma.vmem_to_smem %s602, 64, [#allocation5], [#allocation6]
        $region48: #{astgcn_notatt.1} parent=11 // pred_fallthru
          _
        // Predicated region
        $region49: #{astgcn_notatt.1} parent=11 // pred_check
          %p605 = pneg %p269
        $region50: #{astgcn_notatt.1} parent=11 // pred_check_branch
          %607 = sbr.rel (%p605) target = $region52
        $region51: #{astgcn_notatt.1} parent=11 // pred_region
          %s609 = ssub.s32 16, 16
          %610 = vsyncadd [#allocation6], %s609
          %s612 = sshll.u32 %s10, 4
          %s613 = int_to_ptr.vmem [resolvable:$true] %s612
          %615 = dma.vmem_to_smem %s613, 16, [#allocation7], [#allocation6]
        $region52: #{astgcn_notatt.1} parent=11 // pred_fallthru
          _
        // Predicated region
        $region53: #{astgcn_notatt.1} parent=11 // pred_check
          %p616 = pneg %p290
        $region54: #{astgcn_notatt.1} parent=11 // pred_check_branch
          %618 = sbr.rel (%p616) target = $region56
        $region55: #{astgcn_notatt.1} parent=11 // pred_region
          _
        $region56: #{astgcn_notatt.1} parent=11 // pred_fallthru
          _
        // Predicated region
        $region57: #{astgcn_notatt.1} parent=11 // pred_check
          %p619 = pneg %p311
        $region58: #{astgcn_notatt.1} parent=11 // pred_check_branch
          %621 = sbr.rel (%p619) target = $region60
        $region59: #{astgcn_notatt.1} parent=11 // pred_region
          _
        $region60: #{astgcn_notatt.1} parent=11 // pred_fallthru
          _
        // Predicated region
        $region61: #{astgcn_notatt.1} parent=11 // pred_check
          %p622 = pneg %p332
        $region62: #{astgcn_notatt.1} parent=11 // pred_check_branch
          %624 = sbr.rel (%p622) target = $region64
        $region63: #{astgcn_notatt.1} parent=11 // pred_region
          _
        $region64: #{astgcn_notatt.1} parent=11 // pred_fallthru
          _
        // Predicated region
        $region65: #{astgcn_notatt.1} parent=11 // pred_check
          %p625 = pneg %p353
        $region66: #{astgcn_notatt.1} parent=11 // pred_check_branch
          %627 = sbr.rel (%p625) target = $region68
        $region67: #{astgcn_notatt.1} parent=11 // pred_region
          _
        $region68: #{astgcn_notatt.1} parent=11 // pred_fallthru
          _
        // Predicated region
        $region69: #{astgcn_notatt.1} parent=11 // pred_check
          %p628 = pneg %p374
        $region70: #{astgcn_notatt.1} parent=11 // pred_check_branch
          %630 = sbr.rel (%p628) target = $region72
        $region71: #{astgcn_notatt.1} parent=11 // pred_region
          %s632 = ssub.s32 16, 16
          %633 = vsyncadd [#allocation9], %s632
          %s635 = sshll.u32 %s15, 4
          %s636 = int_to_ptr.vmem [resolvable:$true] %s635
          %638 = dma.vmem_to_smem %s636, 16, [#allocation8], [#allocation9]
        $region72: #{astgcn_notatt.1} parent=11 // pred_fallthru
          _
        // Predicated region
        $region73: #{astgcn_notatt.1} parent=11 // pred_check
          %p639 = pneg %p395
        $region74: #{astgcn_notatt.1} parent=11 // pred_check_branch
          %641 = sbr.rel (%p639) target = $region76
        $region75: #{astgcn_notatt.1} parent=11 // pred_region
          _
        $region76: #{astgcn_notatt.1} parent=11 // pred_fallthru
          _
        // Predicated region
        $region77: #{astgcn_notatt.1} parent=11 // pred_check
          %p642 = pneg %p416
        $region78: #{astgcn_notatt.1} parent=11 // pred_check_branch
          %644 = sbr.rel (%p642) target = $region80
        $region79: #{astgcn_notatt.1} parent=11 // pred_region
          _
        $region80: #{astgcn_notatt.1} parent=11 // pred_fallthru
          _
        // Predicated region
        $region81: #{astgcn_notatt.1} parent=11 // pred_check
          %p645 = pneg %p437
        $region82: #{astgcn_notatt.1} parent=11 // pred_check_branch
          %647 = sbr.rel (%p645) target = $region84
        $region83: #{astgcn_notatt.1} parent=11 // pred_region
          %s649 = ssub.s32 64, 64
          %650 = vsyncadd [#allocation9], %s649
          %s652 = sshll.u32 %s18, 4
          %s653 = int_to_ptr.vmem [resolvable:$true] %s652
          %655 = dma.vmem_to_smem %s653, 64, [#allocation10], [#allocation9]
        $region84: #{astgcn_notatt.1} parent=11 // pred_fallthru
          _
        // Predicated region
        $region85: #{astgcn_notatt.1} parent=11 // pred_check
          %p656 = pneg %p458
        $region86: #{astgcn_notatt.1} parent=11 // pred_check_branch
          %658 = sbr.rel (%p656) target = $region88
        $region87: #{astgcn_notatt.1} parent=11 // pred_region
          %s660 = ssub.s32 16, 16
          %661 = vsyncadd [#allocation12], %s660
          %s663 = sshll.u32 %s19, 4
          %s664 = int_to_ptr.vmem [resolvable:$true] %s663
          %666 = dma.vmem_to_smem %s664, 16, [#allocation11], [#allocation12]
        $region88: #{astgcn_notatt.1} parent=11 // pred_fallthru
          _
        // Predicated region
        $region89: #{astgcn_notatt.1} parent=11 // pred_check
          %p667 = pneg %p479
        $region90: #{astgcn_notatt.1} parent=11 // pred_check_branch
          %669 = sbr.rel (%p667) target = $region92
        $region91: #{astgcn_notatt.1} parent=11 // pred_region
          _
        $region92: #{astgcn_notatt.1} parent=11 // pred_fallthru
          _
        // Predicated region
        $region93: #{astgcn_notatt.1} parent=11 // pred_check
          %p670 = pneg %p500
        $region94: #{astgcn_notatt.1} parent=11 // pred_check_branch
          %672 = sbr.rel (%p670) target = $region96
        $region95: #{astgcn_notatt.1} parent=11 // pred_region
          _
        $region96: #{astgcn_notatt.1} parent=11 // pred_fallthru
          _
        // Predicated region
        $region97: #{astgcn_notatt.1} parent=11 // pred_check
          %p673 = pneg %p521
        $region98: #{astgcn_notatt.1} parent=11 // pred_check_branch
          %675 = sbr.rel (%p673) target = $region100
        $region99: #{astgcn_notatt.1} parent=11 // pred_region
          _
        $region100: #{astgcn_notatt.1} parent=11 // pred_fallthru
          _
      $region12: #{astgcn_notatt.1} parent=5 // pred_fallthru
        _
      %p676 = scmp.lt.s32.totalorder %s33, 2
      // Predicated region
      $region101: #{astgcn_notatt.1} parent=5 // pred_check
        %p677 = pneg %p676
      $region102: #{astgcn_notatt.1} parent=5 // pred_check_branch
        %679 = sbr.rel (%p677) target = $region104
      $region103: #{astgcn_notatt.1} parent=5 // pred_region
        // Predicated region
        $region105: #{astgcn_notatt.1} parent=103 // pred_check
          %p680 = pneg %p74
        $region106: #{astgcn_notatt.1} parent=103 // pred_check_branch
          %682 = sbr.rel (%p680) target = $region108
        $region107: #{astgcn_notatt.1} parent=103 // pred_region
          %s683 = sand.u32 %s64, 1
          %s684 = sand.u32 %s64, 1
          %s685 = smul.addr %s684, 48
          %s686 = scalar_lea.vmem [#allocation2], %s685
          %s687 = smul.addr %s33, 2
          %s688 = smul.addr %s687, 8
          %s689 = scalar_lea.vmem %s1, %s688
          // Predicated region
          $region109: #{astgcn_notatt.1} parent=107 // pred_check
            _
          $region110: #{astgcn_notatt.1} parent=107 // pred_check_branch
            %691 = sbr.rel (0) target = $region112
          $region111: #{astgcn_notatt.1} parent=107 // pred_region
            // Predicated region
            $region113: #{astgcn_notatt.1} parent=111 // pred_check
              _
            $region114: #{astgcn_notatt.1} parent=111 // pred_check_branch
              %693 = sbr.rel (0) target = $region116
            $region115: #{astgcn_notatt.1} parent=111 // pred_region
              // Predicated region
              $region128: #{astgcn_notatt.1} parent=115 // pred_check
                _
              $region129: #{astgcn_notatt.1} parent=115 // pred_check_branch
                %718 = sbr.rel (0) target = $region131
              $region130: #{astgcn_notatt.1} parent=115 // pred_region
                loop: start=0, step=1, limit=1
                $region132: #{astgcn_notatt.1} parent=130 // loop_pre_header
                  _
                $region133: #{astgcn_notatt.1} parent=130 // loop_header
                  %s720 = sphi 0, %s724
                  %p721 = scmp.ge.s32.totalorder %s720, 1
                  %s725 = sphi %s689, %s689
                  %s726 = sphi %s686, %s686
                $region134: #{astgcn_notatt.1} parent=130 // loop_header_branch
                  %723 = sbr.rel (%p721) target = $region138
                $region135: #{astgcn_notatt.1} parent=130 // loop_body
                  %v727 = vld [vmem:[%s725] sm:$0xff]
                  %728 = vst [vmem:[%s726] sm:$0xff] %v727
                  %v729 = vld [vmem:[%s725 + $0x8] sm:$0xff]
                  %730 = vst [vmem:[%s726 + $0x8] sm:$0xff] %v729
                  %v731 = vld [vmem:[%s725 + $0x20] sm:$0xff]
                  %732 = vst [vmem:[%s726 + $0x10] sm:$0xff] %v731
                  %v733 = vld [vmem:[%s725 + $0x28] sm:$0xff]
                  %734 = vst [vmem:[%s726 + $0x18] sm:$0xff] %v733
                  %v735 = vld [vmem:[%s725 + $0x40] sm:$0xff]
                  %736 = vst [vmem:[%s726 + $0x20] sm:$0xff] %v735
                  %v737 = vld [vmem:[%s725 + $0x48] sm:$0xff]
                  %738 = vst [vmem:[%s726 + $0x28] sm:$0xff] %v737
                $region136: #{astgcn_notatt.1} parent=130 // loop_footer
                  %s724 = sadd.s32 1, %s720
                $region137: #{astgcn_notatt.1} parent=130 // loop_footer_branch
                  %719 = sbr.rel target = $region133
                $region138: #{astgcn_notatt.1} parent=130 // loop_exit
                  _
              $region131: #{astgcn_notatt.1} parent=115 // pred_fallthru
                _
              // Predicated region
              $region139: #{astgcn_notatt.1} parent=115 // pred_check
                _
              $region140: #{astgcn_notatt.1} parent=115 // pred_check_branch
                %740 = sbr.rel target = $region142
              $region141: #{astgcn_notatt.1} parent=115 // pred_region
                _
              $region142: #{astgcn_notatt.1} parent=115 // pred_fallthru
                _
            $region116: #{astgcn_notatt.1} parent=111 // pred_fallthru
              _
            // Predicated region
            $region117: #{astgcn_notatt.1} parent=111 // pred_check
              _
            $region118: #{astgcn_notatt.1} parent=111 // pred_check_branch
              %695 = sbr.rel target = $region120
            $region119: #{astgcn_notatt.1} parent=111 // pred_region
              loop: start=0, step=1, limit=1
              $region121: #{astgcn_notatt.1} parent=119 // loop_pre_header
                _
              $region122: #{astgcn_notatt.1} parent=119 // loop_header
                %s698 = sphi 0, %s702
                %p699 = scmp.ge.s32.totalorder %s698, 1
                %s703 = sphi %s689, %s689
                %s704 = sphi %s686, %s686
              $region123: #{astgcn_notatt.1} parent=119 // loop_header_branch
                %701 = sbr.rel (%p699) target = $region127
              $region124: #{astgcn_notatt.1} parent=119 // loop_body
                %v705 = vld [vmem:[%s703] sm:$0xff]
                %706 = vst [vmem:[%s704] sm:$0xff] %v705
                %v707 = vld [vmem:[%s703 + $0x8] sm:$0xff]
                %708 = vst [vmem:[%s704 + $0x8] sm:$0xff] %v707
                %v709 = vld [vmem:[%s703 + $0x20] sm:$0xff]
                %710 = vst [vmem:[%s704 + $0x10] sm:$0xff] %v709
                %v711 = vld [vmem:[%s703 + $0x28] sm:$0xff]
                %712 = vst [vmem:[%s704 + $0x18] sm:$0xff] %v711
                %v713 = vld [vmem:[%s703 + $0x40] sm:$0xff]
                %714 = vst [vmem:[%s704 + $0x20] sm:$0xff] %v713
                %v715 = vld [vmem:[%s703 + $0x48] sm:$0xff]
                %716 = vst [vmem:[%s704 + $0x28] sm:$0xff] %v715
              $region125: #{astgcn_notatt.1} parent=119 // loop_footer
                %s702 = sadd.s32 1, %s698
              $region126: #{astgcn_notatt.1} parent=119 // loop_footer_branch
                %697 = sbr.rel target = $region122
              $region127: #{astgcn_notatt.1} parent=119 // loop_exit
                _
            $region120: #{astgcn_notatt.1} parent=111 // pred_fallthru
              _
          $region112: #{astgcn_notatt.1} parent=107 // pred_fallthru
            _
          %741 = vnop
        $region108: #{astgcn_notatt.1} parent=103 // pred_fallthru
          _
      $region104: #{astgcn_notatt.1} parent=5 // pred_fallthru
        _
      %p742 = scmp.le.s32.totalorder 1, %s33
      %p743 = scmp.lt.s32.totalorder %s33, 3
      %p744 = pnand %p742, %p743
      %p745 = pneg %p744
      // Predicated region
      $region143: #{astgcn_notatt.1} parent=5 // pred_check
        _
      $region144: #{astgcn_notatt.1} parent=5 // pred_check_branch
        %747 = sbr.rel (%p744) target = $region146
      $region145: #{astgcn_notatt.1} parent=5 // pred_region
        %s748 = ssub.s32 %s33, 1
        %s749 = sand.u32 %s67, 1
        %s750 = sand.u32 %s67, 1
        %s751 = smul.addr %s750, 48
        %s752 = scalar_lea.vmem [#allocation2], %s751
        // Predicated region
        $region147: #{astgcn_notatt.1} parent=145 // pred_check
          %p753 = pneg %p80
        $region148: #{astgcn_notatt.1} parent=145 // pred_check_branch
          %755 = sbr.rel (%p753) target = $region150
        $region149: #{astgcn_notatt.1} parent=145 // pred_region
          _
        $region150: #{astgcn_notatt.1} parent=145 // pred_fallthru
          _
        // Predicated region
        $region151: #{astgcn_notatt.1} parent=145 // pred_check
          %p756 = pneg %p185
        $region152: #{astgcn_notatt.1} parent=145 // pred_check_branch
          %758 = sbr.rel (%p756) target = $region154
        $region153: #{astgcn_notatt.1} parent=145 // pred_region
          %759 = dma.done [#allocation4], 16
        $region154: #{astgcn_notatt.1} parent=145 // pred_fallthru
          _
        // Predicated region
        $region155: #{astgcn_notatt.1} parent=145 // pred_check
          %p760 = pneg %p248
        $region156: #{astgcn_notatt.1} parent=145 // pred_check_branch
          %762 = sbr.rel (%p760) target = $region158
        $region157: #{astgcn_notatt.1} parent=145 // pred_region
          %763 = dma.done [#allocation6], 64
        $region158: #{astgcn_notatt.1} parent=145 // pred_fallthru
          _
        // Predicated region
        $region159: #{astgcn_notatt.1} parent=145 // pred_check
          %p764 = pneg %p269
        $region160: #{astgcn_notatt.1} parent=145 // pred_check_branch
          %766 = sbr.rel (%p764) target = $region162
        $region161: #{astgcn_notatt.1} parent=145 // pred_region
          %767 = dma.done [#allocation6], 16
        $region162: #{astgcn_notatt.1} parent=145 // pred_fallthru
          _
        // Predicated region
        $region163: #{astgcn_notatt.1} parent=145 // pred_check
          %p768 = pneg %p374
        $region164: #{astgcn_notatt.1} parent=145 // pred_check_branch
          %770 = sbr.rel (%p768) target = $region166
        $region165: #{astgcn_notatt.1} parent=145 // pred_region
          %771 = dma.done [#allocation9], 16
        $region166: #{astgcn_notatt.1} parent=145 // pred_fallthru
          _
        // Predicated region
        $region167: #{astgcn_notatt.1} parent=145 // pred_check
          %p772 = pneg %p437
        $region168: #{astgcn_notatt.1} parent=145 // pred_check_branch
          %774 = sbr.rel (%p772) target = $region170
        $region169: #{astgcn_notatt.1} parent=145 // pred_region
          %775 = dma.done [#allocation9], 64
        $region170: #{astgcn_notatt.1} parent=145 // pred_fallthru
          _
        // Predicated region
        $region171: #{astgcn_notatt.1} parent=145 // pred_check
          %p776 = pneg %p458
        $region172: #{astgcn_notatt.1} parent=145 // pred_check_branch
          %778 = sbr.rel (%p776) target = $region174
        $region173: #{astgcn_notatt.1} parent=145 // pred_region
          %779 = dma.done [#allocation12], 16
        $region174: #{astgcn_notatt.1} parent=145 // pred_fallthru
          _
        %780 = sfence
        %p781 = pneg %p54
        %p782 = pneg %p51
        %s783 = sand.u32 %s67, 1
        %s784 = sand.u32 %s67, 1
        %s785 = smul.addr %s784, 48
        %s786 = scalar_lea.vmem [#allocation2], %s785
        %p787 = pneg %p80
        %p788 = pneg %p77
        %p789 = pneg %p101
        %p790 = pneg %p98
        %p791 = pneg %p122
        %p792 = pneg %p119
        %p793 = pneg %p143
        %p794 = pneg %p140
        %p795 = pneg %p164
        %p796 = pneg %p161
        %p797 = pneg %p185
        %p798 = pneg %p182
        %p799 = pneg %p206
        %p800 = pneg %p203
        %p801 = pneg %p227
        %p802 = pneg %p224
        %p803 = pneg %p248
        %p804 = pneg %p245
        %p805 = pneg %p269
        %p806 = pneg %p266
        %p807 = pneg %p290
        %p808 = pneg %p287
        %p809 = pneg %p311
        %p810 = pneg %p308
        %p811 = pneg %p332
        %p812 = pneg %p329
        %p813 = pneg %p353
        %p814 = pneg %p350
        %p815 = pneg %p374
        %p816 = pneg %p371
        %p817 = pneg %p395
        %p818 = pneg %p392
        %p819 = pneg %p416
        %p820 = pneg %p413
        %p821 = pneg %p437
        %p822 = pneg %p434
        %p823 = pneg %p458
        %p824 = pneg %p455
        %p825 = pneg %p479
        %p826 = pneg %p476
        %p827 = pneg %p500
        %p828 = pneg %p497
        %p829 = pneg %p521
        %p830 = pneg %p518
        %p831 = pneg %p547
        %p832 = pneg %p544
        %p833 = scmp.lt.s32.totalorder %s38, 1
        %s834 = scalar_select %p833, %s38, 1
        %s835 = smul.addr %s834, 2
        %s836 = smul.addr %s835, 8
        %s837 = scalar_lea.vmem %s23, %s836
        %p838 = scmp.lt.s32.totalorder %s38, 1
        %s839 = scalar_select %p838, %s38, 1
        %s840 = smul.addr %s839, 2
        %s841 = smul.addr %s840, 8
        %s842 = scalar_lea.vmem %s23, %s841
        %v843 = vld [vmem:[%s0] sm:$0xff]
        %v844 = vld [vmem:[%s0 + $0x8] sm:$0xff]
        %v845 = vlaneseq
        %v846 = vand.u32 %v845, 127
        %vm847 = vcmp.eq.s32.totalorder %v846, 0
        %vm848 = vcmp.eq.s32.totalorder %v846, 63
        %vm849 = vcmp.eq.s32.totalorder %v846, 31
        %v850 = vld [vmem:[%s752] sm:$0xff]
        %v851 = vld [vmem:[%s752 + $0x8] sm:$0xff]
        %v852 = vld [vmem:[%s2] sm:$0xff]
        %v853 = vld [vmem:[%s2 + $0x8] sm:$0xff]
        %v854 = vld [vmem:[%s3] sm:$0xff]
        %v855 = vld [vmem:[%s3 + $0x8] sm:$0xff]
        %v856 = vld [vmem:[%s4] sm:$0x1]
        %v857 = vld [vmem:[%s5] sm:$0x1]
        %s858 = sld [smem:[#allocation3]]
        %v859 = vld [vmem:[%s7] sm:$0xff]
        %v860 = vld [vmem:[%s7 + $0x8] sm:$0xff]
        %v861 = vld [vmem:[%s7 + $0x10] sm:$0xff]
        %v862 = vld [vmem:[%s8] sm:$0x1]
        %s863 = sld [smem:[#allocation5]]
        %s864 = sld [smem:[#allocation5 + $0x1]]
        %s865 = sld [smem:[#allocation5 + $0x2]]
        %s866 = sld [smem:[#allocation7]]
        %v868 = vlaneseq
        %v869 = vshrl.u32 %v868, 7
        %v870 = vsub.s32 0, %v869
        %v871 = vrot.slane %v856, %v870
        %v873 = vmul.f32 %v850, %v871
        %v874 = vmul.f32 %v851, %v871
        %vm875 = vcmask 64512
        %v876 = vsel %vm875, %v873, 0.0
        %877 = vadd.xlane.f32.xlu0 %v876
        %v878 = vpop.xlane.xlu0 %877
        %v879 = vsel %vm875, %v874, 0.0
        %880 = vadd.xlane.f32.xlu0 %v879
        %v881 = vpop.xlane.xlu0 %880
        %v883 = vlaneseq
        %v884 = vshrl.u32 %v883, 7
        %v885 = vsub.s32 0, %v884
        %v886 = vrot.slane %v857, %v885
        %v888 = vmul.f32 %v878, %v886
        %v889 = vmul.f32 %v881, %v886
        %v890 = vstv %s858
        %v891 = vmul.f32 %v890, %v850
        %v892 = vmul.f32 %v890, %v851
        %v894 = vsel %vm875, %v888, 0
        %v897 = vsel %vm875, %v889, 0
        %v900 = vsel %vm875, %v891, 0
        %v903 = vsel %vm875, %v892, 0
        %905 = vmatprep.subr.mxu0 0.0
        %906 = vmatpush1.xpose.msra.mxu0 %v900
        %907 = vmatprep.subr.mxu0 0.0
        %908 = vmatpush1.xpose.msra.mxu0 %v903
        %909 = vmatprep.subr.mxu0 0.0
        %910 = vmatpush1.xpose.msra.mxu0 0.0
        %911 = vmatprep.subr.mxu0 0.0
        %912 = vmatpush1.xpose.msra.mxu0 0.0
        %913 = vmatprep.subr.mxu0 0.0
        %914 = vmatpush1.xpose.msra.mxu0 0.0
        %915 = vmatprep.subr.mxu0 0.0
        %916 = vmatpush1.xpose.msra.mxu0 0.0
        %917 = vmatprep.subr.mxu0 0.0
        %918 = vmatpush1.xpose.msra.mxu0 0.0
        %919 = vmatprep.subr.mxu0 0.0
        %920 = vmatpush1.xpose.msra.mxu0 0.0
        %921 = vmatprep.subr.mxu0 0.0
        %922 = vmatpush1.xpose.msra.mxu0 0.0
        %923 = vmatprep.subr.mxu0 0.0
        %924 = vmatpush1.xpose.msra.mxu0 0.0
        %925 = vmatprep.subr.mxu0 0.0
        %926 = vmatpush1.xpose.msra.mxu0 0.0
        %927 = vmatprep.subr.mxu0 0.0
        %928 = vmatpush1.xpose.msra.mxu0 0.0
        %929 = vmatprep.subr.mxu0 0.0
        %930 = vmatpush1.xpose.msra.mxu0 0.0
        %931 = vmatprep.subr.mxu0 0.0
        %932 = vmatpush1.xpose.msra.mxu0 0.0
        %933 = vmatprep.subr.mxu0 0.0
        %934 = vmatpush1.xpose.msra.mxu0 0.0
        %935 = vmatprep.subr.mxu0 0.0
        %936 = vmatpush1.xpose.msra.mxu0 0.0
        %937 = vmatprep.subr.mxu0 0.0
        %938 = vmatpush1.xpose.msra.mxu0 0.0
        %939 = vmatprep.subr.mxu0 0.0
        %940 = vmatpush1.xpose.msra.mxu0 0.0
        %941 = vmatprep.subr.mxu0 0.0
        %942 = vmatpush1.xpose.msra.mxu0 0.0
        %943 = vmatprep.subr.mxu0 0.0
        %944 = vmatpush1.xpose.msra.mxu0 0.0
        %945 = vmatprep.subr.mxu0 0.0
        %946 = vmatpush1.xpose.msra.mxu0 0.0
        %947 = vmatprep.subr.mxu0 0.0
        %948 = vmatpush1.xpose.msra.mxu0 0.0
        %949 = vmatprep.subr.mxu0 0.0
        %950 = vmatpush1.xpose.msra.mxu0 0.0
        %951 = vmatprep.subr.mxu0 0.0
        %952 = vmatpush1.xpose.msra.mxu0 0.0
        %953 = vmatprep.subr.mxu0 0.0
        %954 = vmatpush1.xpose.msra.mxu0 0.0
        %955 = vmatprep.subr.mxu0 0.0
        %956 = vmatpush1.xpose.msra.mxu0 0.0
        %957 = vmatprep.subr.mxu0 0.0
        %958 = vmatpush1.xpose.msra.mxu0 0.0
        %959 = vmatprep.subr.mxu0 0.0
        %960 = vmatpush1.xpose.msra.mxu0 0.0
        %961 = vmatprep.subr.mxu0 0.0
        %962 = vmatpush1.xpose.msra.mxu0 0.0
        %963 = vmatprep.subr.mxu0 0.0
        %964 = vmatpush1.xpose.msra.mxu0 0.0
        %965 = vmatprep.subr.mxu0 0.0
        %966 = vmatpush1.xpose.msra.mxu0 0.0
        %967 = vmatprep.subr.mxu0 0.0
        %968 = vmatpush1.xpose.msra.mxu0 0.0
        %969 = vmatprep.mubr.f32.mxu0 0.0
        %970 = vmatmul.mubr.f32.gmra.mrb[0].mxu0 %v894
        %v971 = vpop.f32.mrb[0].mxu0
        %v972 = vadd.f32 %v854, %v971
        %v973 = vpop.f32.mrb[0].mxu0
        %974 = vmatprep.mubr.f32.mxu0 0.0
        %975 = vmatmul.mubr.f32.gmra.mrb[0].mxu0 %v897
        %v976 = vpop.f32.mrb[0].mxu0
        %v977 = vadd.f32 %v855, %v976
        %v978 = vpop.f32.mrb[0].mxu0
        %979 = vdwg.mxu0
        %vm980 = vcmask 130048
        %v981 = vsel %vm980, %v972, -inf
        %v982 = vsel %vm980, %v977, -inf
        %v983 = vmax.f32 %v981, %v982
        %v984 = vrot.slane %v983, 4
        %v985 = vmax.f32 %v983, %v984
        %v986 = vrot.slane %v985, 2
        %v987 = vmax.f32 %v985, %v986
        %v988 = vrot.slane %v987, 1
        %v989 = vmax.f32 %v987, %v988
        %v990 = vsub.f32 %v972, %v989
        %v991 = vsub.f32 %v977, %v989
        %v992 = vmul.f32 %v990, 1.442695
        %v993 = vpow.pop %v992
        %v994 = vmul.f32 %v991, 1.442695
        %v995 = vpow.pop %v994
        %v996 = vsel %vm980, %v993, 0.0
        %v997 = vsel %vm980, %v995, 0.0
        %v998 = vadd.f32 %v996, %v997
        %v999 = vrot.slane %v998, 4
        %v1000 = vadd.f32 %v998, %v999
        %v1001 = vrot.slane %v1000, 2
        %v1002 = vadd.f32 %v1000, %v1001
        %v1003 = vrot.slane %v1002, 1
        %v1004 = vadd.f32 %v1002, %v1003
        %v1005 = vrcp.pop %v1004
        %v1006 = vmul.f32 %v993, %v1005
        %v1007 = vmul.f32 %v995, %v1005
        %v1009 = vsel %vm980, %v852, 0
        %v1012 = vsel %vm980, %v853, 0
        %1014 = vmatprep.subr.mxu0 0.0
        %1015 = vmatpush1.msra.mxu0 %v1006
        %1016 = vmatprep.subr.mxu0 0.0
        %1017 = vmatpush1.msra.mxu0 %v1007
        %1018 = vmatprep.subr.mxu0 0.0
        %1019 = vmatpush1.msra.mxu0 0.0
        %1020 = vmatprep.subr.mxu0 0.0
        %1021 = vmatpush1.msra.mxu0 0.0
        %1022 = vmatprep.subr.mxu0 0.0
        %1023 = vmatpush1.msra.mxu0 0.0
        %1024 = vmatprep.subr.mxu0 0.0
        %1025 = vmatpush1.msra.mxu0 0.0
        %1026 = vmatprep.subr.mxu0 0.0
        %1027 = vmatpush1.msra.mxu0 0.0
        %1028 = vmatprep.subr.mxu0 0.0
        %1029 = vmatpush1.msra.mxu0 0.0
        %1030 = vmatprep.subr.mxu0 0.0
        %1031 = vmatpush1.msra.mxu0 0.0
        %1032 = vmatprep.subr.mxu0 0.0
        %1033 = vmatpush1.msra.mxu0 0.0
        %1034 = vmatprep.subr.mxu0 0.0
        %1035 = vmatpush1.msra.mxu0 0.0
        %1036 = vmatprep.subr.mxu0 0.0
        %1037 = vmatpush1.msra.mxu0 0.0
        %1038 = vmatprep.subr.mxu0 0.0
        %1039 = vmatpush1.msra.mxu0 0.0
        %1040 = vmatprep.subr.mxu0 0.0
        %1041 = vmatpush1.msra.mxu0 0.0
        %1042 = vmatprep.subr.mxu0 0.0
        %1043 = vmatpush1.msra.mxu0 0.0
        %1044 = vmatprep.subr.mxu0 0.0
        %1045 = vmatpush1.msra.mxu0 0.0
        %1046 = vmatprep.subr.mxu0 0.0
        %1047 = vmatpush1.msra.mxu0 0.0
        %1048 = vmatprep.subr.mxu0 0.0
        %1049 = vmatpush1.msra.mxu0 0.0
        %1050 = vmatprep.subr.mxu0 0.0
        %1051 = vmatpush1.msra.mxu0 0.0
        %1052 = vmatprep.subr.mxu0 0.0
        %1053 = vmatpush1.msra.mxu0 0.0
        %1054 = vmatprep.subr.mxu0 0.0
        %1055 = vmatpush1.msra.mxu0 0.0
        %1056 = vmatprep.subr.mxu0 0.0
        %1057 = vmatpush1.msra.mxu0 0.0
        %1058 = vmatprep.subr.mxu0 0.0
        %1059 = vmatpush1.msra.mxu0 0.0
        %1060 = vmatprep.subr.mxu0 0.0
        %1061 = vmatpush1.msra.mxu0 0.0
        %1062 = vmatprep.subr.mxu0 0.0
        %1063 = vmatpush1.msra.mxu0 0.0
        %1064 = vmatprep.subr.mxu0 0.0
        %1065 = vmatpush1.msra.mxu0 0.0
        %1066 = vmatprep.subr.mxu0 0.0
        %1067 = vmatpush1.msra.mxu0 0.0
        %1068 = vmatprep.subr.mxu0 0.0
        %1069 = vmatpush1.msra.mxu0 0.0
        %1070 = vmatprep.subr.mxu0 0.0
        %1071 = vmatpush1.msra.mxu0 0.0
        %1072 = vmatprep.subr.mxu0 0.0
        %1073 = vmatpush1.msra.mxu0 0.0
        %1074 = vmatprep.subr.mxu0 0.0
        %1075 = vmatpush1.msra.mxu0 0.0
        %1076 = vmatprep.subr.mxu0 0.0
        %1077 = vmatpush1.msra.mxu0 0.0
        %1078 = vmatprep.mubr.f32.mxu0 0.0
        %1079 = vmatmul.mubr.f32.gmra.mrb[0].mxu0 %v1009
        %v1080 = vpop.f32.mrb[0].mxu0
        %v1081 = vadd.f32 0.0, %v1080
        %v1082 = vpop.f32.mrb[0].mxu0
        %1083 = vmatprep.mubr.f32.mxu0 0.0
        %1084 = vmatmul.mubr.f32.gmra.mrb[0].mxu0 %v1012
        %v1085 = vpop.f32.mrb[0].mxu0
        %v1086 = vadd.f32 0.0, %v1085
        %v1087 = vpop.f32.mrb[0].mxu0
        %1088 = vdwg.mxu0
        %v1089 = vsel %vm980, %v1081, -inf
        %v1090 = vsel %vm980, %v1086, -inf
        %v1091 = vmax.f32 %v1089, %v1090
        %v1092 = vrot.slane %v1091, 4
        %v1093 = vmax.f32 %v1091, %v1092
        %v1094 = vrot.slane %v1093, 2
        %v1095 = vmax.f32 %v1093, %v1094
        %v1096 = vrot.slane %v1095, 1
        %v1097 = vmax.f32 %v1095, %v1096
        %v1098 = vsub.f32 %v1081, %v1097
        %v1099 = vsub.f32 %v1086, %v1097
        %v1100 = vmul.f32 %v1098, 1.442695
        %v1101 = vpow.pop %v1100
        %v1102 = vmul.f32 %v1099, 1.442695
        %v1103 = vpow.pop %v1102
        %v1104 = vsel %vm980, %v1101, 0.0
        %v1105 = vsel %vm980, %v1103, 0.0
        %v1106 = vadd.f32 %v1104, %v1105
        %v1107 = vrot.slane %v1106, 4
        %v1108 = vadd.f32 %v1106, %v1107
        %v1109 = vrot.slane %v1108, 2
        %v1110 = vadd.f32 %v1108, %v1109
        %v1111 = vrot.slane %v1110, 1
        %v1112 = vadd.f32 %v1110, %v1111
        %v1113 = vrcp.pop %v1112
        %v1114 = vmul.f32 %v1101, %v1113
        %v1115 = vmul.f32 %v1103, %v1113
        %v1116 = vmul.f32 %v843, %v1114
        %v1117 = vmul.f32 %v844, %v1115
        %v1118 = vsel %vm980, %v1116, 0.0
        %1119 = vadd.xlane.f32.xlu0 %v1118
        %v1120 = vpop.xlane.xlu0 %1119
        %v1121 = vsel %vm980, %v1117, 0.0
        %1122 = vadd.xlane.f32.xlu0 %v1121
        %v1123 = vpop.xlane.xlu0 %1122
        %vm1124 = vcmp.gt.f32.partialorder %v1120, 0.0
        %vm1125 = vcmp.gt.f32.partialorder %v1123, 0.0
        %v1126 = vrsqrt.pop %v1120
        %v1127 = vrsqrt.pop %v1123
        %v1128 = vsel %vm1124, %v1126, 0.0
        %v1129 = vsel %vm1125, %v1127, 0.0
        %v1130 = vmul.f32 %v1128, %v1116
        %v1131 = vmul.f32 %v1129, %v1117
        %v1132 = vmul.f32 %v1128, %v850
        %v1133 = vmul.f32 %v1129, %v851
        %v1135 = vsel %vm980, %v1130, 0
        %v1138 = vsel %vm980, %v1131, 0
        %1140 = vmatprep.subr.mxu0 0.0
        %1141 = vmatpush1.msra.mxu0 %v1132
        %1142 = vmatprep.subr.mxu0 0.0
        %1143 = vmatpush1.msra.mxu0 %v1133
        %1144 = vmatprep.subr.mxu0 0.0
        %1145 = vmatpush1.msra.mxu0 0.0
        %1146 = vmatprep.subr.mxu0 0.0
        %1147 = vmatpush1.msra.mxu0 0.0
        %1148 = vmatprep.subr.mxu0 0.0
        %1149 = vmatpush1.msra.mxu0 0.0
        %1150 = vmatprep.subr.mxu0 0.0
        %1151 = vmatpush1.msra.mxu0 0.0
        %1152 = vmatprep.subr.mxu0 0.0
        %1153 = vmatpush1.msra.mxu0 0.0
        %1154 = vmatprep.subr.mxu0 0.0
        %1155 = vmatpush1.msra.mxu0 0.0
        %1156 = vmatprep.subr.mxu0 0.0
        %1157 = vmatpush1.msra.mxu0 0.0
        %1158 = vmatprep.subr.mxu0 0.0
        %1159 = vmatpush1.msra.mxu0 0.0
        %1160 = vmatprep.subr.mxu0 0.0
        %1161 = vmatpush1.msra.mxu0 0.0
        %1162 = vmatprep.subr.mxu0 0.0
        %1163 = vmatpush1.msra.mxu0 0.0
        %1164 = vmatprep.subr.mxu0 0.0
        %1165 = vmatpush1.msra.mxu0 0.0
        %1166 = vmatprep.subr.mxu0 0.0
        %1167 = vmatpush1.msra.mxu0 0.0
        %1168 = vmatprep.subr.mxu0 0.0
        %1169 = vmatpush1.msra.mxu0 0.0
        %1170 = vmatprep.subr.mxu0 0.0
        %1171 = vmatpush1.msra.mxu0 0.0
        %1172 = vmatprep.subr.mxu0 0.0
        %1173 = vmatpush1.msra.mxu0 0.0
        %1174 = vmatprep.subr.mxu0 0.0
        %1175 = vmatpush1.msra.mxu0 0.0
        %1176 = vmatprep.subr.mxu0 0.0
        %1177 = vmatpush1.msra.mxu0 0.0
        %1178 = vmatprep.subr.mxu0 0.0
        %1179 = vmatpush1.msra.mxu0 0.0
        %1180 = vmatprep.subr.mxu0 0.0
        %1181 = vmatpush1.msra.mxu0 0.0
        %1182 = vmatprep.subr.mxu0 0.0
        %1183 = vmatpush1.msra.mxu0 0.0
        %1184 = vmatprep.subr.mxu0 0.0
        %1185 = vmatpush1.msra.mxu0 0.0
        %1186 = vmatprep.subr.mxu0 0.0
        %1187 = vmatpush1.msra.mxu0 0.0
        %1188 = vmatprep.subr.mxu0 0.0
        %1189 = vmatpush1.msra.mxu0 0.0
        %1190 = vmatprep.subr.mxu0 0.0
        %1191 = vmatpush1.msra.mxu0 0.0
        %1192 = vmatprep.subr.mxu0 0.0
        %1193 = vmatpush1.msra.mxu0 0.0
        %1194 = vmatprep.subr.mxu0 0.0
        %1195 = vmatpush1.msra.mxu0 0.0
        %1196 = vmatprep.subr.mxu0 0.0
        %1197 = vmatpush1.msra.mxu0 0.0
        %1198 = vmatprep.subr.mxu0 0.0
        %1199 = vmatpush1.msra.mxu0 0.0
        %1200 = vmatprep.subr.mxu0 0.0
        %1201 = vmatpush1.msra.mxu0 0.0
        %1202 = vmatprep.subr.mxu0 0.0
        %1203 = vmatpush1.msra.mxu0 0.0
        %1204 = vmatprep.mubr.f32.mxu0 0.0
        %1205 = vmatmul.mubr.f32.gmra.mrb[0].mxu0 %v1135
        %v1206 = vpop.f32.mrb[0].mxu0
        %v1207 = vadd.f32 0.0, %v1206
        %v1208 = vpop.f32.mrb[0].mxu0
        %1209 = vmatprep.mubr.f32.mxu0 0.0
        %1210 = vmatmul.mubr.f32.gmra.mrb[0].mxu0 %v1138
        %v1211 = vpop.f32.mrb[0].mxu0
        %v1212 = vadd.f32 0.0, %v1211
        %v1213 = vpop.f32.mrb[0].mxu0
        %1214 = vdwg.mxu0
        %v1215 = vsub.f32 0.0, %v1207
        %v1216 = vsub.f32 0.0, %v1212
        %v1217 = vmul.f32 %v1128, %v1215
        %v1218 = vmul.f32 %v1129, %v1216
        %1219 = vmatprep.subr.mxu0 0.0
        %1220 = vmatpush1.msra.mxu0 %v1217
        %1221 = vmatprep.subr.mxu0 0.0
        %1222 = vmatpush1.msra.mxu0 %v1218
        %1223 = vmatprep.subr.mxu0 0.0
        %1224 = vmatpush1.msra.mxu0 0.0
        %1225 = vmatprep.subr.mxu0 0.0
        %1226 = vmatpush1.msra.mxu0 0.0
        %1227 = vmatprep.subr.mxu0 0.0
        %1228 = vmatpush1.msra.mxu0 0.0
        %1229 = vmatprep.subr.mxu0 0.0
        %1230 = vmatpush1.msra.mxu0 0.0
        %1231 = vmatprep.subr.mxu0 0.0
        %1232 = vmatpush1.msra.mxu0 0.0
        %1233 = vmatprep.subr.mxu0 0.0
        %1234 = vmatpush1.msra.mxu0 0.0
        %1235 = vmatprep.subr.mxu0 0.0
        %1236 = vmatpush1.msra.mxu0 0.0
        %1237 = vmatprep.subr.mxu0 0.0
        %1238 = vmatpush1.msra.mxu0 0.0
        %1239 = vmatprep.subr.mxu0 0.0
        %1240 = vmatpush1.msra.mxu0 0.0
        %1241 = vmatprep.subr.mxu0 0.0
        %1242 = vmatpush1.msra.mxu0 0.0
        %1243 = vmatprep.subr.mxu0 0.0
        %1244 = vmatpush1.msra.mxu0 0.0
        %1245 = vmatprep.subr.mxu0 0.0
        %1246 = vmatpush1.msra.mxu0 0.0
        %1247 = vmatprep.subr.mxu0 0.0
        %1248 = vmatpush1.msra.mxu0 0.0
        %1249 = vmatprep.subr.mxu0 0.0
        %1250 = vmatpush1.msra.mxu0 0.0
        %1251 = vmatprep.subr.mxu0 0.0
        %1252 = vmatpush1.msra.mxu0 0.0
        %1253 = vmatprep.subr.mxu0 0.0
        %1254 = vmatpush1.msra.mxu0 0.0
        %1255 = vmatprep.subr.mxu0 0.0
        %1256 = vmatpush1.msra.mxu0 0.0
        %1257 = vmatprep.subr.mxu0 0.0
        %1258 = vmatpush1.msra.mxu0 0.0
        %1259 = vmatprep.subr.mxu0 0.0
        %1260 = vmatpush1.msra.mxu0 0.0
        %1261 = vmatprep.subr.mxu0 0.0
        %1262 = vmatpush1.msra.mxu0 0.0
        %1263 = vmatprep.subr.mxu0 0.0
        %1264 = vmatpush1.msra.mxu0 0.0
        %1265 = vmatprep.subr.mxu0 0.0
        %1266 = vmatpush1.msra.mxu0 0.0
        %1267 = vmatprep.subr.mxu0 0.0
        %1268 = vmatpush1.msra.mxu0 0.0
        %1269 = vmatprep.subr.mxu0 0.0
        %1270 = vmatpush1.msra.mxu0 0.0
        %1271 = vmatprep.subr.mxu0 0.0
        %1272 = vmatpush1.msra.mxu0 0.0
        %1273 = vmatprep.subr.mxu0 0.0
        %1274 = vmatpush1.msra.mxu0 0.0
        %1275 = vmatprep.subr.mxu0 0.0
        %1276 = vmatpush1.msra.mxu0 0.0
        %1277 = vmatprep.subr.mxu0 0.0
        %1278 = vmatpush1.msra.mxu0 0.0
        %1279 = vmatprep.subr.mxu0 0.0
        %1280 = vmatpush1.msra.mxu0 0.0
        %1281 = vmatprep.subr.mxu0 0.0
        %1282 = vmatpush1.msra.mxu0 0.0
        %1283 = vmatprep.mubr.f32.mxu0 0.0
        %1284 = vmatmul.mubr.f32.gmra.mrb[0].mxu0 %v1135
        %v1285 = vpop.f32.mrb[0].mxu0
        %v1286 = vadd.f32 0.0, %v1285
        %v1287 = vpop.f32.mrb[0].mxu0
        %1288 = vmatprep.mubr.f32.mxu0 0.0
        %1289 = vmatmul.mubr.f32.gmra.mrb[0].mxu0 %v1138
        %v1290 = vpop.f32.mrb[0].mxu0
        %v1291 = vadd.f32 0.0, %v1290
        %v1292 = vpop.f32.mrb[0].mxu0
        %1293 = vdwg.mxu0
        %v1294 = vmul.f32 %v1286, -2.0
        %v1295 = vmul.f32 %v1291, -2.0
        %v1296 = vsub.f32 %v1294, %v850
        %v1297 = vsub.f32 %v1295, %v851
        %1300 = vrot.lane.b32.xlu0 %v1215, 8
        %v1301 = vpop.permute.xlu0 %1300
        %1302 = vrot.lane.b32.xlu0 %v1216, 8
        %v1303 = vpop.permute.xlu0 %1302
        %1308 = vrot.lane.b32.xlu0 %v1296, 16
        %v1309 = vpop.permute.xlu0 %1308
        %1310 = vrot.lane.b32.xlu0 %v1297, 16
        %v1311 = vpop.permute.xlu0 %1310
        %v1314 = vsel %vm875, %v850, %v1301
        %v1315 = vsel %vm875, %v851, %v1303
        %v1316 = vsel %vm980, %v1314, %v1309
        %v1317 = vsel %vm980, %v1315, %v1311
        %v1319 = vlaneseq
        %v1320 = vshrl.u32 %v1319, 7
        %v1321 = vsub.s32 0, %v1320
        %v1322 = vrot.slane %v862, %v1321
        %vm1324 = vcmask 195584
        %v1326 = vsel %vm1324, %v1316, 0
        %v1329 = vsel %vm1324, %v1317, 0
        %1331 = vmatprep.subr.mxu0 0.0
        %1332 = vmatpush1.msra.mxu0 %v859
        %1333 = vmatprep.subr.mxu0 0.0
        %1334 = vmatpush1.msra.mxu0 %v860
        %1335 = vmatprep.subr.mxu0 0.0
        %1336 = vmatpush1.msra.mxu0 %v861
        %1337 = vmatprep.subr.mxu0 0.0
        %1338 = vmatpush1.msra.mxu0 0.0
        %1339 = vmatprep.subr.mxu0 0.0
        %1340 = vmatpush1.msra.mxu0 0.0
        %1341 = vmatprep.subr.mxu0 0.0
        %1342 = vmatpush1.msra.mxu0 0.0
        %1343 = vmatprep.subr.mxu0 0.0
        %1344 = vmatpush1.msra.mxu0 0.0
        %1345 = vmatprep.subr.mxu0 0.0
        %1346 = vmatpush1.msra.mxu0 0.0
        %1347 = vmatprep.subr.mxu0 0.0
        %1348 = vmatpush1.msra.mxu0 0.0
        %1349 = vmatprep.subr.mxu0 0.0
        %1350 = vmatpush1.msra.mxu0 0.0
        %1351 = vmatprep.subr.mxu0 0.0
        %1352 = vmatpush1.msra.mxu0 0.0
        %1353 = vmatprep.subr.mxu0 0.0
        %1354 = vmatpush1.msra.mxu0 0.0
        %1355 = vmatprep.subr.mxu0 0.0
        %1356 = vmatpush1.msra.mxu0 0.0
        %1357 = vmatprep.subr.mxu0 0.0
        %1358 = vmatpush1.msra.mxu0 0.0
        %1359 = vmatprep.subr.mxu0 0.0
        %1360 = vmatpush1.msra.mxu0 0.0
        %1361 = vmatprep.subr.mxu0 0.0
        %1362 = vmatpush1.msra.mxu0 0.0
        %1363 = vmatprep.subr.mxu0 0.0
        %1364 = vmatpush1.msra.mxu0 0.0
        %1365 = vmatprep.subr.mxu0 0.0
        %1366 = vmatpush1.msra.mxu0 0.0
        %1367 = vmatprep.subr.mxu0 0.0
        %1368 = vmatpush1.msra.mxu0 0.0
        %1369 = vmatprep.subr.mxu0 0.0
        %1370 = vmatpush1.msra.mxu0 0.0
        %1371 = vmatprep.subr.mxu0 0.0
        %1372 = vmatpush1.msra.mxu0 0.0
        %1373 = vmatprep.subr.mxu0 0.0
        %1374 = vmatpush1.msra.mxu0 0.0
        %1375 = vmatprep.subr.mxu0 0.0
        %1376 = vmatpush1.msra.mxu0 0.0
        %1377 = vmatprep.subr.mxu0 0.0
        %1378 = vmatpush1.msra.mxu0 0.0
        %1379 = vmatprep.subr.mxu0 0.0
        %1380 = vmatpush1.msra.mxu0 0.0
        %1381 = vmatprep.subr.mxu0 0.0
        %1382 = vmatpush1.msra.mxu0 0.0
        %1383 = vmatprep.subr.mxu0 0.0
        %1384 = vmatpush1.msra.mxu0 0.0
        %1385 = vmatprep.subr.mxu0 0.0
        %1386 = vmatpush1.msra.mxu0 0.0
        %1387 = vmatprep.subr.mxu0 0.0
        %1388 = vmatpush1.msra.mxu0 0.0
        %1389 = vmatprep.subr.mxu0 0.0
        %1390 = vmatpush1.msra.mxu0 0.0
        %1391 = vmatprep.subr.mxu0 0.0
        %1392 = vmatpush1.msra.mxu0 0.0
        %1393 = vmatprep.subr.mxu0 0.0
        %1394 = vmatpush1.msra.mxu0 0.0
        %1395 = vmatprep.mubr.f32.mxu0 0.0
        %1396 = vmatmul.mubr.f32.gmra.mrb[0].mxu0 %v1326
        %v1397 = vpop.f32.mrb[0].mxu0
        %v1398 = vadd.f32 %v1322, %v1397
        %v1399 = vpop.f32.mrb[0].mxu0
        %1400 = vmatprep.mubr.f32.mxu0 0.0
        %1401 = vmatmul.mubr.f32.gmra.mrb[0].mxu0 %v1329
        %v1402 = vpop.f32.mrb[0].mxu0
        %v1403 = vadd.f32 %v1322, %v1402
        %v1404 = vpop.f32.mrb[0].mxu0
        %1405 = vdwg.mxu0
        %v1406 = vmax.f32 %v1398, 0.0
        %v1407 = vmax.f32 %v1403, 0.0
        %vm1408 = vcmask 1048064
        %1409 = vrot.lane.b32.xlu0 %v1406, 64
        %v1410 = vpop.permute.xlu0 %1409
        %v1411 = vsel %vm1408, %v1410, %v1406
        %1412 = vrot.lane.b32.xlu0 %v1407, 64
        %v1413 = vpop.permute.xlu0 %1412
        %v1414 = vsel %vm1408, %v1413, %v1407
        %1415 = vrot.lane.b32.xlu0 %v1411, 64
        %v1416 = vpop.permute.xlu0 %1415
        %1417 = vrot.lane.b32.xlu0 %v1414, 64
        %v1418 = vpop.permute.xlu0 %1417
        %v1419 = vsel %vm1408, %v1416, %v1406
        %v1420 = vsel %vm1408, %v1418, %v1407
        %1423 = vrot.lane.b32.xlu0 %v1419, 65
        %v1424 = vpop.permute.xlu0 %1423
        %1425 = vrot.lane.b32.xlu0 %v1420, 65
        %v1426 = vpop.permute.xlu0 %1425
        %v1429 = vsel %vm847, 0.0, %v1424
        %v1430 = vsel %vm847, 0.0, %v1426
        %1431 = vrot.lane.b32.xlu0 %v1419, 127
        %v1432 = vpop.permute.xlu0 %1431
        %1433 = vrot.lane.b32.xlu0 %v1420, 127
        %v1434 = vpop.permute.xlu0 %1433
        %v1437 = vsel %vm848, 0.0, %v1432
        %v1438 = vsel %vm848, 0.0, %v1434
        %v1439 = vstv %s863
        %v1440 = vmul.f32 %v1439, %v1429
        %v1441 = vmul.f32 %v1439, %v1430
        %v1442 = vstv %s864
        %v1443 = vmul.f32 %v1442, %v1406
        %v1444 = vmul.f32 %v1442, %v1407
        %v1445 = vadd.f32 %v1440, %v1443
        %v1446 = vadd.f32 %v1441, %v1444
        %v1447 = vstv %s865
        %v1448 = vmul.f32 %v1447, %v1437
        %v1449 = vmul.f32 %v1447, %v1438
        %v1450 = vadd.f32 %v1445, %v1448
        %v1451 = vadd.f32 %v1446, %v1449
        %v1452 = vstv %s866
        %v1453 = vadd.f32 %v1450, %v1452
        %v1454 = vadd.f32 %v1451, %v1452
        %v1455 = vmax.f32 %v1453, 0.0
        %v1456 = vmax.f32 %v1454, 0.0
        %v1457 = vld [vmem:[%s11] sm:$0xff]
        %v1458 = vld [vmem:[%s11 + $0x8] sm:$0xff]
        %v1459 = vld [vmem:[%s12] sm:$0xff]
        %v1460 = vld [vmem:[%s12 + $0x8] sm:$0xff]
        %v1461 = vld [vmem:[%s13] sm:$0x1]
        %v1462 = vld [vmem:[%s14] sm:$0x1]
        %s1463 = sld [smem:[#allocation8]]
        %v1464 = vld [vmem:[%s16] sm:$0xff]
        %v1465 = vld [vmem:[%s16 + $0x8] sm:$0xff]
        %v1466 = vld [vmem:[%s16 + $0x10] sm:$0xff]
        %v1467 = vld [vmem:[%s16 + $0x18] sm:$0xff]
        %v1468 = vld [vmem:[%s16 + $0x20] sm:$0xff]
        %v1469 = vld [vmem:[%s16 + $0x28] sm:$0xff]
        %v1470 = vld [vmem:[%s16 + $0x30] sm:$0xff]
        %v1471 = vld [vmem:[%s16 + $0x38] sm:$0xff]
        %v1472 = vld [vmem:[%s16 + $0x40] sm:$0xff]
        %v1473 = vld [vmem:[%s16 + $0x48] sm:$0xff]
        %v1474 = vld [vmem:[%s16 + $0x50] sm:$0xff]
        %v1475 = vld [vmem:[%s16 + $0x58] sm:$0xff]
        %v1476 = vld [vmem:[%s16 + $0x60] sm:$0xff]
        %v1477 = vld [vmem:[%s16 + $0x68] sm:$0xff]
        %v1478 = vld [vmem:[%s16 + $0x70] sm:$0xff]
        %v1479 = vld [vmem:[%s16 + $0x78] sm:$0xff]
        %v1480 = vld [vmem:[%s16 + $0x80] sm:$0xff]
        %v1481 = vld [vmem:[%s16 + $0x88] sm:$0xff]
        %v1482 = vld [vmem:[%s16 + $0x90] sm:$0xff]
        %v1483 = vld [vmem:[%s16 + $0x98] sm:$0xff]
        %v1484 = vld [vmem:[%s16 + $0xa0] sm:$0xff]
        %v1485 = vld [vmem:[%s16 + $0xa8] sm:$0xff]
        %v1486 = vld [vmem:[%s16 + $0xb0] sm:$0xff]
        %v1487 = vld [vmem:[%s16 + $0xb8] sm:$0xff]
        %v1488 = vld [vmem:[%s17] sm:$0x1]
        %s1489 = sld [smem:[#allocation10]]
        %s1490 = sld [smem:[#allocation10 + $0x1]]
        %s1491 = sld [smem:[#allocation10 + $0x2]]
        %s1492 = sld [smem:[#allocation11]]
        %v1494 = vlaneseq
        %v1495 = vshrl.u32 %v1494, 7
        %v1496 = vsub.s32 0, %v1495
        %v1497 = vrot.slane %v1461, %v1496
        %v1499 = vmul.f32 %v1455, %v1497
        %v1500 = vmul.f32 %v1456, %v1497
        %vm1501 = vcmask 523264
        %v1502 = vsel %vm1501, %v1499, 0.0
        %1503 = vadd.xlane.f32.xlu0 %v1502
        %v1504 = vpop.xlane.xlu0 %1503
        %v1505 = vsel %vm1501, %v1500, 0.0
        %1506 = vadd.xlane.f32.xlu0 %v1505
        %v1507 = vpop.xlane.xlu0 %1506
        %v1509 = vlaneseq
        %v1510 = vshrl.u32 %v1509, 7
        %v1511 = vsub.s32 0, %v1510
        %v1512 = vrot.slane %v1462, %v1511
        %v1514 = vmul.f32 %v1504, %v1512
        %v1515 = vmul.f32 %v1507, %v1512
        %v1516 = vstv %s1463
        %v1517 = vmul.f32 %v1516, %v1455
        %v1518 = vmul.f32 %v1516, %v1456
        %v1520 = vsel %vm1501, %v1514, 0
        %v1523 = vsel %vm1501, %v1515, 0
        %v1526 = vsel %vm1501, %v1517, 0
        %v1529 = vsel %vm1501, %v1518, 0
        %1531 = vmatprep.subr.mxu0 0.0
        %1532 = vmatpush1.xpose.msra.mxu0 %v1526
        %1533 = vmatprep.subr.mxu0 0.0
        %1534 = vmatpush1.xpose.msra.mxu0 %v1529
        %1535 = vmatprep.subr.mxu0 0.0
        %1536 = vmatpush1.xpose.msra.mxu0 0.0
        %1537 = vmatprep.subr.mxu0 0.0
        %1538 = vmatpush1.xpose.msra.mxu0 0.0
        %1539 = vmatprep.subr.mxu0 0.0
        %1540 = vmatpush1.xpose.msra.mxu0 0.0
        %1541 = vmatprep.subr.mxu0 0.0
        %1542 = vmatpush1.xpose.msra.mxu0 0.0
        %1543 = vmatprep.subr.mxu0 0.0
        %1544 = vmatpush1.xpose.msra.mxu0 0.0
        %1545 = vmatprep.subr.mxu0 0.0
        %1546 = vmatpush1.xpose.msra.mxu0 0.0
        %1547 = vmatprep.subr.mxu0 0.0
        %1548 = vmatpush1.xpose.msra.mxu0 0.0
        %1549 = vmatprep.subr.mxu0 0.0
        %1550 = vmatpush1.xpose.msra.mxu0 0.0
        %1551 = vmatprep.subr.mxu0 0.0
        %1552 = vmatpush1.xpose.msra.mxu0 0.0
        %1553 = vmatprep.subr.mxu0 0.0
        %1554 = vmatpush1.xpose.msra.mxu0 0.0
        %1555 = vmatprep.subr.mxu0 0.0
        %1556 = vmatpush1.xpose.msra.mxu0 0.0
        %1557 = vmatprep.subr.mxu0 0.0
        %1558 = vmatpush1.xpose.msra.mxu0 0.0
        %1559 = vmatprep.subr.mxu0 0.0
        %1560 = vmatpush1.xpose.msra.mxu0 0.0
        %1561 = vmatprep.subr.mxu0 0.0
        %1562 = vmatpush1.xpose.msra.mxu0 0.0
        %1563 = vmatprep.subr.mxu0 0.0
        %1564 = vmatpush1.xpose.msra.mxu0 0.0
        %1565 = vmatprep.subr.mxu0 0.0
        %1566 = vmatpush1.xpose.msra.mxu0 0.0
        %1567 = vmatprep.subr.mxu0 0.0
        %1568 = vmatpush1.xpose.msra.mxu0 0.0
        %1569 = vmatprep.subr.mxu0 0.0
        %1570 = vmatpush1.xpose.msra.mxu0 0.0
        %1571 = vmatprep.subr.mxu0 0.0
        %1572 = vmatpush1.xpose.msra.mxu0 0.0
        %1573 = vmatprep.subr.mxu0 0.0
        %1574 = vmatpush1.xpose.msra.mxu0 0.0
        %1575 = vmatprep.subr.mxu0 0.0
        %1576 = vmatpush1.xpose.msra.mxu0 0.0
        %1577 = vmatprep.subr.mxu0 0.0
        %1578 = vmatpush1.xpose.msra.mxu0 0.0
        %1579 = vmatprep.subr.mxu0 0.0
        %1580 = vmatpush1.xpose.msra.mxu0 0.0
        %1581 = vmatprep.subr.mxu0 0.0
        %1582 = vmatpush1.xpose.msra.mxu0 0.0
        %1583 = vmatprep.subr.mxu0 0.0
        %1584 = vmatpush1.xpose.msra.mxu0 0.0
        %1585 = vmatprep.subr.mxu0 0.0
        %1586 = vmatpush1.xpose.msra.mxu0 0.0
        %1587 = vmatprep.subr.mxu0 0.0
        %1588 = vmatpush1.xpose.msra.mxu0 0.0
        %1589 = vmatprep.subr.mxu0 0.0
        %1590 = vmatpush1.xpose.msra.mxu0 0.0
        %1591 = vmatprep.subr.mxu0 0.0
        %1592 = vmatpush1.xpose.msra.mxu0 0.0
        %1593 = vmatprep.subr.mxu0 0.0
        %1594 = vmatpush1.xpose.msra.mxu0 0.0
        %1595 = vmatprep.mubr.f32.mxu0 0.0
        %1596 = vmatmul.mubr.f32.gmra.mrb[0].mxu0 %v1520
        %v1597 = vpop.f32.mrb[0].mxu0
        %v1598 = vadd.f32 %v1459, %v1597
        %v1599 = vpop.f32.mrb[0].mxu0
        %1600 = vmatprep.mubr.f32.mxu0 0.0
        %1601 = vmatmul.mubr.f32.gmra.mrb[0].mxu0 %v1523
        %v1602 = vpop.f32.mrb[0].mxu0
        %v1603 = vadd.f32 %v1460, %v1602
        %v1604 = vpop.f32.mrb[0].mxu0
        %1605 = vdwg.mxu0
        %v1606 = vsel %vm980, %v1598, -inf
        %v1607 = vsel %vm980, %v1603, -inf
        %v1608 = vmax.f32 %v1606, %v1607
        %v1609 = vrot.slane %v1608, 4
        %v1610 = vmax.f32 %v1608, %v1609
        %v1611 = vrot.slane %v1610, 2
        %v1612 = vmax.f32 %v1610, %v1611
        %v1613 = vrot.slane %v1612, 1
        %v1614 = vmax.f32 %v1612, %v1613
        %v1615 = vsub.f32 %v1598, %v1614
        %v1616 = vsub.f32 %v1603, %v1614
        %v1617 = vmul.f32 %v1615, 1.442695
        %v1618 = vpow.pop %v1617
        %v1619 = vmul.f32 %v1616, 1.442695
        %v1620 = vpow.pop %v1619
        %v1621 = vsel %vm980, %v1618, 0.0
        %v1622 = vsel %vm980, %v1620, 0.0
        %v1623 = vadd.f32 %v1621, %v1622
        %v1624 = vrot.slane %v1623, 4
        %v1625 = vadd.f32 %v1623, %v1624
        %v1626 = vrot.slane %v1625, 2
        %v1627 = vadd.f32 %v1625, %v1626
        %v1628 = vrot.slane %v1627, 1
        %v1629 = vadd.f32 %v1627, %v1628
        %v1630 = vrcp.pop %v1629
        %v1631 = vmul.f32 %v1618, %v1630
        %v1632 = vmul.f32 %v1620, %v1630
        %v1634 = vsel %vm980, %v1457, 0
        %v1637 = vsel %vm980, %v1458, 0
        %1639 = vmatprep.subr.mxu0 0.0
        %1640 = vmatpush1.msra.mxu0 %v1631
        %1641 = vmatprep.subr.mxu0 0.0
        %1642 = vmatpush1.msra.mxu0 %v1632
        %1643 = vmatprep.subr.mxu0 0.0
        %1644 = vmatpush1.msra.mxu0 0.0
        %1645 = vmatprep.subr.mxu0 0.0
        %1646 = vmatpush1.msra.mxu0 0.0
        %1647 = vmatprep.subr.mxu0 0.0
        %1648 = vmatpush1.msra.mxu0 0.0
        %1649 = vmatprep.subr.mxu0 0.0
        %1650 = vmatpush1.msra.mxu0 0.0
        %1651 = vmatprep.subr.mxu0 0.0
        %1652 = vmatpush1.msra.mxu0 0.0
        %1653 = vmatprep.subr.mxu0 0.0
        %1654 = vmatpush1.msra.mxu0 0.0
        %1655 = vmatprep.subr.mxu0 0.0
        %1656 = vmatpush1.msra.mxu0 0.0
        %1657 = vmatprep.subr.mxu0 0.0
        %1658 = vmatpush1.msra.mxu0 0.0
        %1659 = vmatprep.subr.mxu0 0.0
        %1660 = vmatpush1.msra.mxu0 0.0
        %1661 = vmatprep.subr.mxu0 0.0
        %1662 = vmatpush1.msra.mxu0 0.0
        %1663 = vmatprep.subr.mxu0 0.0
        %1664 = vmatpush1.msra.mxu0 0.0
        %1665 = vmatprep.subr.mxu0 0.0
        %1666 = vmatpush1.msra.mxu0 0.0
        %1667 = vmatprep.subr.mxu0 0.0
        %1668 = vmatpush1.msra.mxu0 0.0
        %1669 = vmatprep.subr.mxu0 0.0
        %1670 = vmatpush1.msra.mxu0 0.0
        %1671 = vmatprep.subr.mxu0 0.0
        %1672 = vmatpush1.msra.mxu0 0.0
        %1673 = vmatprep.subr.mxu0 0.0
        %1674 = vmatpush1.msra.mxu0 0.0
        %1675 = vmatprep.subr.mxu0 0.0
        %1676 = vmatpush1.msra.mxu0 0.0
        %1677 = vmatprep.subr.mxu0 0.0
        %1678 = vmatpush1.msra.mxu0 0.0
        %1679 = vmatprep.subr.mxu0 0.0
        %1680 = vmatpush1.msra.mxu0 0.0
        %1681 = vmatprep.subr.mxu0 0.0
        %1682 = vmatpush1.msra.mxu0 0.0
        %1683 = vmatprep.subr.mxu0 0.0
        %1684 = vmatpush1.msra.mxu0 0.0
        %1685 = vmatprep.subr.mxu0 0.0
        %1686 = vmatpush1.msra.mxu0 0.0
        %1687 = vmatprep.subr.mxu0 0.0
        %1688 = vmatpush1.msra.mxu0 0.0
        %1689 = vmatprep.subr.mxu0 0.0
        %1690 = vmatpush1.msra.mxu0 0.0
        %1691 = vmatprep.subr.mxu0 0.0
        %1692 = vmatpush1.msra.mxu0 0.0
        %1693 = vmatprep.subr.mxu0 0.0
        %1694 = vmatpush1.msra.mxu0 0.0
        %1695 = vmatprep.subr.mxu0 0.0
        %1696 = vmatpush1.msra.mxu0 0.0
        %1697 = vmatprep.subr.mxu0 0.0
        %1698 = vmatpush1.msra.mxu0 0.0
        %1699 = vmatprep.subr.mxu0 0.0
        %1700 = vmatpush1.msra.mxu0 0.0
        %1701 = vmatprep.subr.mxu0 0.0
        %1702 = vmatpush1.msra.mxu0 0.0
        %1703 = vmatprep.mubr.f32.mxu0 0.0
        %1704 = vmatmul.mubr.f32.gmra.mrb[0].mxu0 %v1634
        %v1705 = vpop.f32.mrb[0].mxu0
        %v1706 = vadd.f32 0.0, %v1705
        %v1707 = vpop.f32.mrb[0].mxu0
        %1708 = vmatprep.mubr.f32.mxu0 0.0
        %1709 = vmatmul.mubr.f32.gmra.mrb[0].mxu0 %v1637
        %v1710 = vpop.f32.mrb[0].mxu0
        %v1711 = vadd.f32 0.0, %v1710
        %v1712 = vpop.f32.mrb[0].mxu0
        %1713 = vdwg.mxu0
        %v1714 = vsel %vm980, %v1706, -inf
        %v1715 = vsel %vm980, %v1711, -inf
        %v1716 = vmax.f32 %v1714, %v1715
        %v1717 = vrot.slane %v1716, 4
        %v1718 = vmax.f32 %v1716, %v1717
        %v1719 = vrot.slane %v1718, 2
        %v1720 = vmax.f32 %v1718, %v1719
        %v1721 = vrot.slane %v1720, 1
        %v1722 = vmax.f32 %v1720, %v1721
        %v1723 = vsub.f32 %v1706, %v1722
        %v1724 = vsub.f32 %v1711, %v1722
        %v1725 = vmul.f32 %v1723, 1.442695
        %v1726 = vpow.pop %v1725
        %v1727 = vmul.f32 %v1724, 1.442695
        %v1728 = vpow.pop %v1727
        %v1729 = vsel %vm980, %v1726, 0.0
        %v1730 = vsel %vm980, %v1728, 0.0
        %v1731 = vadd.f32 %v1729, %v1730
        %v1732 = vrot.slane %v1731, 4
        %v1733 = vadd.f32 %v1731, %v1732
        %v1734 = vrot.slane %v1733, 2
        %v1735 = vadd.f32 %v1733, %v1734
        %v1736 = vrot.slane %v1735, 1
        %v1737 = vadd.f32 %v1735, %v1736
        %v1738 = vrcp.pop %v1737
        %v1739 = vmul.f32 %v1726, %v1738
        %v1740 = vmul.f32 %v1728, %v1738
        %v1741 = vmul.f32 %v843, %v1739
        %v1742 = vmul.f32 %v844, %v1740
        %v1743 = vsel %vm980, %v1741, 0.0
        %1744 = vadd.xlane.f32.xlu0 %v1743
        %v1745 = vpop.xlane.xlu0 %1744
        %v1746 = vsel %vm980, %v1742, 0.0
        %1747 = vadd.xlane.f32.xlu0 %v1746
        %v1748 = vpop.xlane.xlu0 %1747
        %vm1749 = vcmp.gt.f32.partialorder %v1745, 0.0
        %vm1750 = vcmp.gt.f32.partialorder %v1748, 0.0
        %v1751 = vrsqrt.pop %v1745
        %v1752 = vrsqrt.pop %v1748
        %v1753 = vsel %vm1749, %v1751, 0.0
        %v1754 = vsel %vm1750, %v1752, 0.0
        %v1755 = vmul.f32 %v1753, %v1741
        %v1756 = vmul.f32 %v1754, %v1742
        %v1757 = vmul.f32 %v1753, %v1455
        %v1758 = vmul.f32 %v1754, %v1456
        %v1760 = vsel %vm980, %v1755, 0
        %v1763 = vsel %vm980, %v1756, 0
        %1765 = vmatprep.subr.mxu0 0.0
        %1766 = vmatpush1.msra.mxu0 %v1757
        %1767 = vmatprep.subr.mxu0 0.0
        %1768 = vmatpush1.msra.mxu0 %v1758
        %1769 = vmatprep.subr.mxu0 0.0
        %1770 = vmatpush1.msra.mxu0 0.0
        %1771 = vmatprep.subr.mxu0 0.0
        %1772 = vmatpush1.msra.mxu0 0.0
        %1773 = vmatprep.subr.mxu0 0.0
        %1774 = vmatpush1.msra.mxu0 0.0
        %1775 = vmatprep.subr.mxu0 0.0
        %1776 = vmatpush1.msra.mxu0 0.0
        %1777 = vmatprep.subr.mxu0 0.0
        %1778 = vmatpush1.msra.mxu0 0.0
        %1779 = vmatprep.subr.mxu0 0.0
        %1780 = vmatpush1.msra.mxu0 0.0
        %1781 = vmatprep.subr.mxu0 0.0
        %1782 = vmatpush1.msra.mxu0 0.0
        %1783 = vmatprep.subr.mxu0 0.0
        %1784 = vmatpush1.msra.mxu0 0.0
        %1785 = vmatprep.subr.mxu0 0.0
        %1786 = vmatpush1.msra.mxu0 0.0
        %1787 = vmatprep.subr.mxu0 0.0
        %1788 = vmatpush1.msra.mxu0 0.0
        %1789 = vmatprep.subr.mxu0 0.0
        %1790 = vmatpush1.msra.mxu0 0.0
        %1791 = vmatprep.subr.mxu0 0.0
        %1792 = vmatpush1.msra.mxu0 0.0
        %1793 = vmatprep.subr.mxu0 0.0
        %1794 = vmatpush1.msra.mxu0 0.0
        %1795 = vmatprep.subr.mxu0 0.0
        %1796 = vmatpush1.msra.mxu0 0.0
        %1797 = vmatprep.subr.mxu0 0.0
        %1798 = vmatpush1.msra.mxu0 0.0
        %1799 = vmatprep.subr.mxu0 0.0
        %1800 = vmatpush1.msra.mxu0 0.0
        %1801 = vmatprep.subr.mxu0 0.0
        %1802 = vmatpush1.msra.mxu0 0.0
        %1803 = vmatprep.subr.mxu0 0.0
        %1804 = vmatpush1.msra.mxu0 0.0
        %1805 = vmatprep.subr.mxu0 0.0
        %1806 = vmatpush1.msra.mxu0 0.0
        %1807 = vmatprep.subr.mxu0 0.0
        %1808 = vmatpush1.msra.mxu0 0.0
        %1809 = vmatprep.subr.mxu0 0.0
        %1810 = vmatpush1.msra.mxu0 0.0
        %1811 = vmatprep.subr.mxu0 0.0
        %1812 = vmatpush1.msra.mxu0 0.0
        %1813 = vmatprep.subr.mxu0 0.0
        %1814 = vmatpush1.msra.mxu0 0.0
        %1815 = vmatprep.subr.mxu0 0.0
        %1816 = vmatpush1.msra.mxu0 0.0
        %1817 = vmatprep.subr.mxu0 0.0
        %1818 = vmatpush1.msra.mxu0 0.0
        %1819 = vmatprep.subr.mxu0 0.0
        %1820 = vmatpush1.msra.mxu0 0.0
        %1821 = vmatprep.subr.mxu0 0.0
        %1822 = vmatpush1.msra.mxu0 0.0
        %1823 = vmatprep.subr.mxu0 0.0
        %1824 = vmatpush1.msra.mxu0 0.0
        %1825 = vmatprep.subr.mxu0 0.0
        %1826 = vmatpush1.msra.mxu0 0.0
        %1827 = vmatprep.subr.mxu0 0.0
        %1828 = vmatpush1.msra.mxu0 0.0
        %1829 = vmatprep.mubr.f32.mxu0 0.0
        %1830 = vmatmul.mubr.f32.gmra.mrb[0].mxu0 %v1760
        %v1831 = vpop.f32.mrb[0].mxu0
        %v1832 = vadd.f32 0.0, %v1831
        %v1833 = vpop.f32.mrb[0].mxu0
        %1834 = vmatprep.mubr.f32.mxu0 0.0
        %1835 = vmatmul.mubr.f32.gmra.mrb[0].mxu0 %v1763
        %v1836 = vpop.f32.mrb[0].mxu0
        %v1837 = vadd.f32 0.0, %v1836
        %v1838 = vpop.f32.mrb[0].mxu0
        %1839 = vdwg.mxu0
        %v1840 = vsub.f32 0.0, %v1832
        %v1841 = vsub.f32 0.0, %v1837
        %v1842 = vmul.f32 %v1753, %v1840
        %v1843 = vmul.f32 %v1754, %v1841
        %1844 = vmatprep.subr.mxu0 0.0
        %1845 = vmatpush1.msra.mxu0 %v1842
        %1846 = vmatprep.subr.mxu0 0.0
        %1847 = vmatpush1.msra.mxu0 %v1843
        %1848 = vmatprep.subr.mxu0 0.0
        %1849 = vmatpush1.msra.mxu0 0.0
        %1850 = vmatprep.subr.mxu0 0.0
        %1851 = vmatpush1.msra.mxu0 0.0
        %1852 = vmatprep.subr.mxu0 0.0
        %1853 = vmatpush1.msra.mxu0 0.0
        %1854 = vmatprep.subr.mxu0 0.0
        %1855 = vmatpush1.msra.mxu0 0.0
        %1856 = vmatprep.subr.mxu0 0.0
        %1857 = vmatpush1.msra.mxu0 0.0
        %1858 = vmatprep.subr.mxu0 0.0
        %1859 = vmatpush1.msra.mxu0 0.0
        %1860 = vmatprep.subr.mxu0 0.0
        %1861 = vmatpush1.msra.mxu0 0.0
        %1862 = vmatprep.subr.mxu0 0.0
        %1863 = vmatpush1.msra.mxu0 0.0
        %1864 = vmatprep.subr.mxu0 0.0
        %1865 = vmatpush1.msra.mxu0 0.0
        %1866 = vmatprep.subr.mxu0 0.0
        %1867 = vmatpush1.msra.mxu0 0.0
        %1868 = vmatprep.subr.mxu0 0.0
        %1869 = vmatpush1.msra.mxu0 0.0
        %1870 = vmatprep.subr.mxu0 0.0
        %1871 = vmatpush1.msra.mxu0 0.0
        %1872 = vmatprep.subr.mxu0 0.0
        %1873 = vmatpush1.msra.mxu0 0.0
        %1874 = vmatprep.subr.mxu0 0.0
        %1875 = vmatpush1.msra.mxu0 0.0
        %1876 = vmatprep.subr.mxu0 0.0
        %1877 = vmatpush1.msra.mxu0 0.0
        %1878 = vmatprep.subr.mxu0 0.0
        %1879 = vmatpush1.msra.mxu0 0.0
        %1880 = vmatprep.subr.mxu0 0.0
        %1881 = vmatpush1.msra.mxu0 0.0
        %1882 = vmatprep.subr.mxu0 0.0
        %1883 = vmatpush1.msra.mxu0 0.0
        %1884 = vmatprep.subr.mxu0 0.0
        %1885 = vmatpush1.msra.mxu0 0.0
        %1886 = vmatprep.subr.mxu0 0.0
        %1887 = vmatpush1.msra.mxu0 0.0
        %1888 = vmatprep.subr.mxu0 0.0
        %1889 = vmatpush1.msra.mxu0 0.0
        %1890 = vmatprep.subr.mxu0 0.0
        %1891 = vmatpush1.msra.mxu0 0.0
        %1892 = vmatprep.subr.mxu0 0.0
        %1893 = vmatpush1.msra.mxu0 0.0
        %1894 = vmatprep.subr.mxu0 0.0
        %1895 = vmatpush1.msra.mxu0 0.0
        %1896 = vmatprep.subr.mxu0 0.0
        %1897 = vmatpush1.msra.mxu0 0.0
        %1898 = vmatprep.subr.mxu0 0.0
        %1899 = vmatpush1.msra.mxu0 0.0
        %1900 = vmatprep.subr.mxu0 0.0
        %1901 = vmatpush1.msra.mxu0 0.0
        %1902 = vmatprep.subr.mxu0 0.0
        %1903 = vmatpush1.msra.mxu0 0.0
        %1904 = vmatprep.subr.mxu0 0.0
        %1905 = vmatpush1.msra.mxu0 0.0
        %1906 = vmatprep.subr.mxu0 0.0
        %1907 = vmatpush1.msra.mxu0 0.0
        %1908 = vmatprep.mubr.f32.mxu0 0.0
        %1909 = vmatmul.mubr.f32.gmra.mrb[0].mxu0 %v1760
        %v1910 = vpop.f32.mrb[0].mxu0
        %v1911 = vadd.f32 0.0, %v1910
        %v1912 = vpop.f32.mrb[0].mxu0
        %1913 = vmatprep.mubr.f32.mxu0 0.0
        %1914 = vmatmul.mubr.f32.gmra.mrb[0].mxu0 %v1763
        %v1915 = vpop.f32.mrb[0].mxu0
        %v1916 = vadd.f32 0.0, %v1915
        %v1917 = vpop.f32.mrb[0].mxu0
        %1918 = vdwg.mxu0
        %v1919 = vmul.f32 %v1911, -2.0
        %v1920 = vmul.f32 %v1916, -2.0
        %v1921 = vsub.f32 %v1919, %v1455
        %v1922 = vsub.f32 %v1920, %v1456
        %1925 = vrot.lane.b32.xlu0 %v1840, 64
        %v1926 = vpop.permute.xlu0 %1925
        %1927 = vrot.lane.b32.xlu0 %v1841, 64
        %v1928 = vpop.permute.xlu0 %1927
        %v1931 = vsel %vm1501, %v1455, %v1926
        %v1932 = vsel %vm1501, %v1456, %v1928
        %v1934 = vlaneseq
        %v1935 = vshrl.u32 %v1934, 7
        %v1936 = vsub.s32 0, %v1935
        %v1937 = vrot.slane %v1488, %v1936
        %v1940 = vsel %vm1501, %v1921, 0
        %v1943 = vsel %vm1501, %v1922, 0
        %1945 = vmatprep.subr.mxu0 0.0
        %1946 = vmatpush1.msra.mxu0 %v1464
        %1947 = vmatprep.subr.mxu0 0.0
        %1948 = vmatpush1.msra.mxu0 %v1465
        %1949 = vmatprep.subr.mxu0 0.0
        %1950 = vmatpush1.msra.mxu0 %v1466
        %1951 = vmatprep.subr.mxu0 0.0
        %1952 = vmatpush1.msra.mxu0 %v1467
        %1953 = vmatprep.subr.mxu0 0.0
        %1954 = vmatpush1.msra.mxu0 %v1468
        %1955 = vmatprep.subr.mxu0 0.0
        %1956 = vmatpush1.msra.mxu0 %v1469
        %1957 = vmatprep.subr.mxu0 0.0
        %1958 = vmatpush1.msra.mxu0 %v1470
        %1959 = vmatprep.subr.mxu0 0.0
        %1960 = vmatpush1.msra.mxu0 %v1471
        %1961 = vmatprep.subr.mxu0 0.0
        %1962 = vmatpush1.msra.mxu0 %v1472
        %1963 = vmatprep.subr.mxu0 0.0
        %1964 = vmatpush1.msra.mxu0 %v1473
        %1965 = vmatprep.subr.mxu0 0.0
        %1966 = vmatpush1.msra.mxu0 %v1474
        %1967 = vmatprep.subr.mxu0 0.0
        %1968 = vmatpush1.msra.mxu0 %v1475
        %1969 = vmatprep.subr.mxu0 0.0
        %1970 = vmatpush1.msra.mxu0 %v1476
        %1971 = vmatprep.subr.mxu0 0.0
        %1972 = vmatpush1.msra.mxu0 %v1477
        %1973 = vmatprep.subr.mxu0 0.0
        %1974 = vmatpush1.msra.mxu0 %v1478
        %1975 = vmatprep.subr.mxu0 0.0
        %1976 = vmatpush1.msra.mxu0 %v1479
        %1977 = vmatprep.subr.mxu0 0.0
        %1978 = vmatpush1.msra.mxu0 %v1480
        %1979 = vmatprep.subr.mxu0 0.0
        %1980 = vmatpush1.msra.mxu0 %v1481
        %1981 = vmatprep.subr.mxu0 0.0
        %1982 = vmatpush1.msra.mxu0 %v1482
        %1983 = vmatprep.subr.mxu0 0.0
        %1984 = vmatpush1.msra.mxu0 %v1483
        %1985 = vmatprep.subr.mxu0 0.0
        %1986 = vmatpush1.msra.mxu0 %v1484
        %1987 = vmatprep.subr.mxu0 0.0
        %1988 = vmatpush1.msra.mxu0 %v1485
        %1989 = vmatprep.subr.mxu0 0.0
        %1990 = vmatpush1.msra.mxu0 %v1486
        %1991 = vmatprep.subr.mxu0 0.0
        %1992 = vmatpush1.msra.mxu0 %v1487
        %1993 = vmatprep.subr.mxu0 0.0
        %1994 = vmatpush1.msra.mxu0 0.0
        %1995 = vmatprep.subr.mxu0 0.0
        %1996 = vmatpush1.msra.mxu0 0.0
        %1997 = vmatprep.subr.mxu0 0.0
        %1998 = vmatpush1.msra.mxu0 0.0
        %1999 = vmatprep.subr.mxu0 0.0
        %2000 = vmatpush1.msra.mxu0 0.0
        %2001 = vmatprep.subr.mxu0 0.0
        %2002 = vmatpush1.msra.mxu0 0.0
        %2003 = vmatprep.subr.mxu0 0.0
        %2004 = vmatpush1.msra.mxu0 0.0
        %2005 = vmatprep.subr.mxu0 0.0
        %2006 = vmatpush1.msra.mxu0 0.0
        %2007 = vmatprep.subr.mxu0 0.0
        %2008 = vmatpush1.msra.mxu0 0.0
        %2009 = vmatprep.mubr.f32.mxu0 %v1940
        %2010 = vmatmul.mubr.f32.gmra.mrb[0].mxu0 %v1931
        %v2011 = vpop.f32.mrb[0].mxu0
        %v2012 = vadd.f32 %v1937, %v2011
        %v2013 = vpop.f32.mrb[0].mxu0
        %2014 = vmatprep.mubr.f32.mxu0 %v1943
        %2015 = vmatmul.mubr.f32.gmra.mrb[0].mxu0 %v1932
        %v2016 = vpop.f32.mrb[0].mxu0
        %v2017 = vadd.f32 %v1937, %v2016
        %v2018 = vpop.f32.mrb[0].mxu0
        %2019 = vdwg.mxu0
        %v2020 = vmax.f32 %v2012, 0.0
        %v2021 = vmax.f32 %v2017, 0.0
        %vm2022 = vcmask 1047808
        %2023 = vrot.lane.b32.xlu0 %v2020, 32
        %v2024 = vpop.permute.xlu0 %2023
        %v2025 = vsel %vm2022, %v2024, %v2020
        %2026 = vrot.lane.b32.xlu0 %v2021, 32
        %v2027 = vpop.permute.xlu0 %2026
        %v2028 = vsel %vm2022, %v2027, %v2021
        %2029 = vrot.lane.b32.xlu0 %v2025, 32
        %v2030 = vpop.permute.xlu0 %2029
        %2031 = vrot.lane.b32.xlu0 %v2028, 32
        %v2032 = vpop.permute.xlu0 %2031
        %v2033 = vsel %vm2022, %v2030, %v2020
        %v2034 = vsel %vm2022, %v2032, %v2021
        %2037 = vrot.lane.b32.xlu0 %v2033, 97
        %v2038 = vpop.permute.xlu0 %2037
        %2039 = vrot.lane.b32.xlu0 %v2034, 97
        %v2040 = vpop.permute.xlu0 %2039
        %v2043 = vsel %vm847, 0.0, %v2038
        %v2044 = vsel %vm847, 0.0, %v2040
        %2045 = vrot.lane.b32.xlu0 %v2033, 127
        %v2046 = vpop.permute.xlu0 %2045
        %2047 = vrot.lane.b32.xlu0 %v2034, 127
        %v2048 = vpop.permute.xlu0 %2047
        %v2051 = vsel %vm849, 0.0, %v2046
        %v2052 = vsel %vm849, 0.0, %v2048
        %v2053 = vstv %s1489
        %v2054 = vmul.f32 %v2053, %v2043
        %v2055 = vmul.f32 %v2053, %v2044
        %v2056 = vstv %s1490
        %v2057 = vmul.f32 %v2056, %v2020
        %v2058 = vmul.f32 %v2056, %v2021
        %v2059 = vadd.f32 %v2054, %v2057
        %v2060 = vadd.f32 %v2055, %v2058
        %v2061 = vstv %s1491
        %v2062 = vmul.f32 %v2061, %v2051
        %v2063 = vmul.f32 %v2061, %v2052
        %v2064 = vadd.f32 %v2059, %v2062
        %v2065 = vadd.f32 %v2060, %v2063
        %v2066 = vstv %s1492
        %v2067 = vadd.f32 %v2064, %v2066
        %v2068 = vadd.f32 %v2065, %v2066
        %v2069 = vmax.f32 %v2067, 0.0
        %v2070 = vmax.f32 %v2068, 0.0
        %s2071 = scalar_lea.vmem %s752, 16 [#allocation2]
        %v2072 = vld [vmem:[%s2071] sm:$0xff]
        %v2073 = vld [vmem:[%s2071 + $0x8] sm:$0xff]
        %s2074 = scalar_lea.vmem %s2, 16
        %v2075 = vld [vmem:[%s2074] sm:$0xff]
        %v2076 = vld [vmem:[%s2074 + $0x8] sm:$0xff]
        %s2077 = scalar_lea.vmem %s3, 16
        %v2078 = vld [vmem:[%s2077] sm:$0xff]
        %v2079 = vld [vmem:[%s2077 + $0x8] sm:$0xff]
        %s2080 = scalar_lea.vmem %s4, 1
        %v2081 = vld [vmem:[%s2080] sm:$0x1]
        %s2082 = scalar_lea.vmem %s5, 1
        %v2083 = vld [vmem:[%s2082] sm:$0x1]
        %s2084 = sld [smem:[#allocation3 + $0x1]]
        %s2085 = scalar_lea.vmem %s7, 24
        %v2086 = vld [vmem:[%s2085] sm:$0xff]
        %v2087 = vld [vmem:[%s2085 + $0x8] sm:$0xff]
        %v2088 = vld [vmem:[%s2085 + $0x10] sm:$0xff]
        %s2089 = scalar_lea.vmem %s8, 1
        %v2090 = vld [vmem:[%s2089] sm:$0x1]
        %s2091 = sld [smem:[#allocation5 + $0x80]]
        %s2092 = sld [smem:[#allocation5 + $0x81]]
        %s2093 = sld [smem:[#allocation5 + $0x82]]
        %s2094 = sld [smem:[#allocation7 + $0x1]]
        %v2096 = vlaneseq
        %v2097 = vshrl.u32 %v2096, 7
        %v2098 = vsub.s32 0, %v2097
        %v2099 = vrot.slane %v2081, %v2098
        %v2101 = vmul.f32 %v2072, %v2099
        %v2102 = vmul.f32 %v2073, %v2099
        %v2103 = vsel %vm875, %v2101, 0.0
        %2104 = vadd.xlane.f32.xlu0 %v2103
        %v2105 = vpop.xlane.xlu0 %2104
        %v2106 = vsel %vm875, %v2102, 0.0
        %2107 = vadd.xlane.f32.xlu0 %v2106
        %v2108 = vpop.xlane.xlu0 %2107
        %v2110 = vlaneseq
        %v2111 = vshrl.u32 %v2110, 7
        %v2112 = vsub.s32 0, %v2111
        %v2113 = vrot.slane %v2083, %v2112
        %v2115 = vmul.f32 %v2105, %v2113
        %v2116 = vmul.f32 %v2108, %v2113
        %v2117 = vstv %s2084
        %v2118 = vmul.f32 %v2117, %v2072
        %v2119 = vmul.f32 %v2117, %v2073
        %v2121 = vsel %vm875, %v2115, 0
        %v2124 = vsel %vm875, %v2116, 0
        %v2127 = vsel %vm875, %v2118, 0
        %v2130 = vsel %vm875, %v2119, 0
        %2132 = vmatprep.subr.mxu0 0.0
        %2133 = vmatpush1.xpose.msra.mxu0 %v2127
        %2134 = vmatprep.subr.mxu0 0.0
        %2135 = vmatpush1.xpose.msra.mxu0 %v2130
        %2136 = vmatprep.subr.mxu0 0.0
        %2137 = vmatpush1.xpose.msra.mxu0 0.0
        %2138 = vmatprep.subr.mxu0 0.0
        %2139 = vmatpush1.xpose.msra.mxu0 0.0
        %2140 = vmatprep.subr.mxu0 0.0
        %2141 = vmatpush1.xpose.msra.mxu0 0.0
        %2142 = vmatprep.subr.mxu0 0.0
        %2143 = vmatpush1.xpose.msra.mxu0 0.0
        %2144 = vmatprep.subr.mxu0 0.0
        %2145 = vmatpush1.xpose.msra.mxu0 0.0
        %2146 = vmatprep.subr.mxu0 0.0
        %2147 = vmatpush1.xpose.msra.mxu0 0.0
        %2148 = vmatprep.subr.mxu0 0.0
        %2149 = vmatpush1.xpose.msra.mxu0 0.0
        %2150 = vmatprep.subr.mxu0 0.0
        %2151 = vmatpush1.xpose.msra.mxu0 0.0
        %2152 = vmatprep.subr.mxu0 0.0
        %2153 = vmatpush1.xpose.msra.mxu0 0.0
        %2154 = vmatprep.subr.mxu0 0.0
        %2155 = vmatpush1.xpose.msra.mxu0 0.0
        %2156 = vmatprep.subr.mxu0 0.0
        %2157 = vmatpush1.xpose.msra.mxu0 0.0
        %2158 = vmatprep.subr.mxu0 0.0
        %2159 = vmatpush1.xpose.msra.mxu0 0.0
        %2160 = vmatprep.subr.mxu0 0.0
        %2161 = vmatpush1.xpose.msra.mxu0 0.0
        %2162 = vmatprep.subr.mxu0 0.0
        %2163 = vmatpush1.xpose.msra.mxu0 0.0
        %2164 = vmatprep.subr.mxu0 0.0
        %2165 = vmatpush1.xpose.msra.mxu0 0.0
        %2166 = vmatprep.subr.mxu0 0.0
        %2167 = vmatpush1.xpose.msra.mxu0 0.0
        %2168 = vmatprep.subr.mxu0 0.0
        %2169 = vmatpush1.xpose.msra.mxu0 0.0
        %2170 = vmatprep.subr.mxu0 0.0
        %2171 = vmatpush1.xpose.msra.mxu0 0.0
        %2172 = vmatprep.subr.mxu0 0.0
        %2173 = vmatpush1.xpose.msra.mxu0 0.0
        %2174 = vmatprep.subr.mxu0 0.0
        %2175 = vmatpush1.xpose.msra.mxu0 0.0
        %2176 = vmatprep.subr.mxu0 0.0
        %2177 = vmatpush1.xpose.msra.mxu0 0.0
        %2178 = vmatprep.subr.mxu0 0.0
        %2179 = vmatpush1.xpose.msra.mxu0 0.0
        %2180 = vmatprep.subr.mxu0 0.0
        %2181 = vmatpush1.xpose.msra.mxu0 0.0
        %2182 = vmatprep.subr.mxu0 0.0
        %2183 = vmatpush1.xpose.msra.mxu0 0.0
        %2184 = vmatprep.subr.mxu0 0.0
        %2185 = vmatpush1.xpose.msra.mxu0 0.0
        %2186 = vmatprep.subr.mxu0 0.0
        %2187 = vmatpush1.xpose.msra.mxu0 0.0
        %2188 = vmatprep.subr.mxu0 0.0
        %2189 = vmatpush1.xpose.msra.mxu0 0.0
        %2190 = vmatprep.subr.mxu0 0.0
        %2191 = vmatpush1.xpose.msra.mxu0 0.0
        %2192 = vmatprep.subr.mxu0 0.0
        %2193 = vmatpush1.xpose.msra.mxu0 0.0
        %2194 = vmatprep.subr.mxu0 0.0
        %2195 = vmatpush1.xpose.msra.mxu0 0.0
        %2196 = vmatprep.mubr.f32.mxu0 0.0
        %2197 = vmatmul.mubr.f32.gmra.mrb[0].mxu0 %v2121
        %v2198 = vpop.f32.mrb[0].mxu0
        %v2199 = vadd.f32 %v2078, %v2198
        %v2200 = vpop.f32.mrb[0].mxu0
        %2201 = vmatprep.mubr.f32.mxu0 0.0
        %2202 = vmatmul.mubr.f32.gmra.mrb[0].mxu0 %v2124
        %v2203 = vpop.f32.mrb[0].mxu0
        %v2204 = vadd.f32 %v2079, %v2203
        %v2205 = vpop.f32.mrb[0].mxu0
        %2206 = vdwg.mxu0
        %v2207 = vsel %vm980, %v2199, -inf
        %v2208 = vsel %vm980, %v2204, -inf
        %v2209 = vmax.f32 %v2207, %v2208
        %v2210 = vrot.slane %v2209, 4
        %v2211 = vmax.f32 %v2209, %v2210
        %v2212 = vrot.slane %v2211, 2
        %v2213 = vmax.f32 %v2211, %v2212
        %v2214 = vrot.slane %v2213, 1
        %v2215 = vmax.f32 %v2213, %v2214
        %v2216 = vsub.f32 %v2199, %v2215
        %v2217 = vsub.f32 %v2204, %v2215
        %v2218 = vmul.f32 %v2216, 1.442695
        %v2219 = vpow.pop %v2218
        %v2220 = vmul.f32 %v2217, 1.442695
        %v2221 = vpow.pop %v2220
        %v2222 = vsel %vm980, %v2219, 0.0
        %v2223 = vsel %vm980, %v2221, 0.0
        %v2224 = vadd.f32 %v2222, %v2223
        %v2225 = vrot.slane %v2224, 4
        %v2226 = vadd.f32 %v2224, %v2225
        %v2227 = vrot.slane %v2226, 2
        %v2228 = vadd.f32 %v2226, %v2227
        %v2229 = vrot.slane %v2228, 1
        %v2230 = vadd.f32 %v2228, %v2229
        %v2231 = vrcp.pop %v2230
        %v2232 = vmul.f32 %v2219, %v2231
        %v2233 = vmul.f32 %v2221, %v2231
        %v2235 = vsel %vm980, %v2075, 0
        %v2238 = vsel %vm980, %v2076, 0
        %2240 = vmatprep.subr.mxu0 0.0
        %2241 = vmatpush1.msra.mxu0 %v2232
        %2242 = vmatprep.subr.mxu0 0.0
        %2243 = vmatpush1.msra.mxu0 %v2233
        %2244 = vmatprep.subr.mxu0 0.0
        %2245 = vmatpush1.msra.mxu0 0.0
        %2246 = vmatprep.subr.mxu0 0.0
        %2247 = vmatpush1.msra.mxu0 0.0
        %2248 = vmatprep.subr.mxu0 0.0
        %2249 = vmatpush1.msra.mxu0 0.0
        %2250 = vmatprep.subr.mxu0 0.0
        %2251 = vmatpush1.msra.mxu0 0.0
        %2252 = vmatprep.subr.mxu0 0.0
        %2253 = vmatpush1.msra.mxu0 0.0
        %2254 = vmatprep.subr.mxu0 0.0
        %2255 = vmatpush1.msra.mxu0 0.0
        %2256 = vmatprep.subr.mxu0 0.0
        %2257 = vmatpush1.msra.mxu0 0.0
        %2258 = vmatprep.subr.mxu0 0.0
        %2259 = vmatpush1.msra.mxu0 0.0
        %2260 = vmatprep.subr.mxu0 0.0
        %2261 = vmatpush1.msra.mxu0 0.0
        %2262 = vmatprep.subr.mxu0 0.0
        %2263 = vmatpush1.msra.mxu0 0.0
        %2264 = vmatprep.subr.mxu0 0.0
        %2265 = vmatpush1.msra.mxu0 0.0
        %2266 = vmatprep.subr.mxu0 0.0
        %2267 = vmatpush1.msra.mxu0 0.0
        %2268 = vmatprep.subr.mxu0 0.0
        %2269 = vmatpush1.msra.mxu0 0.0
        %2270 = vmatprep.subr.mxu0 0.0
        %2271 = vmatpush1.msra.mxu0 0.0
        %2272 = vmatprep.subr.mxu0 0.0
        %2273 = vmatpush1.msra.mxu0 0.0
        %2274 = vmatprep.subr.mxu0 0.0
        %2275 = vmatpush1.msra.mxu0 0.0
        %2276 = vmatprep.subr.mxu0 0.0
        %2277 = vmatpush1.msra.mxu0 0.0
        %2278 = vmatprep.subr.mxu0 0.0
        %2279 = vmatpush1.msra.mxu0 0.0
        %2280 = vmatprep.subr.mxu0 0.0
        %2281 = vmatpush1.msra.mxu0 0.0
        %2282 = vmatprep.subr.mxu0 0.0
        %2283 = vmatpush1.msra.mxu0 0.0
        %2284 = vmatprep.subr.mxu0 0.0
        %2285 = vmatpush1.msra.mxu0 0.0
        %2286 = vmatprep.subr.mxu0 0.0
        %2287 = vmatpush1.msra.mxu0 0.0
        %2288 = vmatprep.subr.mxu0 0.0
        %2289 = vmatpush1.msra.mxu0 0.0
        %2290 = vmatprep.subr.mxu0 0.0
        %2291 = vmatpush1.msra.mxu0 0.0
        %2292 = vmatprep.subr.mxu0 0.0
        %2293 = vmatpush1.msra.mxu0 0.0
        %2294 = vmatprep.subr.mxu0 0.0
        %2295 = vmatpush1.msra.mxu0 0.0
        %2296 = vmatprep.subr.mxu0 0.0
        %2297 = vmatpush1.msra.mxu0 0.0
        %2298 = vmatprep.subr.mxu0 0.0
        %2299 = vmatpush1.msra.mxu0 0.0
        %2300 = vmatprep.subr.mxu0 0.0
        %2301 = vmatpush1.msra.mxu0 0.0
        %2302 = vmatprep.subr.mxu0 0.0
        %2303 = vmatpush1.msra.mxu0 0.0
        %2304 = vmatprep.mubr.f32.mxu0 0.0
        %2305 = vmatmul.mubr.f32.gmra.mrb[0].mxu0 %v2235
        %v2306 = vpop.f32.mrb[0].mxu0
        %v2307 = vadd.f32 0.0, %v2306
        %v2308 = vpop.f32.mrb[0].mxu0
        %2309 = vmatprep.mubr.f32.mxu0 0.0
        %2310 = vmatmul.mubr.f32.gmra.mrb[0].mxu0 %v2238
        %v2311 = vpop.f32.mrb[0].mxu0
        %v2312 = vadd.f32 0.0, %v2311
        %v2313 = vpop.f32.mrb[0].mxu0
        %2314 = vdwg.mxu0
        %v2315 = vsel %vm980, %v2307, -inf
        %v2316 = vsel %vm980, %v2312, -inf
        %v2317 = vmax.f32 %v2315, %v2316
        %v2318 = vrot.slane %v2317, 4
        %v2319 = vmax.f32 %v2317, %v2318
        %v2320 = vrot.slane %v2319, 2
        %v2321 = vmax.f32 %v2319, %v2320
        %v2322 = vrot.slane %v2321, 1
        %v2323 = vmax.f32 %v2321, %v2322
        %v2324 = vsub.f32 %v2307, %v2323
        %v2325 = vsub.f32 %v2312, %v2323
        %v2326 = vmul.f32 %v2324, 1.442695
        %v2327 = vpow.pop %v2326
        %v2328 = vmul.f32 %v2325, 1.442695
        %v2329 = vpow.pop %v2328
        %v2330 = vsel %vm980, %v2327, 0.0
        %v2331 = vsel %vm980, %v2329, 0.0
        %v2332 = vadd.f32 %v2330, %v2331
        %v2333 = vrot.slane %v2332, 4
        %v2334 = vadd.f32 %v2332, %v2333
        %v2335 = vrot.slane %v2334, 2
        %v2336 = vadd.f32 %v2334, %v2335
        %v2337 = vrot.slane %v2336, 1
        %v2338 = vadd.f32 %v2336, %v2337
        %v2339 = vrcp.pop %v2338
        %v2340 = vmul.f32 %v2327, %v2339
        %v2341 = vmul.f32 %v2329, %v2339
        %v2342 = vmul.f32 %v843, %v2340
        %v2343 = vmul.f32 %v844, %v2341
        %v2344 = vsel %vm980, %v2342, 0.0
        %2345 = vadd.xlane.f32.xlu0 %v2344
        %v2346 = vpop.xlane.xlu0 %2345
        %v2347 = vsel %vm980, %v2343, 0.0
        %2348 = vadd.xlane.f32.xlu0 %v2347
        %v2349 = vpop.xlane.xlu0 %2348
        %vm2350 = vcmp.gt.f32.partialorder %v2346, 0.0
        %vm2351 = vcmp.gt.f32.partialorder %v2349, 0.0
        %v2352 = vrsqrt.pop %v2346
        %v2353 = vrsqrt.pop %v2349
        %v2354 = vsel %vm2350, %v2352, 0.0
        %v2355 = vsel %vm2351, %v2353, 0.0
        %v2356 = vmul.f32 %v2354, %v2342
        %v2357 = vmul.f32 %v2355, %v2343
        %v2358 = vmul.f32 %v2354, %v2072
        %v2359 = vmul.f32 %v2355, %v2073
        %v2361 = vsel %vm980, %v2356, 0
        %v2364 = vsel %vm980, %v2357, 0
        %2366 = vmatprep.subr.mxu0 0.0
        %2367 = vmatpush1.msra.mxu0 %v2358
        %2368 = vmatprep.subr.mxu0 0.0
        %2369 = vmatpush1.msra.mxu0 %v2359
        %2370 = vmatprep.subr.mxu0 0.0
        %2371 = vmatpush1.msra.mxu0 0.0
        %2372 = vmatprep.subr.mxu0 0.0
        %2373 = vmatpush1.msra.mxu0 0.0
        %2374 = vmatprep.subr.mxu0 0.0
        %2375 = vmatpush1.msra.mxu0 0.0
        %2376 = vmatprep.subr.mxu0 0.0
        %2377 = vmatpush1.msra.mxu0 0.0
        %2378 = vmatprep.subr.mxu0 0.0
        %2379 = vmatpush1.msra.mxu0 0.0
        %2380 = vmatprep.subr.mxu0 0.0
        %2381 = vmatpush1.msra.mxu0 0.0
        %2382 = vmatprep.subr.mxu0 0.0
        %2383 = vmatpush1.msra.mxu0 0.0
        %2384 = vmatprep.subr.mxu0 0.0
        %2385 = vmatpush1.msra.mxu0 0.0
        %2386 = vmatprep.subr.mxu0 0.0
        %2387 = vmatpush1.msra.mxu0 0.0
        %2388 = vmatprep.subr.mxu0 0.0
        %2389 = vmatpush1.msra.mxu0 0.0
        %2390 = vmatprep.subr.mxu0 0.0
        %2391 = vmatpush1.msra.mxu0 0.0
        %2392 = vmatprep.subr.mxu0 0.0
        %2393 = vmatpush1.msra.mxu0 0.0
        %2394 = vmatprep.subr.mxu0 0.0
        %2395 = vmatpush1.msra.mxu0 0.0
        %2396 = vmatprep.subr.mxu0 0.0
        %2397 = vmatpush1.msra.mxu0 0.0
        %2398 = vmatprep.subr.mxu0 0.0
        %2399 = vmatpush1.msra.mxu0 0.0
        %2400 = vmatprep.subr.mxu0 0.0
        %2401 = vmatpush1.msra.mxu0 0.0
        %2402 = vmatprep.subr.mxu0 0.0
        %2403 = vmatpush1.msra.mxu0 0.0
        %2404 = vmatprep.subr.mxu0 0.0
        %2405 = vmatpush1.msra.mxu0 0.0
        %2406 = vmatprep.subr.mxu0 0.0
        %2407 = vmatpush1.msra.mxu0 0.0
        %2408 = vmatprep.subr.mxu0 0.0
        %2409 = vmatpush1.msra.mxu0 0.0
        %2410 = vmatprep.subr.mxu0 0.0
        %2411 = vmatpush1.msra.mxu0 0.0
        %2412 = vmatprep.subr.mxu0 0.0
        %2413 = vmatpush1.msra.mxu0 0.0
        %2414 = vmatprep.subr.mxu0 0.0
        %2415 = vmatpush1.msra.mxu0 0.0
        %2416 = vmatprep.subr.mxu0 0.0
        %2417 = vmatpush1.msra.mxu0 0.0
        %2418 = vmatprep.subr.mxu0 0.0
        %2419 = vmatpush1.msra.mxu0 0.0
        %2420 = vmatprep.subr.mxu0 0.0
        %2421 = vmatpush1.msra.mxu0 0.0
        %2422 = vmatprep.subr.mxu0 0.0
        %2423 = vmatpush1.msra.mxu0 0.0
        %2424 = vmatprep.subr.mxu0 0.0
        %2425 = vmatpush1.msra.mxu0 0.0
        %2426 = vmatprep.subr.mxu0 0.0
        %2427 = vmatpush1.msra.mxu0 0.0
        %2428 = vmatprep.subr.mxu0 0.0
        %2429 = vmatpush1.msra.mxu0 0.0
        %2430 = vmatprep.mubr.f32.mxu0 0.0
        %2431 = vmatmul.mubr.f32.gmra.mrb[0].mxu0 %v2361
        %v2432 = vpop.f32.mrb[0].mxu0
        %v2433 = vadd.f32 0.0, %v2432
        %v2434 = vpop.f32.mrb[0].mxu0
        %2435 = vmatprep.mubr.f32.mxu0 0.0
        %2436 = vmatmul.mubr.f32.gmra.mrb[0].mxu0 %v2364
        %v2437 = vpop.f32.mrb[0].mxu0
        %v2438 = vadd.f32 0.0, %v2437
        %v2439 = vpop.f32.mrb[0].mxu0
        %2440 = vdwg.mxu0
        %v2441 = vsub.f32 0.0, %v2433
        %v2442 = vsub.f32 0.0, %v2438
        %v2443 = vmul.f32 %v2354, %v2441
        %v2444 = vmul.f32 %v2355, %v2442
        %2445 = vmatprep.subr.mxu0 0.0
        %2446 = vmatpush1.msra.mxu0 %v2443
        %2447 = vmatprep.subr.mxu0 0.0
        %2448 = vmatpush1.msra.mxu0 %v2444
        %2449 = vmatprep.subr.mxu0 0.0
        %2450 = vmatpush1.msra.mxu0 0.0
        %2451 = vmatprep.subr.mxu0 0.0
        %2452 = vmatpush1.msra.mxu0 0.0
        %2453 = vmatprep.subr.mxu0 0.0
        %2454 = vmatpush1.msra.mxu0 0.0
        %2455 = vmatprep.subr.mxu0 0.0
        %2456 = vmatpush1.msra.mxu0 0.0
        %2457 = vmatprep.subr.mxu0 0.0
        %2458 = vmatpush1.msra.mxu0 0.0
        %2459 = vmatprep.subr.mxu0 0.0
        %2460 = vmatpush1.msra.mxu0 0.0
        %2461 = vmatprep.subr.mxu0 0.0
        %2462 = vmatpush1.msra.mxu0 0.0
        %2463 = vmatprep.subr.mxu0 0.0
        %2464 = vmatpush1.msra.mxu0 0.0
        %2465 = vmatprep.subr.mxu0 0.0
        %2466 = vmatpush1.msra.mxu0 0.0
        %2467 = vmatprep.subr.mxu0 0.0
        %2468 = vmatpush1.msra.mxu0 0.0
        %2469 = vmatprep.subr.mxu0 0.0
        %2470 = vmatpush1.msra.mxu0 0.0
        %2471 = vmatprep.subr.mxu0 0.0
        %2472 = vmatpush1.msra.mxu0 0.0
        %2473 = vmatprep.subr.mxu0 0.0
        %2474 = vmatpush1.msra.mxu0 0.0
        %2475 = vmatprep.subr.mxu0 0.0
        %2476 = vmatpush1.msra.mxu0 0.0
        %2477 = vmatprep.subr.mxu0 0.0
        %2478 = vmatpush1.msra.mxu0 0.0
        %2479 = vmatprep.subr.mxu0 0.0
        %2480 = vmatpush1.msra.mxu0 0.0
        %2481 = vmatprep.subr.mxu0 0.0
        %2482 = vmatpush1.msra.mxu0 0.0
        %2483 = vmatprep.subr.mxu0 0.0
        %2484 = vmatpush1.msra.mxu0 0.0
        %2485 = vmatprep.subr.mxu0 0.0
        %2486 = vmatpush1.msra.mxu0 0.0
        %2487 = vmatprep.subr.mxu0 0.0
        %2488 = vmatpush1.msra.mxu0 0.0
        %2489 = vmatprep.subr.mxu0 0.0
        %2490 = vmatpush1.msra.mxu0 0.0
        %2491 = vmatprep.subr.mxu0 0.0
        %2492 = vmatpush1.msra.mxu0 0.0
        %2493 = vmatprep.subr.mxu0 0.0
        %2494 = vmatpush1.msra.mxu0 0.0
        %2495 = vmatprep.subr.mxu0 0.0
        %2496 = vmatpush1.msra.mxu0 0.0
        %2497 = vmatprep.subr.mxu0 0.0
        %2498 = vmatpush1.msra.mxu0 0.0
        %2499 = vmatprep.subr.mxu0 0.0
        %2500 = vmatpush1.msra.mxu0 0.0
        %2501 = vmatprep.subr.mxu0 0.0
        %2502 = vmatpush1.msra.mxu0 0.0
        %2503 = vmatprep.subr.mxu0 0.0
        %2504 = vmatpush1.msra.mxu0 0.0
        %2505 = vmatprep.subr.mxu0 0.0
        %2506 = vmatpush1.msra.mxu0 0.0
        %2507 = vmatprep.subr.mxu0 0.0
        %2508 = vmatpush1.msra.mxu0 0.0
        %2509 = vmatprep.mubr.f32.mxu0 0.0
        %2510 = vmatmul.mubr.f32.gmra.mrb[0].mxu0 %v2361
        %v2511 = vpop.f32.mrb[0].mxu0
        %v2512 = vadd.f32 0.0, %v2511
        %v2513 = vpop.f32.mrb[0].mxu0
        %2514 = vmatprep.mubr.f32.mxu0 0.0
        %2515 = vmatmul.mubr.f32.gmra.mrb[0].mxu0 %v2364
        %v2516 = vpop.f32.mrb[0].mxu0
        %v2517 = vadd.f32 0.0, %v2516
        %v2518 = vpop.f32.mrb[0].mxu0
        %2519 = vdwg.mxu0
        %v2520 = vmul.f32 %v2512, -2.0
        %v2521 = vmul.f32 %v2517, -2.0
        %v2522 = vsub.f32 %v2520, %v2072
        %v2523 = vsub.f32 %v2521, %v2073
        %2526 = vrot.lane.b32.xlu0 %v2441, 8
        %v2527 = vpop.permute.xlu0 %2526
        %2528 = vrot.lane.b32.xlu0 %v2442, 8
        %v2529 = vpop.permute.xlu0 %2528
        %2534 = vrot.lane.b32.xlu0 %v2522, 16
        %v2535 = vpop.permute.xlu0 %2534
        %2536 = vrot.lane.b32.xlu0 %v2523, 16
        %v2537 = vpop.permute.xlu0 %2536
        %v2540 = vsel %vm875, %v2072, %v2527
        %v2541 = vsel %vm875, %v2073, %v2529
        %v2542 = vsel %vm980, %v2540, %v2535
        %v2543 = vsel %vm980, %v2541, %v2537
        %v2545 = vlaneseq
        %v2546 = vshrl.u32 %v2545, 7
        %v2547 = vsub.s32 0, %v2546
        %v2548 = vrot.slane %v2090, %v2547
        %v2551 = vsel %vm1324, %v2542, 0
        %v2554 = vsel %vm1324, %v2543, 0
        %2556 = vmatprep.subr.mxu0 0.0
        %2557 = vmatpush1.msra.mxu0 %v2086
        %2558 = vmatprep.subr.mxu0 0.0
        %2559 = vmatpush1.msra.mxu0 %v2087
        %2560 = vmatprep.subr.mxu0 0.0
        %2561 = vmatpush1.msra.mxu0 %v2088
        %2562 = vmatprep.subr.mxu0 0.0
        %2563 = vmatpush1.msra.mxu0 0.0
        %2564 = vmatprep.subr.mxu0 0.0
        %2565 = vmatpush1.msra.mxu0 0.0
        %2566 = vmatprep.subr.mxu0 0.0
        %2567 = vmatpush1.msra.mxu0 0.0
        %2568 = vmatprep.subr.mxu0 0.0
        %2569 = vmatpush1.msra.mxu0 0.0
        %2570 = vmatprep.subr.mxu0 0.0
        %2571 = vmatpush1.msra.mxu0 0.0
        %2572 = vmatprep.subr.mxu0 0.0
        %2573 = vmatpush1.msra.mxu0 0.0
        %2574 = vmatprep.subr.mxu0 0.0
        %2575 = vmatpush1.msra.mxu0 0.0
        %2576 = vmatprep.subr.mxu0 0.0
        %2577 = vmatpush1.msra.mxu0 0.0
        %2578 = vmatprep.subr.mxu0 0.0
        %2579 = vmatpush1.msra.mxu0 0.0
        %2580 = vmatprep.subr.mxu0 0.0
        %2581 = vmatpush1.msra.mxu0 0.0
        %2582 = vmatprep.subr.mxu0 0.0
        %2583 = vmatpush1.msra.mxu0 0.0
        %2584 = vmatprep.subr.mxu0 0.0
        %2585 = vmatpush1.msra.mxu0 0.0
        %2586 = vmatprep.subr.mxu0 0.0
        %2587 = vmatpush1.msra.mxu0 0.0
        %2588 = vmatprep.subr.mxu0 0.0
        %2589 = vmatpush1.msra.mxu0 0.0
        %2590 = vmatprep.subr.mxu0 0.0
        %2591 = vmatpush1.msra.mxu0 0.0
        %2592 = vmatprep.subr.mxu0 0.0
        %2593 = vmatpush1.msra.mxu0 0.0
        %2594 = vmatprep.subr.mxu0 0.0
        %2595 = vmatpush1.msra.mxu0 0.0
        %2596 = vmatprep.subr.mxu0 0.0
        %2597 = vmatpush1.msra.mxu0 0.0
        %2598 = vmatprep.subr.mxu0 0.0
        %2599 = vmatpush1.msra.mxu0 0.0
        %2600 = vmatprep.subr.mxu0 0.0
        %2601 = vmatpush1.msra.mxu0 0.0
        %2602 = vmatprep.subr.mxu0 0.0
        %2603 = vmatpush1.msra.mxu0 0.0
        %2604 = vmatprep.subr.mxu0 0.0
        %2605 = vmatpush1.msra.mxu0 0.0
        %2606 = vmatprep.subr.mxu0 0.0
        %2607 = vmatpush1.msra.mxu0 0.0
        %2608 = vmatprep.subr.mxu0 0.0
        %2609 = vmatpush1.msra.mxu0 0.0
        %2610 = vmatprep.subr.mxu0 0.0
        %2611 = vmatpush1.msra.mxu0 0.0
        %2612 = vmatprep.subr.mxu0 0.0
        %2613 = vmatpush1.msra.mxu0 0.0
        %2614 = vmatprep.subr.mxu0 0.0
        %2615 = vmatpush1.msra.mxu0 0.0
        %2616 = vmatprep.subr.mxu0 0.0
        %2617 = vmatpush1.msra.mxu0 0.0
        %2618 = vmatprep.subr.mxu0 0.0
        %2619 = vmatpush1.msra.mxu0 0.0
        %2620 = vmatprep.mubr.f32.mxu0 0.0
        %2621 = vmatmul.mubr.f32.gmra.mrb[0].mxu0 %v2551
        %v2622 = vpop.f32.mrb[0].mxu0
        %v2623 = vadd.f32 %v2548, %v2622
        %v2624 = vpop.f32.mrb[0].mxu0
        %2625 = vmatprep.mubr.f32.mxu0 0.0
        %2626 = vmatmul.mubr.f32.gmra.mrb[0].mxu0 %v2554
        %v2627 = vpop.f32.mrb[0].mxu0
        %v2628 = vadd.f32 %v2548, %v2627
        %v2629 = vpop.f32.mrb[0].mxu0
        %2630 = vdwg.mxu0
        %v2631 = vmax.f32 %v2623, 0.0
        %v2632 = vmax.f32 %v2628, 0.0
        %2633 = vrot.lane.b32.xlu0 %v2631, 64
        %v2634 = vpop.permute.xlu0 %2633
        %v2635 = vsel %vm1408, %v2634, %v2631
        %2636 = vrot.lane.b32.xlu0 %v2632, 64
        %v2637 = vpop.permute.xlu0 %2636
        %v2638 = vsel %vm1408, %v2637, %v2632
        %2639 = vrot.lane.b32.xlu0 %v2635, 64
        %v2640 = vpop.permute.xlu0 %2639
        %2641 = vrot.lane.b32.xlu0 %v2638, 64
        %v2642 = vpop.permute.xlu0 %2641
        %v2643 = vsel %vm1408, %v2640, %v2631
        %v2644 = vsel %vm1408, %v2642, %v2632
        %2647 = vrot.lane.b32.xlu0 %v2643, 65
        %v2648 = vpop.permute.xlu0 %2647
        %2649 = vrot.lane.b32.xlu0 %v2644, 65
        %v2650 = vpop.permute.xlu0 %2649
        %v2653 = vsel %vm847, 0.0, %v2648
        %v2654 = vsel %vm847, 0.0, %v2650
        %2655 = vrot.lane.b32.xlu0 %v2643, 127
        %v2656 = vpop.permute.xlu0 %2655
        %2657 = vrot.lane.b32.xlu0 %v2644, 127
        %v2658 = vpop.permute.xlu0 %2657
        %v2661 = vsel %vm848, 0.0, %v2656
        %v2662 = vsel %vm848, 0.0, %v2658
        %v2663 = vstv %s2091
        %v2664 = vmul.f32 %v2663, %v2653
        %v2665 = vmul.f32 %v2663, %v2654
        %v2666 = vstv %s2092
        %v2667 = vmul.f32 %v2666, %v2631
        %v2668 = vmul.f32 %v2666, %v2632
        %v2669 = vadd.f32 %v2664, %v2667
        %v2670 = vadd.f32 %v2665, %v2668
        %v2671 = vstv %s2093
        %v2672 = vmul.f32 %v2671, %v2661
        %v2673 = vmul.f32 %v2671, %v2662
        %v2674 = vadd.f32 %v2669, %v2672
        %v2675 = vadd.f32 %v2670, %v2673
        %v2676 = vstv %s2094
        %v2677 = vadd.f32 %v2674, %v2676
        %v2678 = vadd.f32 %v2675, %v2676
        %v2679 = vmax.f32 %v2677, 0.0
        %v2680 = vmax.f32 %v2678, 0.0
        %s2681 = scalar_lea.vmem %s11, 16
        %v2682 = vld [vmem:[%s2681] sm:$0xff]
        %v2683 = vld [vmem:[%s2681 + $0x8] sm:$0xff]
        %s2684 = scalar_lea.vmem %s12, 16
        %v2685 = vld [vmem:[%s2684] sm:$0xff]
        %v2686 = vld [vmem:[%s2684 + $0x8] sm:$0xff]
        %s2687 = scalar_lea.vmem %s13, 1
        %v2688 = vld [vmem:[%s2687] sm:$0x1]
        %s2689 = scalar_lea.vmem %s14, 1
        %v2690 = vld [vmem:[%s2689] sm:$0x1]
        %s2691 = sld [smem:[#allocation8 + $0x1]]
        %s2692 = scalar_lea.vmem %s16, 192
        %v2693 = vld [vmem:[%s2692] sm:$0xff]
        %v2694 = vld [vmem:[%s2692 + $0x8] sm:$0xff]
        %v2695 = vld [vmem:[%s2692 + $0x10] sm:$0xff]
        %v2696 = vld [vmem:[%s2692 + $0x18] sm:$0xff]
        %v2697 = vld [vmem:[%s2692 + $0x20] sm:$0xff]
        %v2698 = vld [vmem:[%s2692 + $0x28] sm:$0xff]
        %v2699 = vld [vmem:[%s2692 + $0x30] sm:$0xff]
        %v2700 = vld [vmem:[%s2692 + $0x38] sm:$0xff]
        %v2701 = vld [vmem:[%s2692 + $0x40] sm:$0xff]
        %v2702 = vld [vmem:[%s2692 + $0x48] sm:$0xff]
        %v2703 = vld [vmem:[%s2692 + $0x50] sm:$0xff]
        %v2704 = vld [vmem:[%s2692 + $0x58] sm:$0xff]
        %v2705 = vld [vmem:[%s2692 + $0x60] sm:$0xff]
        %v2706 = vld [vmem:[%s2692 + $0x68] sm:$0xff]
        %v2707 = vld [vmem:[%s2692 + $0x70] sm:$0xff]
        %v2708 = vld [vmem:[%s2692 + $0x78] sm:$0xff]
        %v2709 = vld [vmem:[%s2692 + $0x80] sm:$0xff]
        %v2710 = vld [vmem:[%s2692 + $0x88] sm:$0xff]
        %v2711 = vld [vmem:[%s2692 + $0x90] sm:$0xff]
        %v2712 = vld [vmem:[%s2692 + $0x98] sm:$0xff]
        %v2713 = vld [vmem:[%s2692 + $0xa0] sm:$0xff]
        %v2714 = vld [vmem:[%s2692 + $0xa8] sm:$0xff]
        %v2715 = vld [vmem:[%s2692 + $0xb0] sm:$0xff]
        %v2716 = vld [vmem:[%s2692 + $0xb8] sm:$0xff]
        %s2717 = scalar_lea.vmem %s17, 1
        %v2718 = vld [vmem:[%s2717] sm:$0x1]
        %s2719 = sld [smem:[#allocation10 + $0x80]]
        %s2720 = sld [smem:[#allocation10 + $0x81]]
        %s2721 = sld [smem:[#allocation10 + $0x82]]
        %s2722 = sld [smem:[#allocation11 + $0x1]]
        %v2724 = vlaneseq
        %v2725 = vshrl.u32 %v2724, 7
        %v2726 = vsub.s32 0, %v2725
        %v2727 = vrot.slane %v2688, %v2726
        %v2729 = vmul.f32 %v2679, %v2727
        %v2730 = vmul.f32 %v2680, %v2727
        %v2731 = vsel %vm1501, %v2729, 0.0
        %2732 = vadd.xlane.f32.xlu0 %v2731
        %v2733 = vpop.xlane.xlu0 %2732
        %v2734 = vsel %vm1501, %v2730, 0.0
        %2735 = vadd.xlane.f32.xlu0 %v2734
        %v2736 = vpop.xlane.xlu0 %2735
        %v2738 = vlaneseq
        %v2739 = vshrl.u32 %v2738, 7
        %v2740 = vsub.s32 0, %v2739
        %v2741 = vrot.slane %v2690, %v2740
        %v2743 = vmul.f32 %v2733, %v2741
        %v2744 = vmul.f32 %v2736, %v2741
        %v2745 = vstv %s2691
        %v2746 = vmul.f32 %v2745, %v2679
        %v2747 = vmul.f32 %v2745, %v2680
        %v2749 = vsel %vm1501, %v2743, 0
        %v2752 = vsel %vm1501, %v2744, 0
        %v2755 = vsel %vm1501, %v2746, 0
        %v2758 = vsel %vm1501, %v2747, 0
        %2760 = vmatprep.subr.mxu0 0.0
        %2761 = vmatpush1.xpose.msra.mxu0 %v2755
        %2762 = vmatprep.subr.mxu0 0.0
        %2763 = vmatpush1.xpose.msra.mxu0 %v2758
        %2764 = vmatprep.subr.mxu0 0.0
        %2765 = vmatpush1.xpose.msra.mxu0 0.0
        %2766 = vmatprep.subr.mxu0 0.0
        %2767 = vmatpush1.xpose.msra.mxu0 0.0
        %2768 = vmatprep.subr.mxu0 0.0
        %2769 = vmatpush1.xpose.msra.mxu0 0.0
        %2770 = vmatprep.subr.mxu0 0.0
        %2771 = vmatpush1.xpose.msra.mxu0 0.0
        %2772 = vmatprep.subr.mxu0 0.0
        %2773 = vmatpush1.xpose.msra.mxu0 0.0
        %2774 = vmatprep.subr.mxu0 0.0
        %2775 = vmatpush1.xpose.msra.mxu0 0.0
        %2776 = vmatprep.subr.mxu0 0.0
        %2777 = vmatpush1.xpose.msra.mxu0 0.0
        %2778 = vmatprep.subr.mxu0 0.0
        %2779 = vmatpush1.xpose.msra.mxu0 0.0
        %2780 = vmatprep.subr.mxu0 0.0
        %2781 = vmatpush1.xpose.msra.mxu0 0.0
        %2782 = vmatprep.subr.mxu0 0.0
        %2783 = vmatpush1.xpose.msra.mxu0 0.0
        %2784 = vmatprep.subr.mxu0 0.0
        %2785 = vmatpush1.xpose.msra.mxu0 0.0
        %2786 = vmatprep.subr.mxu0 0.0
        %2787 = vmatpush1.xpose.msra.mxu0 0.0
        %2788 = vmatprep.subr.mxu0 0.0
        %2789 = vmatpush1.xpose.msra.mxu0 0.0
        %2790 = vmatprep.subr.mxu0 0.0
        %2791 = vmatpush1.xpose.msra.mxu0 0.0
        %2792 = vmatprep.subr.mxu0 0.0
        %2793 = vmatpush1.xpose.msra.mxu0 0.0
        %2794 = vmatprep.subr.mxu0 0.0
        %2795 = vmatpush1.xpose.msra.mxu0 0.0
        %2796 = vmatprep.subr.mxu0 0.0
        %2797 = vmatpush1.xpose.msra.mxu0 0.0
        %2798 = vmatprep.subr.mxu0 0.0
        %2799 = vmatpush1.xpose.msra.mxu0 0.0
        %2800 = vmatprep.subr.mxu0 0.0
        %2801 = vmatpush1.xpose.msra.mxu0 0.0
        %2802 = vmatprep.subr.mxu0 0.0
        %2803 = vmatpush1.xpose.msra.mxu0 0.0
        %2804 = vmatprep.subr.mxu0 0.0
        %2805 = vmatpush1.xpose.msra.mxu0 0.0
        %2806 = vmatprep.subr.mxu0 0.0
        %2807 = vmatpush1.xpose.msra.mxu0 0.0
        %2808 = vmatprep.subr.mxu0 0.0
        %2809 = vmatpush1.xpose.msra.mxu0 0.0
        %2810 = vmatprep.subr.mxu0 0.0
        %2811 = vmatpush1.xpose.msra.mxu0 0.0
        %2812 = vmatprep.subr.mxu0 0.0
        %2813 = vmatpush1.xpose.msra.mxu0 0.0
        %2814 = vmatprep.subr.mxu0 0.0
        %2815 = vmatpush1.xpose.msra.mxu0 0.0
        %2816 = vmatprep.subr.mxu0 0.0
        %2817 = vmatpush1.xpose.msra.mxu0 0.0
        %2818 = vmatprep.subr.mxu0 0.0
        %2819 = vmatpush1.xpose.msra.mxu0 0.0
        %2820 = vmatprep.subr.mxu0 0.0
        %2821 = vmatpush1.xpose.msra.mxu0 0.0
        %2822 = vmatprep.subr.mxu0 0.0
        %2823 = vmatpush1.xpose.msra.mxu0 0.0
        %2824 = vmatprep.mubr.f32.mxu0 0.0
        %2825 = vmatmul.mubr.f32.gmra.mrb[0].mxu0 %v2749
        %v2826 = vpop.f32.mrb[0].mxu0
        %v2827 = vadd.f32 %v2685, %v2826
        %v2828 = vpop.f32.mrb[0].mxu0
        %2829 = vmatprep.mubr.f32.mxu0 0.0
        %2830 = vmatmul.mubr.f32.gmra.mrb[0].mxu0 %v2752
        %v2831 = vpop.f32.mrb[0].mxu0
        %v2832 = vadd.f32 %v2686, %v2831
        %v2833 = vpop.f32.mrb[0].mxu0
        %2834 = vdwg.mxu0
        %v2835 = vsel %vm980, %v2827, -inf
        %v2836 = vsel %vm980, %v2832, -inf
        %v2837 = vmax.f32 %v2835, %v2836
        %v2838 = vrot.slane %v2837, 4
        %v2839 = vmax.f32 %v2837, %v2838
        %v2840 = vrot.slane %v2839, 2
        %v2841 = vmax.f32 %v2839, %v2840
        %v2842 = vrot.slane %v2841, 1
        %v2843 = vmax.f32 %v2841, %v2842
        %v2844 = vsub.f32 %v2827, %v2843
        %v2845 = vsub.f32 %v2832, %v2843
        %v2846 = vmul.f32 %v2844, 1.442695
        %v2847 = vpow.pop %v2846
        %v2848 = vmul.f32 %v2845, 1.442695
        %v2849 = vpow.pop %v2848
        %v2850 = vsel %vm980, %v2847, 0.0
        %v2851 = vsel %vm980, %v2849, 0.0
        %v2852 = vadd.f32 %v2850, %v2851
        %v2853 = vrot.slane %v2852, 4
        %v2854 = vadd.f32 %v2852, %v2853
        %v2855 = vrot.slane %v2854, 2
        %v2856 = vadd.f32 %v2854, %v2855
        %v2857 = vrot.slane %v2856, 1
        %v2858 = vadd.f32 %v2856, %v2857
        %v2859 = vrcp.pop %v2858
        %v2860 = vmul.f32 %v2847, %v2859
        %v2861 = vmul.f32 %v2849, %v2859
        %v2863 = vsel %vm980, %v2682, 0
        %v2866 = vsel %vm980, %v2683, 0
        %2868 = vmatprep.subr.mxu0 0.0
        %2869 = vmatpush1.msra.mxu0 %v2860
        %2870 = vmatprep.subr.mxu0 0.0
        %2871 = vmatpush1.msra.mxu0 %v2861
        %2872 = vmatprep.subr.mxu0 0.0
        %2873 = vmatpush1.msra.mxu0 0.0
        %2874 = vmatprep.subr.mxu0 0.0
        %2875 = vmatpush1.msra.mxu0 0.0
        %2876 = vmatprep.subr.mxu0 0.0
        %2877 = vmatpush1.msra.mxu0 0.0
        %2878 = vmatprep.subr.mxu0 0.0
        %2879 = vmatpush1.msra.mxu0 0.0
        %2880 = vmatprep.subr.mxu0 0.0
        %2881 = vmatpush1.msra.mxu0 0.0
        %2882 = vmatprep.subr.mxu0 0.0
        %2883 = vmatpush1.msra.mxu0 0.0
        %2884 = vmatprep.subr.mxu0 0.0
        %2885 = vmatpush1.msra.mxu0 0.0
        %2886 = vmatprep.subr.mxu0 0.0
        %2887 = vmatpush1.msra.mxu0 0.0
        %2888 = vmatprep.subr.mxu0 0.0
        %2889 = vmatpush1.msra.mxu0 0.0
        %2890 = vmatprep.subr.mxu0 0.0
        %2891 = vmatpush1.msra.mxu0 0.0
        %2892 = vmatprep.subr.mxu0 0.0
        %2893 = vmatpush1.msra.mxu0 0.0
        %2894 = vmatprep.subr.mxu0 0.0
        %2895 = vmatpush1.msra.mxu0 0.0
        %2896 = vmatprep.subr.mxu0 0.0
        %2897 = vmatpush1.msra.mxu0 0.0
        %2898 = vmatprep.subr.mxu0 0.0
        %2899 = vmatpush1.msra.mxu0 0.0
        %2900 = vmatprep.subr.mxu0 0.0
        %2901 = vmatpush1.msra.mxu0 0.0
        %2902 = vmatprep.subr.mxu0 0.0
        %2903 = vmatpush1.msra.mxu0 0.0
        %2904 = vmatprep.subr.mxu0 0.0
        %2905 = vmatpush1.msra.mxu0 0.0
        %2906 = vmatprep.subr.mxu0 0.0
        %2907 = vmatpush1.msra.mxu0 0.0
        %2908 = vmatprep.subr.mxu0 0.0
        %2909 = vmatpush1.msra.mxu0 0.0
        %2910 = vmatprep.subr.mxu0 0.0
        %2911 = vmatpush1.msra.mxu0 0.0
        %2912 = vmatprep.subr.mxu0 0.0
        %2913 = vmatpush1.msra.mxu0 0.0
        %2914 = vmatprep.subr.mxu0 0.0
        %2915 = vmatpush1.msra.mxu0 0.0
        %2916 = vmatprep.subr.mxu0 0.0
        %2917 = vmatpush1.msra.mxu0 0.0
        %2918 = vmatprep.subr.mxu0 0.0
        %2919 = vmatpush1.msra.mxu0 0.0
        %2920 = vmatprep.subr.mxu0 0.0
        %2921 = vmatpush1.msra.mxu0 0.0
        %2922 = vmatprep.subr.mxu0 0.0
        %2923 = vmatpush1.msra.mxu0 0.0
        %2924 = vmatprep.subr.mxu0 0.0
        %2925 = vmatpush1.msra.mxu0 0.0
        %2926 = vmatprep.subr.mxu0 0.0
        %2927 = vmatpush1.msra.mxu0 0.0
        %2928 = vmatprep.subr.mxu0 0.0
        %2929 = vmatpush1.msra.mxu0 0.0
        %2930 = vmatprep.subr.mxu0 0.0
        %2931 = vmatpush1.msra.mxu0 0.0
        %2932 = vmatprep.mubr.f32.mxu0 0.0
        %2933 = vmatmul.mubr.f32.gmra.mrb[0].mxu0 %v2863
        %v2934 = vpop.f32.mrb[0].mxu0
        %v2935 = vadd.f32 0.0, %v2934
        %v2936 = vpop.f32.mrb[0].mxu0
        %2937 = vmatprep.mubr.f32.mxu0 0.0
        %2938 = vmatmul.mubr.f32.gmra.mrb[0].mxu0 %v2866
        %v2939 = vpop.f32.mrb[0].mxu0
        %v2940 = vadd.f32 0.0, %v2939
        %v2941 = vpop.f32.mrb[0].mxu0
        %2942 = vdwg.mxu0
        %v2943 = vsel %vm980, %v2935, -inf
        %v2944 = vsel %vm980, %v2940, -inf
        %v2945 = vmax.f32 %v2943, %v2944
        %v2946 = vrot.slane %v2945, 4
        %v2947 = vmax.f32 %v2945, %v2946
        %v2948 = vrot.slane %v2947, 2
        %v2949 = vmax.f32 %v2947, %v2948
        %v2950 = vrot.slane %v2949, 1
        %v2951 = vmax.f32 %v2949, %v2950
        %v2952 = vsub.f32 %v2935, %v2951
        %v2953 = vsub.f32 %v2940, %v2951
        %v2954 = vmul.f32 %v2952, 1.442695
        %v2955 = vpow.pop %v2954
        %v2956 = vmul.f32 %v2953, 1.442695
        %v2957 = vpow.pop %v2956
        %v2958 = vsel %vm980, %v2955, 0.0
        %v2959 = vsel %vm980, %v2957, 0.0
        %v2960 = vadd.f32 %v2958, %v2959
        %v2961 = vrot.slane %v2960, 4
        %v2962 = vadd.f32 %v2960, %v2961
        %v2963 = vrot.slane %v2962, 2
        %v2964 = vadd.f32 %v2962, %v2963
        %v2965 = vrot.slane %v2964, 1
        %v2966 = vadd.f32 %v2964, %v2965
        %v2967 = vrcp.pop %v2966
        %v2968 = vmul.f32 %v2955, %v2967
        %v2969 = vmul.f32 %v2957, %v2967
        %v2970 = vmul.f32 %v843, %v2968
        %v2971 = vmul.f32 %v844, %v2969
        %v2972 = vsel %vm980, %v2970, 0.0
        %2973 = vadd.xlane.f32.xlu0 %v2972
        %v2974 = vpop.xlane.xlu0 %2973
        %v2975 = vsel %vm980, %v2971, 0.0
        %2976 = vadd.xlane.f32.xlu0 %v2975
        %v2977 = vpop.xlane.xlu0 %2976
        %vm2978 = vcmp.gt.f32.partialorder %v2974, 0.0
        %vm2979 = vcmp.gt.f32.partialorder %v2977, 0.0
        %v2980 = vrsqrt.pop %v2974
        %v2981 = vrsqrt.pop %v2977
        %v2982 = vsel %vm2978, %v2980, 0.0
        %v2983 = vsel %vm2979, %v2981, 0.0
        %v2984 = vmul.f32 %v2982, %v2970
        %v2985 = vmul.f32 %v2983, %v2971
        %v2986 = vmul.f32 %v2982, %v2679
        %v2987 = vmul.f32 %v2983, %v2680
        %v2989 = vsel %vm980, %v2984, 0
        %v2992 = vsel %vm980, %v2985, 0
        %2994 = vmatprep.subr.mxu0 0.0
        %2995 = vmatpush1.msra.mxu0 %v2986
        %2996 = vmatprep.subr.mxu0 0.0
        %2997 = vmatpush1.msra.mxu0 %v2987
        %2998 = vmatprep.subr.mxu0 0.0
        %2999 = vmatpush1.msra.mxu0 0.0
        %3000 = vmatprep.subr.mxu0 0.0
        %3001 = vmatpush1.msra.mxu0 0.0
        %3002 = vmatprep.subr.mxu0 0.0
        %3003 = vmatpush1.msra.mxu0 0.0
        %3004 = vmatprep.subr.mxu0 0.0
        %3005 = vmatpush1.msra.mxu0 0.0
        %3006 = vmatprep.subr.mxu0 0.0
        %3007 = vmatpush1.msra.mxu0 0.0
        %3008 = vmatprep.subr.mxu0 0.0
        %3009 = vmatpush1.msra.mxu0 0.0
        %3010 = vmatprep.subr.mxu0 0.0
        %3011 = vmatpush1.msra.mxu0 0.0
        %3012 = vmatprep.subr.mxu0 0.0
        %3013 = vmatpush1.msra.mxu0 0.0
        %3014 = vmatprep.subr.mxu0 0.0
        %3015 = vmatpush1.msra.mxu0 0.0
        %3016 = vmatprep.subr.mxu0 0.0
        %3017 = vmatpush1.msra.mxu0 0.0
        %3018 = vmatprep.subr.mxu0 0.0
        %3019 = vmatpush1.msra.mxu0 0.0
        %3020 = vmatprep.subr.mxu0 0.0
        %3021 = vmatpush1.msra.mxu0 0.0
        %3022 = vmatprep.subr.mxu0 0.0
        %3023 = vmatpush1.msra.mxu0 0.0
        %3024 = vmatprep.subr.mxu0 0.0
        %3025 = vmatpush1.msra.mxu0 0.0
        %3026 = vmatprep.subr.mxu0 0.0
        %3027 = vmatpush1.msra.mxu0 0.0
        %3028 = vmatprep.subr.mxu0 0.0
        %3029 = vmatpush1.msra.mxu0 0.0
        %3030 = vmatprep.subr.mxu0 0.0
        %3031 = vmatpush1.msra.mxu0 0.0
        %3032 = vmatprep.subr.mxu0 0.0
        %3033 = vmatpush1.msra.mxu0 0.0
        %3034 = vmatprep.subr.mxu0 0.0
        %3035 = vmatpush1.msra.mxu0 0.0
        %3036 = vmatprep.subr.mxu0 0.0
        %3037 = vmatpush1.msra.mxu0 0.0
        %3038 = vmatprep.subr.mxu0 0.0
        %3039 = vmatpush1.msra.mxu0 0.0
        %3040 = vmatprep.subr.mxu0 0.0
        %3041 = vmatpush1.msra.mxu0 0.0
        %3042 = vmatprep.subr.mxu0 0.0
        %3043 = vmatpush1.msra.mxu0 0.0
        %3044 = vmatprep.subr.mxu0 0.0
        %3045 = vmatpush1.msra.mxu0 0.0
        %3046 = vmatprep.subr.mxu0 0.0
        %3047 = vmatpush1.msra.mxu0 0.0
        %3048 = vmatprep.subr.mxu0 0.0
        %3049 = vmatpush1.msra.mxu0 0.0
        %3050 = vmatprep.subr.mxu0 0.0
        %3051 = vmatpush1.msra.mxu0 0.0
        %3052 = vmatprep.subr.mxu0 0.0
        %3053 = vmatpush1.msra.mxu0 0.0
        %3054 = vmatprep.subr.mxu0 0.0
        %3055 = vmatpush1.msra.mxu0 0.0
        %3056 = vmatprep.subr.mxu0 0.0
        %3057 = vmatpush1.msra.mxu0 0.0
        %3058 = vmatprep.mubr.f32.mxu0 0.0
        %3059 = vmatmul.mubr.f32.gmra.mrb[0].mxu0 %v2989
        %v3060 = vpop.f32.mrb[0].mxu0
        %v3061 = vadd.f32 0.0, %v3060
        %v3062 = vpop.f32.mrb[0].mxu0
        %3063 = vmatprep.mubr.f32.mxu0 0.0
        %3064 = vmatmul.mubr.f32.gmra.mrb[0].mxu0 %v2992
        %v3065 = vpop.f32.mrb[0].mxu0
        %v3066 = vadd.f32 0.0, %v3065
        %v3067 = vpop.f32.mrb[0].mxu0
        %3068 = vdwg.mxu0
        %v3069 = vsub.f32 0.0, %v3061
        %v3070 = vsub.f32 0.0, %v3066
        %v3071 = vmul.f32 %v2982, %v3069
        %v3072 = vmul.f32 %v2983, %v3070
        %3073 = vmatprep.subr.mxu0 0.0
        %3074 = vmatpush1.msra.mxu0 %v3071
        %3075 = vmatprep.subr.mxu0 0.0
        %3076 = vmatpush1.msra.mxu0 %v3072
        %3077 = vmatprep.subr.mxu0 0.0
        %3078 = vmatpush1.msra.mxu0 0.0
        %3079 = vmatprep.subr.mxu0 0.0
        %3080 = vmatpush1.msra.mxu0 0.0
        %3081 = vmatprep.subr.mxu0 0.0
        %3082 = vmatpush1.msra.mxu0 0.0
        %3083 = vmatprep.subr.mxu0 0.0
        %3084 = vmatpush1.msra.mxu0 0.0
        %3085 = vmatprep.subr.mxu0 0.0
        %3086 = vmatpush1.msra.mxu0 0.0
        %3087 = vmatprep.subr.mxu0 0.0
        %3088 = vmatpush1.msra.mxu0 0.0
        %3089 = vmatprep.subr.mxu0 0.0
        %3090 = vmatpush1.msra.mxu0 0.0
        %3091 = vmatprep.subr.mxu0 0.0
        %3092 = vmatpush1.msra.mxu0 0.0
        %3093 = vmatprep.subr.mxu0 0.0
        %3094 = vmatpush1.msra.mxu0 0.0
        %3095 = vmatprep.subr.mxu0 0.0
        %3096 = vmatpush1.msra.mxu0 0.0
        %3097 = vmatprep.subr.mxu0 0.0
        %3098 = vmatpush1.msra.mxu0 0.0
        %3099 = vmatprep.subr.mxu0 0.0
        %3100 = vmatpush1.msra.mxu0 0.0
        %3101 = vmatprep.subr.mxu0 0.0
        %3102 = vmatpush1.msra.mxu0 0.0
        %3103 = vmatprep.subr.mxu0 0.0
        %3104 = vmatpush1.msra.mxu0 0.0
        %3105 = vmatprep.subr.mxu0 0.0
        %3106 = vmatpush1.msra.mxu0 0.0
        %3107 = vmatprep.subr.mxu0 0.0
        %3108 = vmatpush1.msra.mxu0 0.0
        %3109 = vmatprep.subr.mxu0 0.0
        %3110 = vmatpush1.msra.mxu0 0.0
        %3111 = vmatprep.subr.mxu0 0.0
        %3112 = vmatpush1.msra.mxu0 0.0
        %3113 = vmatprep.subr.mxu0 0.0
        %3114 = vmatpush1.msra.mxu0 0.0
        %3115 = vmatprep.subr.mxu0 0.0
        %3116 = vmatpush1.msra.mxu0 0.0
        %3117 = vmatprep.subr.mxu0 0.0
        %3118 = vmatpush1.msra.mxu0 0.0
        %3119 = vmatprep.subr.mxu0 0.0
        %3120 = vmatpush1.msra.mxu0 0.0
        %3121 = vmatprep.subr.mxu0 0.0
        %3122 = vmatpush1.msra.mxu0 0.0
        %3123 = vmatprep.subr.mxu0 0.0
        %3124 = vmatpush1.msra.mxu0 0.0
        %3125 = vmatprep.subr.mxu0 0.0
        %3126 = vmatpush1.msra.mxu0 0.0
        %3127 = vmatprep.subr.mxu0 0.0
        %3128 = vmatpush1.msra.mxu0 0.0
        %3129 = vmatprep.subr.mxu0 0.0
        %3130 = vmatpush1.msra.mxu0 0.0
        %3131 = vmatprep.subr.mxu0 0.0
        %3132 = vmatpush1.msra.mxu0 0.0
        %3133 = vmatprep.subr.mxu0 0.0
        %3134 = vmatpush1.msra.mxu0 0.0
        %3135 = vmatprep.subr.mxu0 0.0
        %3136 = vmatpush1.msra.mxu0 0.0
        %3137 = vmatprep.mubr.f32.mxu0 0.0
        %3138 = vmatmul.mubr.f32.gmra.mrb[0].mxu0 %v2989
        %v3139 = vpop.f32.mrb[0].mxu0
        %v3140 = vadd.f32 0.0, %v3139
        %v3141 = vpop.f32.mrb[0].mxu0
        %3142 = vmatprep.mubr.f32.mxu0 0.0
        %3143 = vmatmul.mubr.f32.gmra.mrb[0].mxu0 %v2992
        %v3144 = vpop.f32.mrb[0].mxu0
        %v3145 = vadd.f32 0.0, %v3144
        %v3146 = vpop.f32.mrb[0].mxu0
        %3147 = vdwg.mxu0
        %v3148 = vmul.f32 %v3140, -2.0
        %v3149 = vmul.f32 %v3145, -2.0
        %v3150 = vsub.f32 %v3148, %v2679
        %v3151 = vsub.f32 %v3149, %v2680
        %3154 = vrot.lane.b32.xlu0 %v3069, 64
        %v3155 = vpop.permute.xlu0 %3154
        %3156 = vrot.lane.b32.xlu0 %v3070, 64
        %v3157 = vpop.permute.xlu0 %3156
        %v3160 = vsel %vm1501, %v2679, %v3155
        %v3161 = vsel %vm1501, %v2680, %v3157
        %v3163 = vlaneseq
        %v3164 = vshrl.u32 %v3163, 7
        %v3165 = vsub.s32 0, %v3164
        %v3166 = vrot.slane %v2718, %v3165
        %v3169 = vsel %vm1501, %v3150, 0
        %v3172 = vsel %vm1501, %v3151, 0
        %3174 = vmatprep.subr.mxu0 0.0
        %3175 = vmatpush1.msra.mxu0 %v2693
        %3176 = vmatprep.subr.mxu0 0.0
        %3177 = vmatpush1.msra.mxu0 %v2694
        %3178 = vmatprep.subr.mxu0 0.0
        %3179 = vmatpush1.msra.mxu0 %v2695
        %3180 = vmatprep.subr.mxu0 0.0
        %3181 = vmatpush1.msra.mxu0 %v2696
        %3182 = vmatprep.subr.mxu0 0.0
        %3183 = vmatpush1.msra.mxu0 %v2697
        %3184 = vmatprep.subr.mxu0 0.0
        %3185 = vmatpush1.msra.mxu0 %v2698
        %3186 = vmatprep.subr.mxu0 0.0
        %3187 = vmatpush1.msra.mxu0 %v2699
        %3188 = vmatprep.subr.mxu0 0.0
        %3189 = vmatpush1.msra.mxu0 %v2700
        %3190 = vmatprep.subr.mxu0 0.0
        %3191 = vmatpush1.msra.mxu0 %v2701
        %3192 = vmatprep.subr.mxu0 0.0
        %3193 = vmatpush1.msra.mxu0 %v2702
        %3194 = vmatprep.subr.mxu0 0.0
        %3195 = vmatpush1.msra.mxu0 %v2703
        %3196 = vmatprep.subr.mxu0 0.0
        %3197 = vmatpush1.msra.mxu0 %v2704
        %3198 = vmatprep.subr.mxu0 0.0
        %3199 = vmatpush1.msra.mxu0 %v2705
        %3200 = vmatprep.subr.mxu0 0.0
        %3201 = vmatpush1.msra.mxu0 %v2706
        %3202 = vmatprep.subr.mxu0 0.0
        %3203 = vmatpush1.msra.mxu0 %v2707
        %3204 = vmatprep.subr.mxu0 0.0
        %3205 = vmatpush1.msra.mxu0 %v2708
        %3206 = vmatprep.subr.mxu0 0.0
        %3207 = vmatpush1.msra.mxu0 %v2709
        %3208 = vmatprep.subr.mxu0 0.0
        %3209 = vmatpush1.msra.mxu0 %v2710
        %3210 = vmatprep.subr.mxu0 0.0
        %3211 = vmatpush1.msra.mxu0 %v2711
        %3212 = vmatprep.subr.mxu0 0.0
        %3213 = vmatpush1.msra.mxu0 %v2712
        %3214 = vmatprep.subr.mxu0 0.0
        %3215 = vmatpush1.msra.mxu0 %v2713
        %3216 = vmatprep.subr.mxu0 0.0
        %3217 = vmatpush1.msra.mxu0 %v2714
        %3218 = vmatprep.subr.mxu0 0.0
        %3219 = vmatpush1.msra.mxu0 %v2715
        %3220 = vmatprep.subr.mxu0 0.0
        %3221 = vmatpush1.msra.mxu0 %v2716
        %3222 = vmatprep.subr.mxu0 0.0
        %3223 = vmatpush1.msra.mxu0 0.0
        %3224 = vmatprep.subr.mxu0 0.0
        %3225 = vmatpush1.msra.mxu0 0.0
        %3226 = vmatprep.subr.mxu0 0.0
        %3227 = vmatpush1.msra.mxu0 0.0
        %3228 = vmatprep.subr.mxu0 0.0
        %3229 = vmatpush1.msra.mxu0 0.0
        %3230 = vmatprep.subr.mxu0 0.0
        %3231 = vmatpush1.msra.mxu0 0.0
        %3232 = vmatprep.subr.mxu0 0.0
        %3233 = vmatpush1.msra.mxu0 0.0
        %3234 = vmatprep.subr.mxu0 0.0
        %3235 = vmatpush1.msra.mxu0 0.0
        %3236 = vmatprep.subr.mxu0 0.0
        %3237 = vmatpush1.msra.mxu0 0.0
        %3238 = vmatprep.mubr.f32.mxu0 %v3169
        %3239 = vmatmul.mubr.f32.gmra.mrb[0].mxu0 %v3160
        %v3240 = vpop.f32.mrb[0].mxu0
        %v3241 = vadd.f32 %v3166, %v3240
        %v3242 = vpop.f32.mrb[0].mxu0
        %3243 = vmatprep.mubr.f32.mxu0 %v3172
        %3244 = vmatmul.mubr.f32.gmra.mrb[0].mxu0 %v3161
        %v3245 = vpop.f32.mrb[0].mxu0
        %v3246 = vadd.f32 %v3166, %v3245
        %v3247 = vpop.f32.mrb[0].mxu0
        %3248 = vdwg.mxu0
        %v3249 = vmax.f32 %v3241, 0.0
        %v3250 = vmax.f32 %v3246, 0.0
        %3251 = vrot.lane.b32.xlu0 %v3249, 32
        %v3252 = vpop.permute.xlu0 %3251
        %v3253 = vsel %vm2022, %v3252, %v3249
        %3254 = vrot.lane.b32.xlu0 %v3250, 32
        %v3255 = vpop.permute.xlu0 %3254
        %v3256 = vsel %vm2022, %v3255, %v3250
        %3257 = vrot.lane.b32.xlu0 %v3253, 32
        %v3258 = vpop.permute.xlu0 %3257
        %3259 = vrot.lane.b32.xlu0 %v3256, 32
        %v3260 = vpop.permute.xlu0 %3259
        %v3261 = vsel %vm2022, %v3258, %v3249
        %v3262 = vsel %vm2022, %v3260, %v3250
        %3265 = vrot.lane.b32.xlu0 %v3261, 97
        %v3266 = vpop.permute.xlu0 %3265
        %3267 = vrot.lane.b32.xlu0 %v3262, 97
        %v3268 = vpop.permute.xlu0 %3267
        %v3271 = vsel %vm847, 0.0, %v3266
        %v3272 = vsel %vm847, 0.0, %v3268
        %3273 = vrot.lane.b32.xlu0 %v3261, 127
        %v3274 = vpop.permute.xlu0 %3273
        %3275 = vrot.lane.b32.xlu0 %v3262, 127
        %v3276 = vpop.permute.xlu0 %3275
        %v3279 = vsel %vm849, 0.0, %v3274
        %v3280 = vsel %vm849, 0.0, %v3276
        %v3281 = vstv %s2719
        %v3282 = vmul.f32 %v3281, %v3271
        %v3283 = vmul.f32 %v3281, %v3272
        %v3284 = vstv %s2720
        %v3285 = vmul.f32 %v3284, %v3249
        %v3286 = vmul.f32 %v3284, %v3250
        %v3287 = vadd.f32 %v3282, %v3285
        %v3288 = vadd.f32 %v3283, %v3286
        %v3289 = vstv %s2721
        %v3290 = vmul.f32 %v3289, %v3279
        %v3291 = vmul.f32 %v3289, %v3280
        %v3292 = vadd.f32 %v3287, %v3290
        %v3293 = vadd.f32 %v3288, %v3291
        %v3294 = vstv %s2722
        %v3295 = vadd.f32 %v3292, %v3294
        %v3296 = vadd.f32 %v3293, %v3294
        %v3297 = vmax.f32 %v3295, 0.0
        %v3298 = vmax.f32 %v3296, 0.0
        %s3299 = scalar_lea.vmem %s752, 32 [#allocation2]
        %v3300 = vld [vmem:[%s3299] sm:$0xff]
        %v3301 = vld [vmem:[%s3299 + $0x8] sm:$0xff]
        %s3302 = scalar_lea.vmem %s2, 32
        %v3303 = vld [vmem:[%s3302] sm:$0xff]
        %v3304 = vld [vmem:[%s3302 + $0x8] sm:$0xff]
        %s3305 = scalar_lea.vmem %s3, 32
        %v3306 = vld [vmem:[%s3305] sm:$0xff]
        %v3307 = vld [vmem:[%s3305 + $0x8] sm:$0xff]
        %s3308 = scalar_lea.vmem %s4, 2
        %v3309 = vld [vmem:[%s3308] sm:$0x1]
        %s3310 = scalar_lea.vmem %s5, 2
        %v3311 = vld [vmem:[%s3310] sm:$0x1]
        %s3312 = sld [smem:[#allocation3 + $0x2]]
        %s3313 = scalar_lea.vmem %s7, 48
        %v3314 = vld [vmem:[%s3313] sm:$0xff]
        %v3315 = vld [vmem:[%s3313 + $0x8] sm:$0xff]
        %v3316 = vld [vmem:[%s3313 + $0x10] sm:$0xff]
        %s3317 = scalar_lea.vmem %s8, 2
        %v3318 = vld [vmem:[%s3317] sm:$0x1]
        %s3319 = sld [smem:[#allocation5 + $0x100]]
        %s3320 = sld [smem:[#allocation5 + $0x101]]
        %s3321 = sld [smem:[#allocation5 + $0x102]]
        %s3322 = sld [smem:[#allocation7 + $0x2]]
        %v3324 = vlaneseq
        %v3325 = vshrl.u32 %v3324, 7
        %v3326 = vsub.s32 0, %v3325
        %v3327 = vrot.slane %v3309, %v3326
        %v3329 = vmul.f32 %v3300, %v3327
        %v3330 = vmul.f32 %v3301, %v3327
        %v3331 = vsel %vm875, %v3329, 0.0
        %3332 = vadd.xlane.f32.xlu0 %v3331
        %v3333 = vpop.xlane.xlu0 %3332
        %v3334 = vsel %vm875, %v3330, 0.0
        %3335 = vadd.xlane.f32.xlu0 %v3334
        %v3336 = vpop.xlane.xlu0 %3335
        %v3338 = vlaneseq
        %v3339 = vshrl.u32 %v3338, 7
        %v3340 = vsub.s32 0, %v3339
        %v3341 = vrot.slane %v3311, %v3340
        %v3343 = vmul.f32 %v3333, %v3341
        %v3344 = vmul.f32 %v3336, %v3341
        %v3345 = vstv %s3312
        %v3346 = vmul.f32 %v3345, %v3300
        %v3347 = vmul.f32 %v3345, %v3301
        %v3349 = vsel %vm875, %v3343, 0
        %v3352 = vsel %vm875, %v3344, 0
        %v3355 = vsel %vm875, %v3346, 0
        %v3358 = vsel %vm875, %v3347, 0
        %3360 = vmatprep.subr.mxu0 0.0
        %3361 = vmatpush1.xpose.msra.mxu0 %v3355
        %3362 = vmatprep.subr.mxu0 0.0
        %3363 = vmatpush1.xpose.msra.mxu0 %v3358
        %3364 = vmatprep.subr.mxu0 0.0
        %3365 = vmatpush1.xpose.msra.mxu0 0.0
        %3366 = vmatprep.subr.mxu0 0.0
        %3367 = vmatpush1.xpose.msra.mxu0 0.0
        %3368 = vmatprep.subr.mxu0 0.0
        %3369 = vmatpush1.xpose.msra.mxu0 0.0
        %3370 = vmatprep.subr.mxu0 0.0
        %3371 = vmatpush1.xpose.msra.mxu0 0.0
        %3372 = vmatprep.subr.mxu0 0.0
        %3373 = vmatpush1.xpose.msra.mxu0 0.0
        %3374 = vmatprep.subr.mxu0 0.0
        %3375 = vmatpush1.xpose.msra.mxu0 0.0
        %3376 = vmatprep.subr.mxu0 0.0
        %3377 = vmatpush1.xpose.msra.mxu0 0.0
        %3378 = vmatprep.subr.mxu0 0.0
        %3379 = vmatpush1.xpose.msra.mxu0 0.0
        %3380 = vmatprep.subr.mxu0 0.0
        %3381 = vmatpush1.xpose.msra.mxu0 0.0
        %3382 = vmatprep.subr.mxu0 0.0
        %3383 = vmatpush1.xpose.msra.mxu0 0.0
        %3384 = vmatprep.subr.mxu0 0.0
        %3385 = vmatpush1.xpose.msra.mxu0 0.0
        %3386 = vmatprep.subr.mxu0 0.0
        %3387 = vmatpush1.xpose.msra.mxu0 0.0
        %3388 = vmatprep.subr.mxu0 0.0
        %3389 = vmatpush1.xpose.msra.mxu0 0.0
        %3390 = vmatprep.subr.mxu0 0.0
        %3391 = vmatpush1.xpose.msra.mxu0 0.0
        %3392 = vmatprep.subr.mxu0 0.0
        %3393 = vmatpush1.xpose.msra.mxu0 0.0
        %3394 = vmatprep.subr.mxu0 0.0
        %3395 = vmatpush1.xpose.msra.mxu0 0.0
        %3396 = vmatprep.subr.mxu0 0.0
        %3397 = vmatpush1.xpose.msra.mxu0 0.0
        %3398 = vmatprep.subr.mxu0 0.0
        %3399 = vmatpush1.xpose.msra.mxu0 0.0
        %3400 = vmatprep.subr.mxu0 0.0
        %3401 = vmatpush1.xpose.msra.mxu0 0.0
        %3402 = vmatprep.subr.mxu0 0.0
        %3403 = vmatpush1.xpose.msra.mxu0 0.0
        %3404 = vmatprep.subr.mxu0 0.0
        %3405 = vmatpush1.xpose.msra.mxu0 0.0
        %3406 = vmatprep.subr.mxu0 0.0
        %3407 = vmatpush1.xpose.msra.mxu0 0.0
        %3408 = vmatprep.subr.mxu0 0.0
        %3409 = vmatpush1.xpose.msra.mxu0 0.0
        %3410 = vmatprep.subr.mxu0 0.0
        %3411 = vmatpush1.xpose.msra.mxu0 0.0
        %3412 = vmatprep.subr.mxu0 0.0
        %3413 = vmatpush1.xpose.msra.mxu0 0.0
        %3414 = vmatprep.subr.mxu0 0.0
        %3415 = vmatpush1.xpose.msra.mxu0 0.0
        %3416 = vmatprep.subr.mxu0 0.0
        %3417 = vmatpush1.xpose.msra.mxu0 0.0
        %3418 = vmatprep.subr.mxu0 0.0
        %3419 = vmatpush1.xpose.msra.mxu0 0.0
        %3420 = vmatprep.subr.mxu0 0.0
        %3421 = vmatpush1.xpose.msra.mxu0 0.0
        %3422 = vmatprep.subr.mxu0 0.0
        %3423 = vmatpush1.xpose.msra.mxu0 0.0
        %3424 = vmatprep.mubr.f32.mxu0 0.0
        %3425 = vmatmul.mubr.f32.gmra.mrb[0].mxu0 %v3349
        %v3426 = vpop.f32.mrb[0].mxu0
        %v3427 = vadd.f32 %v3306, %v3426
        %v3428 = vpop.f32.mrb[0].mxu0
        %3429 = vmatprep.mubr.f32.mxu0 0.0
        %3430 = vmatmul.mubr.f32.gmra.mrb[0].mxu0 %v3352
        %v3431 = vpop.f32.mrb[0].mxu0
        %v3432 = vadd.f32 %v3307, %v3431
        %v3433 = vpop.f32.mrb[0].mxu0
        %3434 = vdwg.mxu0
        %v3435 = vsel %vm980, %v3427, -inf
        %v3436 = vsel %vm980, %v3432, -inf
        %v3437 = vmax.f32 %v3435, %v3436
        %v3438 = vrot.slane %v3437, 4
        %v3439 = vmax.f32 %v3437, %v3438
        %v3440 = vrot.slane %v3439, 2
        %v3441 = vmax.f32 %v3439, %v3440
        %v3442 = vrot.slane %v3441, 1
        %v3443 = vmax.f32 %v3441, %v3442
        %v3444 = vsub.f32 %v3427, %v3443
        %v3445 = vsub.f32 %v3432, %v3443
        %v3446 = vmul.f32 %v3444, 1.442695
        %v3447 = vpow.pop %v3446
        %v3448 = vmul.f32 %v3445, 1.442695
        %v3449 = vpow.pop %v3448
        %v3450 = vsel %vm980, %v3447, 0.0
        %v3451 = vsel %vm980, %v3449, 0.0
        %v3452 = vadd.f32 %v3450, %v3451
        %v3453 = vrot.slane %v3452, 4
        %v3454 = vadd.f32 %v3452, %v3453
        %v3455 = vrot.slane %v3454, 2
        %v3456 = vadd.f32 %v3454, %v3455
        %v3457 = vrot.slane %v3456, 1
        %v3458 = vadd.f32 %v3456, %v3457
        %v3459 = vrcp.pop %v3458
        %v3460 = vmul.f32 %v3447, %v3459
        %v3461 = vmul.f32 %v3449, %v3459
        %v3463 = vsel %vm980, %v3303, 0
        %v3466 = vsel %vm980, %v3304, 0
        %3468 = vmatprep.subr.mxu0 0.0
        %3469 = vmatpush1.msra.mxu0 %v3460
        %3470 = vmatprep.subr.mxu0 0.0
        %3471 = vmatpush1.msra.mxu0 %v3461
        %3472 = vmatprep.subr.mxu0 0.0
        %3473 = vmatpush1.msra.mxu0 0.0
        %3474 = vmatprep.subr.mxu0 0.0
        %3475 = vmatpush1.msra.mxu0 0.0
        %3476 = vmatprep.subr.mxu0 0.0
        %3477 = vmatpush1.msra.mxu0 0.0
        %3478 = vmatprep.subr.mxu0 0.0
        %3479 = vmatpush1.msra.mxu0 0.0
        %3480 = vmatprep.subr.mxu0 0.0
        %3481 = vmatpush1.msra.mxu0 0.0
        %3482 = vmatprep.subr.mxu0 0.0
        %3483 = vmatpush1.msra.mxu0 0.0
        %3484 = vmatprep.subr.mxu0 0.0
        %3485 = vmatpush1.msra.mxu0 0.0
        %3486 = vmatprep.subr.mxu0 0.0
        %3487 = vmatpush1.msra.mxu0 0.0
        %3488 = vmatprep.subr.mxu0 0.0
        %3489 = vmatpush1.msra.mxu0 0.0
        %3490 = vmatprep.subr.mxu0 0.0
        %3491 = vmatpush1.msra.mxu0 0.0
        %3492 = vmatprep.subr.mxu0 0.0
        %3493 = vmatpush1.msra.mxu0 0.0
        %3494 = vmatprep.subr.mxu0 0.0
        %3495 = vmatpush1.msra.mxu0 0.0
        %3496 = vmatprep.subr.mxu0 0.0
        %3497 = vmatpush1.msra.mxu0 0.0
        %3498 = vmatprep.subr.mxu0 0.0
        %3499 = vmatpush1.msra.mxu0 0.0
        %3500 = vmatprep.subr.mxu0 0.0
        %3501 = vmatpush1.msra.mxu0 0.0
        %3502 = vmatprep.subr.mxu0 0.0
        %3503 = vmatpush1.msra.mxu0 0.0
        %3504 = vmatprep.subr.mxu0 0.0
        %3505 = vmatpush1.msra.mxu0 0.0
        %3506 = vmatprep.subr.mxu0 0.0
        %3507 = vmatpush1.msra.mxu0 0.0
        %3508 = vmatprep.subr.mxu0 0.0
        %3509 = vmatpush1.msra.mxu0 0.0
        %3510 = vmatprep.subr.mxu0 0.0
        %3511 = vmatpush1.msra.mxu0 0.0
        %3512 = vmatprep.subr.mxu0 0.0
        %3513 = vmatpush1.msra.mxu0 0.0
        %3514 = vmatprep.subr.mxu0 0.0
        %3515 = vmatpush1.msra.mxu0 0.0
        %3516 = vmatprep.subr.mxu0 0.0
        %3517 = vmatpush1.msra.mxu0 0.0
        %3518 = vmatprep.subr.mxu0 0.0
        %3519 = vmatpush1.msra.mxu0 0.0
        %3520 = vmatprep.subr.mxu0 0.0
        %3521 = vmatpush1.msra.mxu0 0.0
        %3522 = vmatprep.subr.mxu0 0.0
        %3523 = vmatpush1.msra.mxu0 0.0
        %3524 = vmatprep.subr.mxu0 0.0
        %3525 = vmatpush1.msra.mxu0 0.0
        %3526 = vmatprep.subr.mxu0 0.0
        %3527 = vmatpush1.msra.mxu0 0.0
        %3528 = vmatprep.subr.mxu0 0.0
        %3529 = vmatpush1.msra.mxu0 0.0
        %3530 = vmatprep.subr.mxu0 0.0
        %3531 = vmatpush1.msra.mxu0 0.0
        %3532 = vmatprep.mubr.f32.mxu0 0.0
        %3533 = vmatmul.mubr.f32.gmra.mrb[0].mxu0 %v3463
        %v3534 = vpop.f32.mrb[0].mxu0
        %v3535 = vadd.f32 0.0, %v3534
        %v3536 = vpop.f32.mrb[0].mxu0
        %3537 = vmatprep.mubr.f32.mxu0 0.0
        %3538 = vmatmul.mubr.f32.gmra.mrb[0].mxu0 %v3466
        %v3539 = vpop.f32.mrb[0].mxu0
        %v3540 = vadd.f32 0.0, %v3539
        %v3541 = vpop.f32.mrb[0].mxu0
        %3542 = vdwg.mxu0
        %v3543 = vsel %vm980, %v3535, -inf
        %v3544 = vsel %vm980, %v3540, -inf
        %v3545 = vmax.f32 %v3543, %v3544
        %v3546 = vrot.slane %v3545, 4
        %v3547 = vmax.f32 %v3545, %v3546
        %v3548 = vrot.slane %v3547, 2
        %v3549 = vmax.f32 %v3547, %v3548
        %v3550 = vrot.slane %v3549, 1
        %v3551 = vmax.f32 %v3549, %v3550
        %v3552 = vsub.f32 %v3535, %v3551
        %v3553 = vsub.f32 %v3540, %v3551
        %v3554 = vmul.f32 %v3552, 1.442695
        %v3555 = vpow.pop %v3554
        %v3556 = vmul.f32 %v3553, 1.442695
        %v3557 = vpow.pop %v3556
        %v3558 = vsel %vm980, %v3555, 0.0
        %v3559 = vsel %vm980, %v3557, 0.0
        %v3560 = vadd.f32 %v3558, %v3559
        %v3561 = vrot.slane %v3560, 4
        %v3562 = vadd.f32 %v3560, %v3561
        %v3563 = vrot.slane %v3562, 2
        %v3564 = vadd.f32 %v3562, %v3563
        %v3565 = vrot.slane %v3564, 1
        %v3566 = vadd.f32 %v3564, %v3565
        %v3567 = vrcp.pop %v3566
        %v3568 = vmul.f32 %v3555, %v3567
        %v3569 = vmul.f32 %v3557, %v3567
        %v3570 = vmul.f32 %v843, %v3568
        %v3571 = vmul.f32 %v844, %v3569
        %v3572 = vsel %vm980, %v3570, 0.0
        %3573 = vadd.xlane.f32.xlu0 %v3572
        %v3574 = vpop.xlane.xlu0 %3573
        %v3575 = vsel %vm980, %v3571, 0.0
        %3576 = vadd.xlane.f32.xlu0 %v3575
        %v3577 = vpop.xlane.xlu0 %3576
        %vm3578 = vcmp.gt.f32.partialorder %v3574, 0.0
        %vm3579 = vcmp.gt.f32.partialorder %v3577, 0.0
        %v3580 = vrsqrt.pop %v3574
        %v3581 = vrsqrt.pop %v3577
        %v3582 = vsel %vm3578, %v3580, 0.0
        %v3583 = vsel %vm3579, %v3581, 0.0
        %v3584 = vmul.f32 %v3582, %v3570
        %v3585 = vmul.f32 %v3583, %v3571
        %v3586 = vmul.f32 %v3582, %v3300
        %v3587 = vmul.f32 %v3583, %v3301
        %v3589 = vsel %vm980, %v3584, 0
        %v3592 = vsel %vm980, %v3585, 0
        %3594 = vmatprep.subr.mxu0 0.0
        %3595 = vmatpush1.msra.mxu0 %v3586
        %3596 = vmatprep.subr.mxu0 0.0
        %3597 = vmatpush1.msra.mxu0 %v3587
        %3598 = vmatprep.subr.mxu0 0.0
        %3599 = vmatpush1.msra.mxu0 0.0
        %3600 = vmatprep.subr.mxu0 0.0
        %3601 = vmatpush1.msra.mxu0 0.0
        %3602 = vmatprep.subr.mxu0 0.0
        %3603 = vmatpush1.msra.mxu0 0.0
        %3604 = vmatprep.subr.mxu0 0.0
        %3605 = vmatpush1.msra.mxu0 0.0
        %3606 = vmatprep.subr.mxu0 0.0
        %3607 = vmatpush1.msra.mxu0 0.0
        %3608 = vmatprep.subr.mxu0 0.0
        %3609 = vmatpush1.msra.mxu0 0.0
        %3610 = vmatprep.subr.mxu0 0.0
        %3611 = vmatpush1.msra.mxu0 0.0
        %3612 = vmatprep.subr.mxu0 0.0
        %3613 = vmatpush1.msra.mxu0 0.0
        %3614 = vmatprep.subr.mxu0 0.0
        %3615 = vmatpush1.msra.mxu0 0.0
        %3616 = vmatprep.subr.mxu0 0.0
        %3617 = vmatpush1.msra.mxu0 0.0
        %3618 = vmatprep.subr.mxu0 0.0
        %3619 = vmatpush1.msra.mxu0 0.0
        %3620 = vmatprep.subr.mxu0 0.0
        %3621 = vmatpush1.msra.mxu0 0.0
        %3622 = vmatprep.subr.mxu0 0.0
        %3623 = vmatpush1.msra.mxu0 0.0
        %3624 = vmatprep.subr.mxu0 0.0
        %3625 = vmatpush1.msra.mxu0 0.0
        %3626 = vmatprep.subr.mxu0 0.0
        %3627 = vmatpush1.msra.mxu0 0.0
        %3628 = vmatprep.subr.mxu0 0.0
        %3629 = vmatpush1.msra.mxu0 0.0
        %3630 = vmatprep.subr.mxu0 0.0
        %3631 = vmatpush1.msra.mxu0 0.0
        %3632 = vmatprep.subr.mxu0 0.0
        %3633 = vmatpush1.msra.mxu0 0.0
        %3634 = vmatprep.subr.mxu0 0.0
        %3635 = vmatpush1.msra.mxu0 0.0
        %3636 = vmatprep.subr.mxu0 0.0
        %3637 = vmatpush1.msra.mxu0 0.0
        %3638 = vmatprep.subr.mxu0 0.0
        %3639 = vmatpush1.msra.mxu0 0.0
        %3640 = vmatprep.subr.mxu0 0.0
        %3641 = vmatpush1.msra.mxu0 0.0
        %3642 = vmatprep.subr.mxu0 0.0
        %3643 = vmatpush1.msra.mxu0 0.0
        %3644 = vmatprep.subr.mxu0 0.0
        %3645 = vmatpush1.msra.mxu0 0.0
        %3646 = vmatprep.subr.mxu0 0.0
        %3647 = vmatpush1.msra.mxu0 0.0
        %3648 = vmatprep.subr.mxu0 0.0
        %3649 = vmatpush1.msra.mxu0 0.0
        %3650 = vmatprep.subr.mxu0 0.0
        %3651 = vmatpush1.msra.mxu0 0.0
        %3652 = vmatprep.subr.mxu0 0.0
        %3653 = vmatpush1.msra.mxu0 0.0
        %3654 = vmatprep.subr.mxu0 0.0
        %3655 = vmatpush1.msra.mxu0 0.0
        %3656 = vmatprep.subr.mxu0 0.0
        %3657 = vmatpush1.msra.mxu0 0.0
        %3658 = vmatprep.mubr.f32.mxu0 0.0
        %3659 = vmatmul.mubr.f32.gmra.mrb[0].mxu0 %v3589
        %v3660 = vpop.f32.mrb[0].mxu0
        %v3661 = vadd.f32 0.0, %v3660
        %v3662 = vpop.f32.mrb[0].mxu0
        %3663 = vmatprep.mubr.f32.mxu0 0.0
        %3664 = vmatmul.mubr.f32.gmra.mrb[0].mxu0 %v3592
        %v3665 = vpop.f32.mrb[0].mxu0
        %v3666 = vadd.f32 0.0, %v3665
        %v3667 = vpop.f32.mrb[0].mxu0
        %3668 = vdwg.mxu0
        %v3669 = vsub.f32 0.0, %v3661
        %v3670 = vsub.f32 0.0, %v3666
        %v3671 = vmul.f32 %v3582, %v3669
        %v3672 = vmul.f32 %v3583, %v3670
        %3673 = vmatprep.subr.mxu0 0.0
        %3674 = vmatpush1.msra.mxu0 %v3671
        %3675 = vmatprep.subr.mxu0 0.0
        %3676 = vmatpush1.msra.mxu0 %v3672
        %3677 = vmatprep.subr.mxu0 0.0
        %3678 = vmatpush1.msra.mxu0 0.0
        %3679 = vmatprep.subr.mxu0 0.0
        %3680 = vmatpush1.msra.mxu0 0.0
        %3681 = vmatprep.subr.mxu0 0.0
        %3682 = vmatpush1.msra.mxu0 0.0
        %3683 = vmatprep.subr.mxu0 0.0
        %3684 = vmatpush1.msra.mxu0 0.0
        %3685 = vmatprep.subr.mxu0 0.0
        %3686 = vmatpush1.msra.mxu0 0.0
        %3687 = vmatprep.subr.mxu0 0.0
        %3688 = vmatpush1.msra.mxu0 0.0
        %3689 = vmatprep.subr.mxu0 0.0
        %3690 = vmatpush1.msra.mxu0 0.0
        %3691 = vmatprep.subr.mxu0 0.0
        %3692 = vmatpush1.msra.mxu0 0.0
        %3693 = vmatprep.subr.mxu0 0.0
        %3694 = vmatpush1.msra.mxu0 0.0
        %3695 = vmatprep.subr.mxu0 0.0
        %3696 = vmatpush1.msra.mxu0 0.0
        %3697 = vmatprep.subr.mxu0 0.0
        %3698 = vmatpush1.msra.mxu0 0.0
        %3699 = vmatprep.subr.mxu0 0.0
        %3700 = vmatpush1.msra.mxu0 0.0
        %3701 = vmatprep.subr.mxu0 0.0
        %3702 = vmatpush1.msra.mxu0 0.0
        %3703 = vmatprep.subr.mxu0 0.0
        %3704 = vmatpush1.msra.mxu0 0.0
        %3705 = vmatprep.subr.mxu0 0.0
        %3706 = vmatpush1.msra.mxu0 0.0
        %3707 = vmatprep.subr.mxu0 0.0
        %3708 = vmatpush1.msra.mxu0 0.0
        %3709 = vmatprep.subr.mxu0 0.0
        %3710 = vmatpush1.msra.mxu0 0.0
        %3711 = vmatprep.subr.mxu0 0.0
        %3712 = vmatpush1.msra.mxu0 0.0
        %3713 = vmatprep.subr.mxu0 0.0
        %3714 = vmatpush1.msra.mxu0 0.0
        %3715 = vmatprep.subr.mxu0 0.0
        %3716 = vmatpush1.msra.mxu0 0.0
        %3717 = vmatprep.subr.mxu0 0.0
        %3718 = vmatpush1.msra.mxu0 0.0
        %3719 = vmatprep.subr.mxu0 0.0
        %3720 = vmatpush1.msra.mxu0 0.0
        %3721 = vmatprep.subr.mxu0 0.0
        %3722 = vmatpush1.msra.mxu0 0.0
        %3723 = vmatprep.subr.mxu0 0.0
        %3724 = vmatpush1.msra.mxu0 0.0
        %3725 = vmatprep.subr.mxu0 0.0
        %3726 = vmatpush1.msra.mxu0 0.0
        %3727 = vmatprep.subr.mxu0 0.0
        %3728 = vmatpush1.msra.mxu0 0.0
        %3729 = vmatprep.subr.mxu0 0.0
        %3730 = vmatpush1.msra.mxu0 0.0
        %3731 = vmatprep.subr.mxu0 0.0
        %3732 = vmatpush1.msra.mxu0 0.0
        %3733 = vmatprep.subr.mxu0 0.0
        %3734 = vmatpush1.msra.mxu0 0.0
        %3735 = vmatprep.subr.mxu0 0.0
        %3736 = vmatpush1.msra.mxu0 0.0
        %3737 = vmatprep.mubr.f32.mxu0 0.0
        %3738 = vmatmul.mubr.f32.gmra.mrb[0].mxu0 %v3589
        %v3739 = vpop.f32.mrb[0].mxu0
        %v3740 = vadd.f32 0.0, %v3739
        %v3741 = vpop.f32.mrb[0].mxu0
        %3742 = vmatprep.mubr.f32.mxu0 0.0
        %3743 = vmatmul.mubr.f32.gmra.mrb[0].mxu0 %v3592
        %v3744 = vpop.f32.mrb[0].mxu0
        %v3745 = vadd.f32 0.0, %v3744
        %v3746 = vpop.f32.mrb[0].mxu0
        %3747 = vdwg.mxu0
        %v3748 = vmul.f32 %v3740, -2.0
        %v3749 = vmul.f32 %v3745, -2.0
        %v3750 = vsub.f32 %v3748, %v3300
        %v3751 = vsub.f32 %v3749, %v3301
        %3754 = vrot.lane.b32.xlu0 %v3669, 8
        %v3755 = vpop.permute.xlu0 %3754
        %3756 = vrot.lane.b32.xlu0 %v3670, 8
        %v3757 = vpop.permute.xlu0 %3756
        %3762 = vrot.lane.b32.xlu0 %v3750, 16
        %v3763 = vpop.permute.xlu0 %3762
        %3764 = vrot.lane.b32.xlu0 %v3751, 16
        %v3765 = vpop.permute.xlu0 %3764
        %v3768 = vsel %vm875, %v3300, %v3755
        %v3769 = vsel %vm875, %v3301, %v3757
        %v3770 = vsel %vm980, %v3768, %v3763
        %v3771 = vsel %vm980, %v3769, %v3765
        %v3773 = vlaneseq
        %v3774 = vshrl.u32 %v3773, 7
        %v3775 = vsub.s32 0, %v3774
        %v3776 = vrot.slane %v3318, %v3775
        %v3779 = vsel %vm1324, %v3770, 0
        %v3782 = vsel %vm1324, %v3771, 0
        %3784 = vmatprep.subr.mxu0 0.0
        %3785 = vmatpush1.msra.mxu0 %v3314
        %3786 = vmatprep.subr.mxu0 0.0
        %3787 = vmatpush1.msra.mxu0 %v3315
        %3788 = vmatprep.subr.mxu0 0.0
        %3789 = vmatpush1.msra.mxu0 %v3316
        %3790 = vmatprep.subr.mxu0 0.0
        %3791 = vmatpush1.msra.mxu0 0.0
        %3792 = vmatprep.subr.mxu0 0.0
        %3793 = vmatpush1.msra.mxu0 0.0
        %3794 = vmatprep.subr.mxu0 0.0
        %3795 = vmatpush1.msra.mxu0 0.0
        %3796 = vmatprep.subr.mxu0 0.0
        %3797 = vmatpush1.msra.mxu0 0.0
        %3798 = vmatprep.subr.mxu0 0.0
        %3799 = vmatpush1.msra.mxu0 0.0
        %3800 = vmatprep.subr.mxu0 0.0
        %3801 = vmatpush1.msra.mxu0 0.0
        %3802 = vmatprep.subr.mxu0 0.0
        %3803 = vmatpush1.msra.mxu0 0.0
        %3804 = vmatprep.subr.mxu0 0.0
        %3805 = vmatpush1.msra.mxu0 0.0
        %3806 = vmatprep.subr.mxu0 0.0
        %3807 = vmatpush1.msra.mxu0 0.0
        %3808 = vmatprep.subr.mxu0 0.0
        %3809 = vmatpush1.msra.mxu0 0.0
        %3810 = vmatprep.subr.mxu0 0.0
        %3811 = vmatpush1.msra.mxu0 0.0
        %3812 = vmatprep.subr.mxu0 0.0
        %3813 = vmatpush1.msra.mxu0 0.0
        %3814 = vmatprep.subr.mxu0 0.0
        %3815 = vmatpush1.msra.mxu0 0.0
        %3816 = vmatprep.subr.mxu0 0.0
        %3817 = vmatpush1.msra.mxu0 0.0
        %3818 = vmatprep.subr.mxu0 0.0
        %3819 = vmatpush1.msra.mxu0 0.0
        %3820 = vmatprep.subr.mxu0 0.0
        %3821 = vmatpush1.msra.mxu0 0.0
        %3822 = vmatprep.subr.mxu0 0.0
        %3823 = vmatpush1.msra.mxu0 0.0
        %3824 = vmatprep.subr.mxu0 0.0
        %3825 = vmatpush1.msra.mxu0 0.0
        %3826 = vmatprep.subr.mxu0 0.0
        %3827 = vmatpush1.msra.mxu0 0.0
        %3828 = vmatprep.subr.mxu0 0.0
        %3829 = vmatpush1.msra.mxu0 0.0
        %3830 = vmatprep.subr.mxu0 0.0
        %3831 = vmatpush1.msra.mxu0 0.0
        %3832 = vmatprep.subr.mxu0 0.0
        %3833 = vmatpush1.msra.mxu0 0.0
        %3834 = vmatprep.subr.mxu0 0.0
        %3835 = vmatpush1.msra.mxu0 0.0
        %3836 = vmatprep.subr.mxu0 0.0
        %3837 = vmatpush1.msra.mxu0 0.0
        %3838 = vmatprep.subr.mxu0 0.0
        %3839 = vmatpush1.msra.mxu0 0.0
        %3840 = vmatprep.subr.mxu0 0.0
        %3841 = vmatpush1.msra.mxu0 0.0
        %3842 = vmatprep.subr.mxu0 0.0
        %3843 = vmatpush1.msra.mxu0 0.0
        %3844 = vmatprep.subr.mxu0 0.0
        %3845 = vmatpush1.msra.mxu0 0.0
        %3846 = vmatprep.subr.mxu0 0.0
        %3847 = vmatpush1.msra.mxu0 0.0
        %3848 = vmatprep.mubr.f32.mxu0 0.0
        %3849 = vmatmul.mubr.f32.gmra.mrb[0].mxu0 %v3779
        %v3850 = vpop.f32.mrb[0].mxu0
        %v3851 = vadd.f32 %v3776, %v3850
        %v3852 = vpop.f32.mrb[0].mxu0
        %3853 = vmatprep.mubr.f32.mxu0 0.0
        %3854 = vmatmul.mubr.f32.gmra.mrb[0].mxu0 %v3782
        %v3855 = vpop.f32.mrb[0].mxu0
        %v3856 = vadd.f32 %v3776, %v3855
        %v3857 = vpop.f32.mrb[0].mxu0
        %3858 = vdwg.mxu0
        %v3859 = vmax.f32 %v3851, 0.0
        %v3860 = vmax.f32 %v3856, 0.0
        %3861 = vrot.lane.b32.xlu0 %v3859, 64
        %v3862 = vpop.permute.xlu0 %3861
        %v3863 = vsel %vm1408, %v3862, %v3859
        %3864 = vrot.lane.b32.xlu0 %v3860, 64
        %v3865 = vpop.permute.xlu0 %3864
        %v3866 = vsel %vm1408, %v3865, %v3860
        %3867 = vrot.lane.b32.xlu0 %v3863, 64
        %v3868 = vpop.permute.xlu0 %3867
        %3869 = vrot.lane.b32.xlu0 %v3866, 64
        %v3870 = vpop.permute.xlu0 %3869
        %v3871 = vsel %vm1408, %v3868, %v3859
        %v3872 = vsel %vm1408, %v3870, %v3860
        %3875 = vrot.lane.b32.xlu0 %v3871, 65
        %v3876 = vpop.permute.xlu0 %3875
        %3877 = vrot.lane.b32.xlu0 %v3872, 65
        %v3878 = vpop.permute.xlu0 %3877
        %v3881 = vsel %vm847, 0.0, %v3876
        %v3882 = vsel %vm847, 0.0, %v3878
        %3883 = vrot.lane.b32.xlu0 %v3871, 127
        %v3884 = vpop.permute.xlu0 %3883
        %3885 = vrot.lane.b32.xlu0 %v3872, 127
        %v3886 = vpop.permute.xlu0 %3885
        %v3889 = vsel %vm848, 0.0, %v3884
        %v3890 = vsel %vm848, 0.0, %v3886
        %v3891 = vstv %s3319
        %v3892 = vmul.f32 %v3891, %v3881
        %v3893 = vmul.f32 %v3891, %v3882
        %v3894 = vstv %s3320
        %v3895 = vmul.f32 %v3894, %v3859
        %v3896 = vmul.f32 %v3894, %v3860
        %v3897 = vadd.f32 %v3892, %v3895
        %v3898 = vadd.f32 %v3893, %v3896
        %v3899 = vstv %s3321
        %v3900 = vmul.f32 %v3899, %v3889
        %v3901 = vmul.f32 %v3899, %v3890
        %v3902 = vadd.f32 %v3897, %v3900
        %v3903 = vadd.f32 %v3898, %v3901
        %v3904 = vstv %s3322
        %v3905 = vadd.f32 %v3902, %v3904
        %v3906 = vadd.f32 %v3903, %v3904
        %v3907 = vmax.f32 %v3905, 0.0
        %v3908 = vmax.f32 %v3906, 0.0
        %s3909 = scalar_lea.vmem %s11, 32
        %v3910 = vld [vmem:[%s3909] sm:$0xff]
        %v3911 = vld [vmem:[%s3909 + $0x8] sm:$0xff]
        %s3912 = scalar_lea.vmem %s12, 32
        %v3913 = vld [vmem:[%s3912] sm:$0xff]
        %v3914 = vld [vmem:[%s3912 + $0x8] sm:$0xff]
        %s3915 = scalar_lea.vmem %s13, 2
        %v3916 = vld [vmem:[%s3915] sm:$0x1]
        %s3917 = scalar_lea.vmem %s14, 2
        %v3918 = vld [vmem:[%s3917] sm:$0x1]
        %s3919 = sld [smem:[#allocation8 + $0x2]]
        %s3920 = scalar_lea.vmem %s16, 384
        %v3921 = vld [vmem:[%s3920] sm:$0xff]
        %v3922 = vld [vmem:[%s3920 + $0x8] sm:$0xff]
        %v3923 = vld [vmem:[%s3920 + $0x10] sm:$0xff]
        %v3924 = vld [vmem:[%s3920 + $0x18] sm:$0xff]
        %v3925 = vld [vmem:[%s3920 + $0x20] sm:$0xff]
        %v3926 = vld [vmem:[%s3920 + $0x28] sm:$0xff]
        %v3927 = vld [vmem:[%s3920 + $0x30] sm:$0xff]
        %v3928 = vld [vmem:[%s3920 + $0x38] sm:$0xff]
        %v3929 = vld [vmem:[%s3920 + $0x40] sm:$0xff]
        %v3930 = vld [vmem:[%s3920 + $0x48] sm:$0xff]
        %v3931 = vld [vmem:[%s3920 + $0x50] sm:$0xff]
        %v3932 = vld [vmem:[%s3920 + $0x58] sm:$0xff]
        %v3933 = vld [vmem:[%s3920 + $0x60] sm:$0xff]
        %v3934 = vld [vmem:[%s3920 + $0x68] sm:$0xff]
        %v3935 = vld [vmem:[%s3920 + $0x70] sm:$0xff]
        %v3936 = vld [vmem:[%s3920 + $0x78] sm:$0xff]
        %v3937 = vld [vmem:[%s3920 + $0x80] sm:$0xff]
        %v3938 = vld [vmem:[%s3920 + $0x88] sm:$0xff]
        %v3939 = vld [vmem:[%s3920 + $0x90] sm:$0xff]
        %v3940 = vld [vmem:[%s3920 + $0x98] sm:$0xff]
        %v3941 = vld [vmem:[%s3920 + $0xa0] sm:$0xff]
        %v3942 = vld [vmem:[%s3920 + $0xa8] sm:$0xff]
        %v3943 = vld [vmem:[%s3920 + $0xb0] sm:$0xff]
        %v3944 = vld [vmem:[%s3920 + $0xb8] sm:$0xff]
        %s3945 = scalar_lea.vmem %s17, 2
        %v3946 = vld [vmem:[%s3945] sm:$0x1]
        %s3947 = sld [smem:[#allocation10 + $0x100]]
        %s3948 = sld [smem:[#allocation10 + $0x101]]
        %s3949 = sld [smem:[#allocation10 + $0x102]]
        %s3950 = sld [smem:[#allocation11 + $0x2]]
        %v3952 = vlaneseq
        %v3953 = vshrl.u32 %v3952, 7
        %v3954 = vsub.s32 0, %v3953
        %v3955 = vrot.slane %v3916, %v3954
        %v3957 = vmul.f32 %v3907, %v3955
        %v3958 = vmul.f32 %v3908, %v3955
        %v3959 = vsel %vm1501, %v3957, 0.0
        %3960 = vadd.xlane.f32.xlu0 %v3959
        %v3961 = vpop.xlane.xlu0 %3960
        %v3962 = vsel %vm1501, %v3958, 0.0
        %3963 = vadd.xlane.f32.xlu0 %v3962
        %v3964 = vpop.xlane.xlu0 %3963
        %v3966 = vlaneseq
        %v3967 = vshrl.u32 %v3966, 7
        %v3968 = vsub.s32 0, %v3967
        %v3969 = vrot.slane %v3918, %v3968
        %v3971 = vmul.f32 %v3961, %v3969
        %v3972 = vmul.f32 %v3964, %v3969
        %v3973 = vstv %s3919
        %v3974 = vmul.f32 %v3973, %v3907
        %v3975 = vmul.f32 %v3973, %v3908
        %v3977 = vsel %vm1501, %v3971, 0
        %v3980 = vsel %vm1501, %v3972, 0
        %v3983 = vsel %vm1501, %v3974, 0
        %v3986 = vsel %vm1501, %v3975, 0
        %3988 = vmatprep.subr.mxu0 0.0
        %3989 = vmatpush1.xpose.msra.mxu0 %v3983
        %3990 = vmatprep.subr.mxu0 0.0
        %3991 = vmatpush1.xpose.msra.mxu0 %v3986
        %3992 = vmatprep.subr.mxu0 0.0
        %3993 = vmatpush1.xpose.msra.mxu0 0.0
        %3994 = vmatprep.subr.mxu0 0.0
        %3995 = vmatpush1.xpose.msra.mxu0 0.0
        %3996 = vmatprep.subr.mxu0 0.0
        %3997 = vmatpush1.xpose.msra.mxu0 0.0
        %3998 = vmatprep.subr.mxu0 0.0
        %3999 = vmatpush1.xpose.msra.mxu0 0.0
        %4000 = vmatprep.subr.mxu0 0.0
        %4001 = vmatpush1.xpose.msra.mxu0 0.0
        %4002 = vmatprep.subr.mxu0 0.0
        %4003 = vmatpush1.xpose.msra.mxu0 0.0
        %4004 = vmatprep.subr.mxu0 0.0
        %4005 = vmatpush1.xpose.msra.mxu0 0.0
        %4006 = vmatprep.subr.mxu0 0.0
        %4007 = vmatpush1.xpose.msra.mxu0 0.0
        %4008 = vmatprep.subr.mxu0 0.0
        %4009 = vmatpush1.xpose.msra.mxu0 0.0
        %4010 = vmatprep.subr.mxu0 0.0
        %4011 = vmatpush1.xpose.msra.mxu0 0.0
        %4012 = vmatprep.subr.mxu0 0.0
        %4013 = vmatpush1.xpose.msra.mxu0 0.0
        %4014 = vmatprep.subr.mxu0 0.0
        %4015 = vmatpush1.xpose.msra.mxu0 0.0
        %4016 = vmatprep.subr.mxu0 0.0
        %4017 = vmatpush1.xpose.msra.mxu0 0.0
        %4018 = vmatprep.subr.mxu0 0.0
        %4019 = vmatpush1.xpose.msra.mxu0 0.0
        %4020 = vmatprep.subr.mxu0 0.0
        %4021 = vmatpush1.xpose.msra.mxu0 0.0
        %4022 = vmatprep.subr.mxu0 0.0
        %4023 = vmatpush1.xpose.msra.mxu0 0.0
        %4024 = vmatprep.subr.mxu0 0.0
        %4025 = vmatpush1.xpose.msra.mxu0 0.0
        %4026 = vmatprep.subr.mxu0 0.0
        %4027 = vmatpush1.xpose.msra.mxu0 0.0
        %4028 = vmatprep.subr.mxu0 0.0
        %4029 = vmatpush1.xpose.msra.mxu0 0.0
        %4030 = vmatprep.subr.mxu0 0.0
        %4031 = vmatpush1.xpose.msra.mxu0 0.0
        %4032 = vmatprep.subr.mxu0 0.0
        %4033 = vmatpush1.xpose.msra.mxu0 0.0
        %4034 = vmatprep.subr.mxu0 0.0
        %4035 = vmatpush1.xpose.msra.mxu0 0.0
        %4036 = vmatprep.subr.mxu0 0.0
        %4037 = vmatpush1.xpose.msra.mxu0 0.0
        %4038 = vmatprep.subr.mxu0 0.0
        %4039 = vmatpush1.xpose.msra.mxu0 0.0
        %4040 = vmatprep.subr.mxu0 0.0
        %4041 = vmatpush1.xpose.msra.mxu0 0.0
        %4042 = vmatprep.subr.mxu0 0.0
        %4043 = vmatpush1.xpose.msra.mxu0 0.0
        %4044 = vmatprep.subr.mxu0 0.0
        %4045 = vmatpush1.xpose.msra.mxu0 0.0
        %4046 = vmatprep.subr.mxu0 0.0
        %4047 = vmatpush1.xpose.msra.mxu0 0.0
        %4048 = vmatprep.subr.mxu0 0.0
        %4049 = vmatpush1.xpose.msra.mxu0 0.0
        %4050 = vmatprep.subr.mxu0 0.0
        %4051 = vmatpush1.xpose.msra.mxu0 0.0
        %4052 = vmatprep.mubr.f32.mxu0 0.0
        %4053 = vmatmul.mubr.f32.gmra.mrb[0].mxu0 %v3977
        %v4054 = vpop.f32.mrb[0].mxu0
        %v4055 = vadd.f32 %v3913, %v4054
        %v4056 = vpop.f32.mrb[0].mxu0
        %4057 = vmatprep.mubr.f32.mxu0 0.0
        %4058 = vmatmul.mubr.f32.gmra.mrb[0].mxu0 %v3980
        %v4059 = vpop.f32.mrb[0].mxu0
        %v4060 = vadd.f32 %v3914, %v4059
        %v4061 = vpop.f32.mrb[0].mxu0
        %4062 = vdwg.mxu0
        %v4063 = vsel %vm980, %v4055, -inf
        %v4064 = vsel %vm980, %v4060, -inf
        %v4065 = vmax.f32 %v4063, %v4064
        %v4066 = vrot.slane %v4065, 4
        %v4067 = vmax.f32 %v4065, %v4066
        %v4068 = vrot.slane %v4067, 2
        %v4069 = vmax.f32 %v4067, %v4068
        %v4070 = vrot.slane %v4069, 1
        %v4071 = vmax.f32 %v4069, %v4070
        %v4072 = vsub.f32 %v4055, %v4071
        %v4073 = vsub.f32 %v4060, %v4071
        %v4074 = vmul.f32 %v4072, 1.442695
        %v4075 = vpow.pop %v4074
        %v4076 = vmul.f32 %v4073, 1.442695
        %v4077 = vpow.pop %v4076
        %v4078 = vsel %vm980, %v4075, 0.0
        %v4079 = vsel %vm980, %v4077, 0.0
        %v4080 = vadd.f32 %v4078, %v4079
        %v4081 = vrot.slane %v4080, 4
        %v4082 = vadd.f32 %v4080, %v4081
        %v4083 = vrot.slane %v4082, 2
        %v4084 = vadd.f32 %v4082, %v4083
        %v4085 = vrot.slane %v4084, 1
        %v4086 = vadd.f32 %v4084, %v4085
        %v4087 = vrcp.pop %v4086
        %v4088 = vmul.f32 %v4075, %v4087
        %v4089 = vmul.f32 %v4077, %v4087
        %v4091 = vsel %vm980, %v3910, 0
        %v4094 = vsel %vm980, %v3911, 0
        %4096 = vmatprep.subr.mxu0 0.0
        %4097 = vmatpush1.msra.mxu0 %v4088
        %4098 = vmatprep.subr.mxu0 0.0
        %4099 = vmatpush1.msra.mxu0 %v4089
        %4100 = vmatprep.subr.mxu0 0.0
        %4101 = vmatpush1.msra.mxu0 0.0
        %4102 = vmatprep.subr.mxu0 0.0
        %4103 = vmatpush1.msra.mxu0 0.0
        %4104 = vmatprep.subr.mxu0 0.0
        %4105 = vmatpush1.msra.mxu0 0.0
        %4106 = vmatprep.subr.mxu0 0.0
        %4107 = vmatpush1.msra.mxu0 0.0
        %4108 = vmatprep.subr.mxu0 0.0
        %4109 = vmatpush1.msra.mxu0 0.0
        %4110 = vmatprep.subr.mxu0 0.0
        %4111 = vmatpush1.msra.mxu0 0.0
        %4112 = vmatprep.subr.mxu0 0.0
        %4113 = vmatpush1.msra.mxu0 0.0
        %4114 = vmatprep.subr.mxu0 0.0
        %4115 = vmatpush1.msra.mxu0 0.0
        %4116 = vmatprep.subr.mxu0 0.0
        %4117 = vmatpush1.msra.mxu0 0.0
        %4118 = vmatprep.subr.mxu0 0.0
        %4119 = vmatpush1.msra.mxu0 0.0
        %4120 = vmatprep.subr.mxu0 0.0
        %4121 = vmatpush1.msra.mxu0 0.0
        %4122 = vmatprep.subr.mxu0 0.0
        %4123 = vmatpush1.msra.mxu0 0.0
        %4124 = vmatprep.subr.mxu0 0.0
        %4125 = vmatpush1.msra.mxu0 0.0
        %4126 = vmatprep.subr.mxu0 0.0
        %4127 = vmatpush1.msra.mxu0 0.0
        %4128 = vmatprep.subr.mxu0 0.0
        %4129 = vmatpush1.msra.mxu0 0.0
        %4130 = vmatprep.subr.mxu0 0.0
        %4131 = vmatpush1.msra.mxu0 0.0
        %4132 = vmatprep.subr.mxu0 0.0
        %4133 = vmatpush1.msra.mxu0 0.0
        %4134 = vmatprep.subr.mxu0 0.0
        %4135 = vmatpush1.msra.mxu0 0.0
        %4136 = vmatprep.subr.mxu0 0.0
        %4137 = vmatpush1.msra.mxu0 0.0
        %4138 = vmatprep.subr.mxu0 0.0
        %4139 = vmatpush1.msra.mxu0 0.0
        %4140 = vmatprep.subr.mxu0 0.0
        %4141 = vmatpush1.msra.mxu0 0.0
        %4142 = vmatprep.subr.mxu0 0.0
        %4143 = vmatpush1.msra.mxu0 0.0
        %4144 = vmatprep.subr.mxu0 0.0
        %4145 = vmatpush1.msra.mxu0 0.0
        %4146 = vmatprep.subr.mxu0 0.0
        %4147 = vmatpush1.msra.mxu0 0.0
        %4148 = vmatprep.subr.mxu0 0.0
        %4149 = vmatpush1.msra.mxu0 0.0
        %4150 = vmatprep.subr.mxu0 0.0
        %4151 = vmatpush1.msra.mxu0 0.0
        %4152 = vmatprep.subr.mxu0 0.0
        %4153 = vmatpush1.msra.mxu0 0.0
        %4154 = vmatprep.subr.mxu0 0.0
        %4155 = vmatpush1.msra.mxu0 0.0
        %4156 = vmatprep.subr.mxu0 0.0
        %4157 = vmatpush1.msra.mxu0 0.0
        %4158 = vmatprep.subr.mxu0 0.0
        %4159 = vmatpush1.msra.mxu0 0.0
        %4160 = vmatprep.mubr.f32.mxu0 0.0
        %4161 = vmatmul.mubr.f32.gmra.mrb[0].mxu0 %v4091
        %v4162 = vpop.f32.mrb[0].mxu0
        %v4163 = vadd.f32 0.0, %v4162
        %v4164 = vpop.f32.mrb[0].mxu0
        %4165 = vmatprep.mubr.f32.mxu0 0.0
        %4166 = vmatmul.mubr.f32.gmra.mrb[0].mxu0 %v4094
        %v4167 = vpop.f32.mrb[0].mxu0
        %v4168 = vadd.f32 0.0, %v4167
        %v4169 = vpop.f32.mrb[0].mxu0
        %4170 = vdwg.mxu0
        %v4171 = vsel %vm980, %v4163, -inf
        %v4172 = vsel %vm980, %v4168, -inf
        %v4173 = vmax.f32 %v4171, %v4172
        %v4174 = vrot.slane %v4173, 4
        %v4175 = vmax.f32 %v4173, %v4174
        %v4176 = vrot.slane %v4175, 2
        %v4177 = vmax.f32 %v4175, %v4176
        %v4178 = vrot.slane %v4177, 1
        %v4179 = vmax.f32 %v4177, %v4178
        %v4180 = vsub.f32 %v4163, %v4179
        %v4181 = vsub.f32 %v4168, %v4179
        %v4182 = vmul.f32 %v4180, 1.442695
        %v4183 = vpow.pop %v4182
        %v4184 = vmul.f32 %v4181, 1.442695
        %v4185 = vpow.pop %v4184
        %v4186 = vsel %vm980, %v4183, 0.0
        %v4187 = vsel %vm980, %v4185, 0.0
        %v4188 = vadd.f32 %v4186, %v4187
        %v4189 = vrot.slane %v4188, 4
        %v4190 = vadd.f32 %v4188, %v4189
        %v4191 = vrot.slane %v4190, 2
        %v4192 = vadd.f32 %v4190, %v4191
        %v4193 = vrot.slane %v4192, 1
        %v4194 = vadd.f32 %v4192, %v4193
        %v4195 = vrcp.pop %v4194
        %v4196 = vmul.f32 %v4183, %v4195
        %v4197 = vmul.f32 %v4185, %v4195
        %v4198 = vmul.f32 %v843, %v4196
        %v4199 = vmul.f32 %v844, %v4197
        %v4200 = vsel %vm980, %v4198, 0.0
        %4201 = vadd.xlane.f32.xlu0 %v4200
        %v4202 = vpop.xlane.xlu0 %4201
        %v4203 = vsel %vm980, %v4199, 0.0
        %4204 = vadd.xlane.f32.xlu0 %v4203
        %v4205 = vpop.xlane.xlu0 %4204
        %vm4206 = vcmp.gt.f32.partialorder %v4202, 0.0
        %vm4207 = vcmp.gt.f32.partialorder %v4205, 0.0
        %v4208 = vrsqrt.pop %v4202
        %v4209 = vrsqrt.pop %v4205
        %v4210 = vsel %vm4206, %v4208, 0.0
        %v4211 = vsel %vm4207, %v4209, 0.0
        %v4212 = vmul.f32 %v4210, %v4198
        %v4213 = vmul.f32 %v4211, %v4199
        %v4214 = vmul.f32 %v4210, %v3907
        %v4215 = vmul.f32 %v4211, %v3908
        %v4217 = vsel %vm980, %v4212, 0
        %v4220 = vsel %vm980, %v4213, 0
        %4222 = vmatprep.subr.mxu0 0.0
        %4223 = vmatpush1.msra.mxu0 %v4214
        %4224 = vmatprep.subr.mxu0 0.0
        %4225 = vmatpush1.msra.mxu0 %v4215
        %4226 = vmatprep.subr.mxu0 0.0
        %4227 = vmatpush1.msra.mxu0 0.0
        %4228 = vmatprep.subr.mxu0 0.0
        %4229 = vmatpush1.msra.mxu0 0.0
        %4230 = vmatprep.subr.mxu0 0.0
        %4231 = vmatpush1.msra.mxu0 0.0
        %4232 = vmatprep.subr.mxu0 0.0
        %4233 = vmatpush1.msra.mxu0 0.0
        %4234 = vmatprep.subr.mxu0 0.0
        %4235 = vmatpush1.msra.mxu0 0.0
        %4236 = vmatprep.subr.mxu0 0.0
        %4237 = vmatpush1.msra.mxu0 0.0
        %4238 = vmatprep.subr.mxu0 0.0
        %4239 = vmatpush1.msra.mxu0 0.0
        %4240 = vmatprep.subr.mxu0 0.0
        %4241 = vmatpush1.msra.mxu0 0.0
        %4242 = vmatprep.subr.mxu0 0.0
        %4243 = vmatpush1.msra.mxu0 0.0
        %4244 = vmatprep.subr.mxu0 0.0
        %4245 = vmatpush1.msra.mxu0 0.0
        %4246 = vmatprep.subr.mxu0 0.0
        %4247 = vmatpush1.msra.mxu0 0.0
        %4248 = vmatprep.subr.mxu0 0.0
        %4249 = vmatpush1.msra.mxu0 0.0
        %4250 = vmatprep.subr.mxu0 0.0
        %4251 = vmatpush1.msra.mxu0 0.0
        %4252 = vmatprep.subr.mxu0 0.0
        %4253 = vmatpush1.msra.mxu0 0.0
        %4254 = vmatprep.subr.mxu0 0.0
        %4255 = vmatpush1.msra.mxu0 0.0
        %4256 = vmatprep.subr.mxu0 0.0
        %4257 = vmatpush1.msra.mxu0 0.0
        %4258 = vmatprep.subr.mxu0 0.0
        %4259 = vmatpush1.msra.mxu0 0.0
        %4260 = vmatprep.subr.mxu0 0.0
        %4261 = vmatpush1.msra.mxu0 0.0
        %4262 = vmatprep.subr.mxu0 0.0
        %4263 = vmatpush1.msra.mxu0 0.0
        %4264 = vmatprep.subr.mxu0 0.0
        %4265 = vmatpush1.msra.mxu0 0.0
        %4266 = vmatprep.subr.mxu0 0.0
        %4267 = vmatpush1.msra.mxu0 0.0
        %4268 = vmatprep.subr.mxu0 0.0
        %4269 = vmatpush1.msra.mxu0 0.0
        %4270 = vmatprep.subr.mxu0 0.0
        %4271 = vmatpush1.msra.mxu0 0.0
        %4272 = vmatprep.subr.mxu0 0.0
        %4273 = vmatpush1.msra.mxu0 0.0
        %4274 = vmatprep.subr.mxu0 0.0
        %4275 = vmatpush1.msra.mxu0 0.0
        %4276 = vmatprep.subr.mxu0 0.0
        %4277 = vmatpush1.msra.mxu0 0.0
        %4278 = vmatprep.subr.mxu0 0.0
        %4279 = vmatpush1.msra.mxu0 0.0
        %4280 = vmatprep.subr.mxu0 0.0
        %4281 = vmatpush1.msra.mxu0 0.0
        %4282 = vmatprep.subr.mxu0 0.0
        %4283 = vmatpush1.msra.mxu0 0.0
        %4284 = vmatprep.subr.mxu0 0.0
        %4285 = vmatpush1.msra.mxu0 0.0
        %4286 = vmatprep.mubr.f32.mxu0 0.0
        %4287 = vmatmul.mubr.f32.gmra.mrb[0].mxu0 %v4217
        %v4288 = vpop.f32.mrb[0].mxu0
        %v4289 = vadd.f32 0.0, %v4288
        %v4290 = vpop.f32.mrb[0].mxu0
        %4291 = vmatprep.mubr.f32.mxu0 0.0
        %4292 = vmatmul.mubr.f32.gmra.mrb[0].mxu0 %v4220
        %v4293 = vpop.f32.mrb[0].mxu0
        %v4294 = vadd.f32 0.0, %v4293
        %v4295 = vpop.f32.mrb[0].mxu0
        %4296 = vdwg.mxu0
        %v4297 = vsub.f32 0.0, %v4289
        %v4298 = vsub.f32 0.0, %v4294
        %v4299 = vmul.f32 %v4210, %v4297
        %v4300 = vmul.f32 %v4211, %v4298
        %4301 = vmatprep.subr.mxu0 0.0
        %4302 = vmatpush1.msra.mxu0 %v4299
        %4303 = vmatprep.subr.mxu0 0.0
        %4304 = vmatpush1.msra.mxu0 %v4300
        %4305 = vmatprep.subr.mxu0 0.0
        %4306 = vmatpush1.msra.mxu0 0.0
        %4307 = vmatprep.subr.mxu0 0.0
        %4308 = vmatpush1.msra.mxu0 0.0
        %4309 = vmatprep.subr.mxu0 0.0
        %4310 = vmatpush1.msra.mxu0 0.0
        %4311 = vmatprep.subr.mxu0 0.0
        %4312 = vmatpush1.msra.mxu0 0.0
        %4313 = vmatprep.subr.mxu0 0.0
        %4314 = vmatpush1.msra.mxu0 0.0
        %4315 = vmatprep.subr.mxu0 0.0
        %4316 = vmatpush1.msra.mxu0 0.0
        %4317 = vmatprep.subr.mxu0 0.0
        %4318 = vmatpush1.msra.mxu0 0.0
        %4319 = vmatprep.subr.mxu0 0.0
        %4320 = vmatpush1.msra.mxu0 0.0
        %4321 = vmatprep.subr.mxu0 0.0
        %4322 = vmatpush1.msra.mxu0 0.0
        %4323 = vmatprep.subr.mxu0 0.0
        %4324 = vmatpush1.msra.mxu0 0.0
        %4325 = vmatprep.subr.mxu0 0.0
        %4326 = vmatpush1.msra.mxu0 0.0
        %4327 = vmatprep.subr.mxu0 0.0
        %4328 = vmatpush1.msra.mxu0 0.0
        %4329 = vmatprep.subr.mxu0 0.0
        %4330 = vmatpush1.msra.mxu0 0.0
        %4331 = vmatprep.subr.mxu0 0.0
        %4332 = vmatpush1.msra.mxu0 0.0
        %4333 = vmatprep.subr.mxu0 0.0
        %4334 = vmatpush1.msra.mxu0 0.0
        %4335 = vmatprep.subr.mxu0 0.0
        %4336 = vmatpush1.msra.mxu0 0.0
        %4337 = vmatprep.subr.mxu0 0.0
        %4338 = vmatpush1.msra.mxu0 0.0
        %4339 = vmatprep.subr.mxu0 0.0
        %4340 = vmatpush1.msra.mxu0 0.0
        %4341 = vmatprep.subr.mxu0 0.0
        %4342 = vmatpush1.msra.mxu0 0.0
        %4343 = vmatprep.subr.mxu0 0.0
        %4344 = vmatpush1.msra.mxu0 0.0
        %4345 = vmatprep.subr.mxu0 0.0
        %4346 = vmatpush1.msra.mxu0 0.0
        %4347 = vmatprep.subr.mxu0 0.0
        %4348 = vmatpush1.msra.mxu0 0.0
        %4349 = vmatprep.subr.mxu0 0.0
        %4350 = vmatpush1.msra.mxu0 0.0
        %4351 = vmatprep.subr.mxu0 0.0
        %4352 = vmatpush1.msra.mxu0 0.0
        %4353 = vmatprep.subr.mxu0 0.0
        %4354 = vmatpush1.msra.mxu0 0.0
        %4355 = vmatprep.subr.mxu0 0.0
        %4356 = vmatpush1.msra.mxu0 0.0
        %4357 = vmatprep.subr.mxu0 0.0
        %4358 = vmatpush1.msra.mxu0 0.0
        %4359 = vmatprep.subr.mxu0 0.0
        %4360 = vmatpush1.msra.mxu0 0.0
        %4361 = vmatprep.subr.mxu0 0.0
        %4362 = vmatpush1.msra.mxu0 0.0
        %4363 = vmatprep.subr.mxu0 0.0
        %4364 = vmatpush1.msra.mxu0 0.0
        %4365 = vmatprep.mubr.f32.mxu0 0.0
        %4366 = vmatmul.mubr.f32.gmra.mrb[0].mxu0 %v4217
        %v4367 = vpop.f32.mrb[0].mxu0
        %v4368 = vadd.f32 0.0, %v4367
        %v4369 = vpop.f32.mrb[0].mxu0
        %4370 = vmatprep.mubr.f32.mxu0 0.0
        %4371 = vmatmul.mubr.f32.gmra.mrb[0].mxu0 %v4220
        %v4372 = vpop.f32.mrb[0].mxu0
        %v4373 = vadd.f32 0.0, %v4372
        %v4374 = vpop.f32.mrb[0].mxu0
        %4375 = vdwg.mxu0
        %v4376 = vmul.f32 %v4368, -2.0
        %v4377 = vmul.f32 %v4373, -2.0
        %v4378 = vsub.f32 %v4376, %v3907
        %v4379 = vsub.f32 %v4377, %v3908
        %4382 = vrot.lane.b32.xlu0 %v4297, 64
        %v4383 = vpop.permute.xlu0 %4382
        %4384 = vrot.lane.b32.xlu0 %v4298, 64
        %v4385 = vpop.permute.xlu0 %4384
        %v4388 = vsel %vm1501, %v3907, %v4383
        %v4389 = vsel %vm1501, %v3908, %v4385
        %v4391 = vlaneseq
        %v4392 = vshrl.u32 %v4391, 7
        %v4393 = vsub.s32 0, %v4392
        %v4394 = vrot.slane %v3946, %v4393
        %v4397 = vsel %vm1501, %v4378, 0
        %v4400 = vsel %vm1501, %v4379, 0
        %4402 = vmatprep.subr.mxu0 0.0
        %4403 = vmatpush1.msra.mxu0 %v3921
        %4404 = vmatprep.subr.mxu0 0.0
        %4405 = vmatpush1.msra.mxu0 %v3922
        %4406 = vmatprep.subr.mxu0 0.0
        %4407 = vmatpush1.msra.mxu0 %v3923
        %4408 = vmatprep.subr.mxu0 0.0
        %4409 = vmatpush1.msra.mxu0 %v3924
        %4410 = vmatprep.subr.mxu0 0.0
        %4411 = vmatpush1.msra.mxu0 %v3925
        %4412 = vmatprep.subr.mxu0 0.0
        %4413 = vmatpush1.msra.mxu0 %v3926
        %4414 = vmatprep.subr.mxu0 0.0
        %4415 = vmatpush1.msra.mxu0 %v3927
        %4416 = vmatprep.subr.mxu0 0.0
        %4417 = vmatpush1.msra.mxu0 %v3928
        %4418 = vmatprep.subr.mxu0 0.0
        %4419 = vmatpush1.msra.mxu0 %v3929
        %4420 = vmatprep.subr.mxu0 0.0
        %4421 = vmatpush1.msra.mxu0 %v3930
        %4422 = vmatprep.subr.mxu0 0.0
        %4423 = vmatpush1.msra.mxu0 %v3931
        %4424 = vmatprep.subr.mxu0 0.0
        %4425 = vmatpush1.msra.mxu0 %v3932
        %4426 = vmatprep.subr.mxu0 0.0
        %4427 = vmatpush1.msra.mxu0 %v3933
        %4428 = vmatprep.subr.mxu0 0.0
        %4429 = vmatpush1.msra.mxu0 %v3934
        %4430 = vmatprep.subr.mxu0 0.0
        %4431 = vmatpush1.msra.mxu0 %v3935
        %4432 = vmatprep.subr.mxu0 0.0
        %4433 = vmatpush1.msra.mxu0 %v3936
        %4434 = vmatprep.subr.mxu0 0.0
        %4435 = vmatpush1.msra.mxu0 %v3937
        %4436 = vmatprep.subr.mxu0 0.0
        %4437 = vmatpush1.msra.mxu0 %v3938
        %4438 = vmatprep.subr.mxu0 0.0
        %4439 = vmatpush1.msra.mxu0 %v3939
        %4440 = vmatprep.subr.mxu0 0.0
        %4441 = vmatpush1.msra.mxu0 %v3940
        %4442 = vmatprep.subr.mxu0 0.0
        %4443 = vmatpush1.msra.mxu0 %v3941
        %4444 = vmatprep.subr.mxu0 0.0
        %4445 = vmatpush1.msra.mxu0 %v3942
        %4446 = vmatprep.subr.mxu0 0.0
        %4447 = vmatpush1.msra.mxu0 %v3943
        %4448 = vmatprep.subr.mxu0 0.0
        %4449 = vmatpush1.msra.mxu0 %v3944
        %4450 = vmatprep.subr.mxu0 0.0
        %4451 = vmatpush1.msra.mxu0 0.0
        %4452 = vmatprep.subr.mxu0 0.0
        %4453 = vmatpush1.msra.mxu0 0.0
        %4454 = vmatprep.subr.mxu0 0.0
        %4455 = vmatpush1.msra.mxu0 0.0
        %4456 = vmatprep.subr.mxu0 0.0
        %4457 = vmatpush1.msra.mxu0 0.0
        %4458 = vmatprep.subr.mxu0 0.0
        %4459 = vmatpush1.msra.mxu0 0.0
        %4460 = vmatprep.subr.mxu0 0.0
        %4461 = vmatpush1.msra.mxu0 0.0
        %4462 = vmatprep.subr.mxu0 0.0
        %4463 = vmatpush1.msra.mxu0 0.0
        %4464 = vmatprep.subr.mxu0 0.0
        %4465 = vmatpush1.msra.mxu0 0.0
        %4466 = vmatprep.mubr.f32.mxu0 %v4397
        %4467 = vmatmul.mubr.f32.gmra.mrb[0].mxu0 %v4388
        %v4468 = vpop.f32.mrb[0].mxu0
        %v4469 = vadd.f32 %v4394, %v4468
        %v4470 = vpop.f32.mrb[0].mxu0
        %4471 = vmatprep.mubr.f32.mxu0 %v4400
        %4472 = vmatmul.mubr.f32.gmra.mrb[0].mxu0 %v4389
        %v4473 = vpop.f32.mrb[0].mxu0
        %v4474 = vadd.f32 %v4394, %v4473
        %v4475 = vpop.f32.mrb[0].mxu0
        %4476 = vdwg.mxu0
        %v4477 = vmax.f32 %v4469, 0.0
        %v4478 = vmax.f32 %v4474, 0.0
        %4479 = vrot.lane.b32.xlu0 %v4477, 32
        %v4480 = vpop.permute.xlu0 %4479
        %v4481 = vsel %vm2022, %v4480, %v4477
        %4482 = vrot.lane.b32.xlu0 %v4478, 32
        %v4483 = vpop.permute.xlu0 %4482
        %v4484 = vsel %vm2022, %v4483, %v4478
        %4485 = vrot.lane.b32.xlu0 %v4481, 32
        %v4486 = vpop.permute.xlu0 %4485
        %4487 = vrot.lane.b32.xlu0 %v4484, 32
        %v4488 = vpop.permute.xlu0 %4487
        %v4489 = vsel %vm2022, %v4486, %v4477
        %v4490 = vsel %vm2022, %v4488, %v4478
        %4493 = vrot.lane.b32.xlu0 %v4489, 97
        %v4494 = vpop.permute.xlu0 %4493
        %4495 = vrot.lane.b32.xlu0 %v4490, 97
        %v4496 = vpop.permute.xlu0 %4495
        %v4499 = vsel %vm847, 0.0, %v4494
        %v4500 = vsel %vm847, 0.0, %v4496
        %4501 = vrot.lane.b32.xlu0 %v4489, 127
        %v4502 = vpop.permute.xlu0 %4501
        %4503 = vrot.lane.b32.xlu0 %v4490, 127
        %v4504 = vpop.permute.xlu0 %4503
        %v4507 = vsel %vm849, 0.0, %v4502
        %v4508 = vsel %vm849, 0.0, %v4504
        %v4509 = vstv %s3947
        %v4510 = vmul.f32 %v4509, %v4499
        %v4511 = vmul.f32 %v4509, %v4500
        %v4512 = vstv %s3948
        %v4513 = vmul.f32 %v4512, %v4477
        %v4514 = vmul.f32 %v4512, %v4478
        %v4515 = vadd.f32 %v4510, %v4513
        %v4516 = vadd.f32 %v4511, %v4514
        %v4517 = vstv %s3949
        %v4518 = vmul.f32 %v4517, %v4507
        %v4519 = vmul.f32 %v4517, %v4508
        %v4520 = vadd.f32 %v4515, %v4518
        %v4521 = vadd.f32 %v4516, %v4519
        %v4522 = vstv %s3950
        %v4523 = vadd.f32 %v4520, %v4522
        %v4524 = vadd.f32 %v4521, %v4522
        %v4525 = vmax.f32 %v4523, 0.0
        %v4526 = vmax.f32 %v4524, 0.0
        %v4527 = vld [vmem:[%s20] sm:$0xff]
        %v4528 = vld [vmem:[%s20 + $0x8] sm:$0xff]
        %v4529 = vld [vmem:[%s20 + $0x10] sm:$0xff]
        %v4530 = vld [vmem:[%s20 + $0x18] sm:$0xff]
        %v4531 = vld [vmem:[%s21] sm:$0x1]
        %v4533 = vlaneseq
        %v4534 = vshrl.u32 %v4533, 7
        %v4535 = vsub.s32 0, %v4534
        %v4536 = vrot.slane %v4531, %v4535
        %vm4538 = vcmask 261120
        %v4540 = vsel %vm4538, %v2069, 0
        %v4543 = vsel %vm4538, %v2070, 0
        %v4546 = vsel %vm4538, %v3297, 0
        %v4549 = vsel %vm4538, %v3298, 0
        %v4552 = vsel %vm4538, %v4525, 0
        %v4555 = vsel %vm4538, %v4526, 0
        %4557 = vmatprep.subr.mxu0 0.0
        %4558 = vmatpush1.msra.mxu0 %v4527
        %4559 = vmatprep.subr.mxu0 0.0
        %4560 = vmatpush1.msra.mxu0 %v4528
        %4561 = vmatprep.subr.mxu0 0.0
        %4562 = vmatpush1.msra.mxu0 %v4529
        %4563 = vmatprep.subr.mxu0 0.0
        %4564 = vmatpush1.msra.mxu0 %v4530
        %4565 = vmatprep.subr.mxu0 0.0
        %4566 = vmatpush1.msra.mxu0 0.0
        %4567 = vmatprep.subr.mxu0 0.0
        %4568 = vmatpush1.msra.mxu0 0.0
        %4569 = vmatprep.subr.mxu0 0.0
        %4570 = vmatpush1.msra.mxu0 0.0
        %4571 = vmatprep.subr.mxu0 0.0
        %4572 = vmatpush1.msra.mxu0 0.0
        %4573 = vmatprep.subr.mxu0 0.0
        %4574 = vmatpush1.msra.mxu0 0.0
        %4575 = vmatprep.subr.mxu0 0.0
        %4576 = vmatpush1.msra.mxu0 0.0
        %4577 = vmatprep.subr.mxu0 0.0
        %4578 = vmatpush1.msra.mxu0 0.0
        %4579 = vmatprep.subr.mxu0 0.0
        %4580 = vmatpush1.msra.mxu0 0.0
        %4581 = vmatprep.subr.mxu0 0.0
        %4582 = vmatpush1.msra.mxu0 0.0
        %4583 = vmatprep.subr.mxu0 0.0
        %4584 = vmatpush1.msra.mxu0 0.0
        %4585 = vmatprep.subr.mxu0 0.0
        %4586 = vmatpush1.msra.mxu0 0.0
        %4587 = vmatprep.subr.mxu0 0.0
        %4588 = vmatpush1.msra.mxu0 0.0
        %4589 = vmatprep.subr.mxu0 0.0
        %4590 = vmatpush1.msra.mxu0 0.0
        %4591 = vmatprep.subr.mxu0 0.0
        %4592 = vmatpush1.msra.mxu0 0.0
        %4593 = vmatprep.subr.mxu0 0.0
        %4594 = vmatpush1.msra.mxu0 0.0
        %4595 = vmatprep.subr.mxu0 0.0
        %4596 = vmatpush1.msra.mxu0 0.0
        %4597 = vmatprep.subr.mxu0 0.0
        %4598 = vmatpush1.msra.mxu0 0.0
        %4599 = vmatprep.subr.mxu0 0.0
        %4600 = vmatpush1.msra.mxu0 0.0
        %4601 = vmatprep.subr.mxu0 0.0
        %4602 = vmatpush1.msra.mxu0 0.0
        %4603 = vmatprep.subr.mxu0 0.0
        %4604 = vmatpush1.msra.mxu0 0.0
        %4605 = vmatprep.subr.mxu0 0.0
        %4606 = vmatpush1.msra.mxu0 0.0
        %4607 = vmatprep.subr.mxu0 0.0
        %4608 = vmatpush1.msra.mxu0 0.0
        %4609 = vmatprep.subr.mxu0 0.0
        %4610 = vmatpush1.msra.mxu0 0.0
        %4611 = vmatprep.subr.mxu0 0.0
        %4612 = vmatpush1.msra.mxu0 0.0
        %4613 = vmatprep.subr.mxu0 0.0
        %4614 = vmatpush1.msra.mxu0 0.0
        %4615 = vmatprep.subr.mxu0 0.0
        %4616 = vmatpush1.msra.mxu0 0.0
        %4617 = vmatprep.subr.mxu0 0.0
        %4618 = vmatpush1.msra.mxu0 0.0
        %4619 = vmatprep.subr.mxu0 0.0
        %4620 = vmatpush1.msra.mxu0 0.0
        %4621 = vmatprep.mubr.f32.mxu0 0.0
        %4622 = vmatmul.mubr.f32.gmra.mrb[0].mxu0 %v4540
        %v4623 = vpop.f32.mrb[0].mxu0
        %v4624 = vadd.f32 %v4536, %v4623
        %v4625 = vpop.f32.mrb[0].mxu0
        %4626 = vmatprep.mubr.f32.mxu0 0.0
        %4627 = vmatmul.mubr.f32.gmra.mrb[0].mxu0 %v4543
        %v4628 = vpop.f32.mrb[0].mxu0
        %v4629 = vadd.f32 %v4536, %v4628
        %v4630 = vpop.f32.mrb[0].mxu0
        %4631 = vmatprep.mubr.f32.mxu0 0.0
        %4632 = vmatmul.mubr.f32.gmra.mrb[0].mxu0 %v4546
        %v4633 = vpop.f32.mrb[0].mxu0
        %v4634 = vadd.f32 %v4536, %v4633
        %v4635 = vpop.f32.mrb[0].mxu0
        %4636 = vmatprep.mubr.f32.mxu0 0.0
        %4637 = vmatmul.mubr.f32.gmra.mrb[0].mxu0 %v4549
        %v4638 = vpop.f32.mrb[0].mxu0
        %v4639 = vadd.f32 %v4536, %v4638
        %v4640 = vpop.f32.mrb[0].mxu0
        %4641 = vmatprep.mubr.f32.mxu0 0.0
        %4642 = vmatmul.mubr.f32.gmra.mrb[0].mxu0 %v4552
        %v4643 = vpop.f32.mrb[0].mxu0
        %v4644 = vadd.f32 %v4536, %v4643
        %v4645 = vpop.f32.mrb[0].mxu0
        %4646 = vmatprep.mubr.f32.mxu0 0.0
        %4647 = vmatmul.mubr.f32.gmra.mrb[0].mxu0 %v4555
        %v4648 = vpop.f32.mrb[0].mxu0
        %v4649 = vadd.f32 %v4536, %v4648
        %v4650 = vpop.f32.mrb[0].mxu0
        %4651 = vdwg.mxu0
        %v4652 = vmax.f32 %v4624, 0.0
        %v4653 = vmax.f32 %v4629, 0.0
        %v4654 = vmax.f32 %v4634, 0.0
        %v4655 = vmax.f32 %v4639, 0.0
        %v4656 = vmax.f32 %v4644, 0.0
        %v4657 = vmax.f32 %v4649, 0.0
        %v4658 = vld [vmem:[%s22] sm:$0x1]
        %v4660 = vlaneseq
        %v4661 = vshrl.u32 %v4660, 7
        %v4662 = vsub.s32 0, %v4661
        %v4663 = vrot.slane %v4658, %v4662
        %v4665 = vmul.f32 %v4663, %v4652
        %v4666 = vmul.f32 %v4663, %v4653
        %s4667 = scalar_lea.vmem %s22, 1
        %v4668 = vld [vmem:[%s4667] sm:$0x1]
        %v4670 = vlaneseq
        %v4671 = vshrl.u32 %v4670, 7
        %v4672 = vsub.s32 0, %v4671
        %v4673 = vrot.slane %v4668, %v4672
        %v4675 = vmul.f32 %v4673, %v4654
        %v4676 = vmul.f32 %v4673, %v4655
        %v4677 = vadd.f32 %v4665, %v4675
        %v4678 = vadd.f32 %v4666, %v4676
        %s4679 = scalar_lea.vmem %s22, 2
        %v4680 = vld [vmem:[%s4679] sm:$0x1]
        %v4682 = vlaneseq
        %v4683 = vshrl.u32 %v4682, 7
        %v4684 = vsub.s32 0, %v4683
        %v4685 = vrot.slane %v4680, %v4684
        %v4687 = vmul.f32 %v4685, %v4656
        %v4688 = vmul.f32 %v4685, %v4657
        %v4689 = vadd.f32 %v4677, %v4687
        %v4690 = vadd.f32 %v4678, %v4688
        %vm4691 = vcmask 31744
        %4692 = vst.msk [vmem:[%s842] sm:$0xff] %vm4691, %v4689
        %4693 = vst.msk [vmem:[%s842 + $0x8] sm:$0xff] %vm4691, %v4690
        %p4694 = scmp.lt.s32.totalorder %s38, 1
        %s4695 = scalar_select %p4694, %s38, 1
        %s4696 = smul.addr %s4695, 2
        %s4697 = smul.addr %s4696, 8
        %s4698 = scalar_lea.vmem %s23, %s4697
        // Predicated region
        $region175: #{astgcn_notatt.1} parent=145 // pred_check
          %p4699 = pneg %p544
        $region176: #{astgcn_notatt.1} parent=145 // pred_check_branch
          %4701 = sbr.rel (%p4699) target = $region178
        $region177: #{astgcn_notatt.1} parent=145 // pred_region
          _
        $region178: #{astgcn_notatt.1} parent=145 // pred_fallthru
          _
      $region146: #{astgcn_notatt.1} parent=5 // pred_fallthru
        _
      %p4702 = scmp.le.s32.totalorder 2, %s33
      // Predicated region
      $region179: #{astgcn_notatt.1} parent=5 // pred_check
        %p4703 = pneg %p4702
      $region180: #{astgcn_notatt.1} parent=5 // pred_check_branch
        %4705 = sbr.rel (%p4703) target = $region182
      $region181: #{astgcn_notatt.1} parent=5 // pred_region
        %s4706 = ssub.s32 %s33, 2
        // Predicated region
        $region183: #{astgcn_notatt.1} parent=181 // pred_check
          %p4707 = pneg %p550
        $region184: #{astgcn_notatt.1} parent=181 // pred_check_branch
          %4709 = sbr.rel (%p4707) target = $region186
        $region185: #{astgcn_notatt.1} parent=181 // pred_region
          %p4710 = scmp.lt.s32.totalorder %s39, 1
          %s4711 = scalar_select %p4710, %s39, 1
          %s4712 = smul.addr %s4711, 2
          %s4713 = smul.addr %s4712, 8
          %s4714 = scalar_lea.vmem %s23, %s4713
        $region186: #{astgcn_notatt.1} parent=181 // pred_fallthru
          _
      $region182: #{astgcn_notatt.1} parent=5 // pred_fallthru
        _
    $region6: #{astgcn_notatt.1} parent=1 // loop_footer
      %s37 = sadd.s32 1, %s33
    $region7: #{astgcn_notatt.1} parent=1 // loop_footer_branch
      %32 = sbr.rel target = $region3
    $region8: #{astgcn_notatt.1} parent=1 // loop_exit
      _
    %4715 = vsyncpa [#allocation4], 1
    %s4716 = scalar_lea.sflag [#allocation4], 1
    %4717 = vsyncpa %s4716, 1
    %4718 = vsyncpa [#allocation6], 1
    %4719 = vsyncpa [#allocation9], 1
    %4720 = vsyncpa [#allocation12], 1

</llo_original>
